<compile_context>
chip_gen: v7x
topology: tpu7x:2x2x1
jax: 0.10.0
libtpu: 0.0.40
codegen_flags: <defaults>
</compile_context>

<pallas_src>
from functools import partial

import jax
import jax.numpy as jnp
from jax.experimental import pallas as pl
from jax.experimental.pallas import tpu as pltpu

_LANE = 128                     # MXU / vreg lane width (pad Cout up to this)


def _round_up(n, m):
    return (n + m - 1) // m * m


def _pick_vmem_limit():
    """~85% of this chip's VMEM, capped at 100 MiB (v7x has only 64 MiB)."""
    cap = 128 * 1024 * 1024
    try:
        cap = int(getattr(pltpu.get_tpu_info(), "vmem_capacity_bytes", cap))
    except Exception:
        pass
    return int(min(int(cap * 0.85), 100 * 1024 * 1024))


_VMEM_LIMIT = _pick_vmem_limit()


# ----------------------------- Pallas kernel ------------------------------ #
def resblock_down_kernel(x_ref, w1_ref, w2_ref, wl_ref, b_ref, o_ref,
                         pad1_ref, patch1_ref, pad2_ref):
    H, W, Cin = x_ref.shape
    C2 = pad2_ref.shape[2]                   # lane-padded channel count (k*128)
    Ho, Wo = H // 2, W // 2

    def reflect_pad(pad_ref, interior):
        """ReflectionPad2d(1) via plain ref stores (corners via column copies)."""
        pad_ref[1:H + 1, 1:W + 1, :] = interior
        pad_ref[0:1, 1:W + 1, :] = pad_ref[2:3, 1:W + 1, :]              # top
        pad_ref[H + 1:H + 2, 1:W + 1, :] = pad_ref[H - 1:H, 1:W + 1, :]  # bottom
        pad_ref[:, 0:1, :] = pad_ref[:, 2:3, :]                          # left
        pad_ref[:, W + 1:W + 2, :] = pad_ref[:, W - 1:W, :]              # right

    # ---- conv_r1: relu -> reflect pad -> 3x3 conv (one K=9*Cin MXU matmul) --
    reflect_pad(pad1_ref, jnp.maximum(x_ref[...], 0.0))                  # relu fused
    for t in range(9):                        # im2col into a bf16 scratch
        dy, dx = t // 3, t % 3
        patch1_ref[:, :, t * Cin:(t + 1) * Cin] = (
            pad1_ref[dy:dy + H, dx:dx + W, :].astype(jnp.bfloat16))
    y1 = jnp.dot(patch1_ref[...].reshape(H * W, 9 * Cin), w1_ref[...],
                 preferred_element_type=jnp.float32) + b_ref[0:1, :]

    # ---- conv_r2 with the 2x2 avg-pool folded in (4x4 stride-2 conv) --------
    reflect_pad(pad2_ref, jnp.maximum(y1, 0.0).reshape(H, W, C2))        # relu fused
    acc = jnp.broadcast_to(b_ref[1:2, :], (Ho * Wo, C2))    # pool(bias) == bias
    for t in range(16):                       # 16 taps, each a K=C2 MXU dot
        u, v = t // 4, t % 4
        tap = pad2_ref[pl.ds(u, Ho, 2), pl.ds(v, Wo, 2), :]              # stride-2 view
        acc = acc + jnp.dot(tap.reshape(Ho * Wo, C2).astype(jnp.bfloat16),
                            w2_ref[t * C2:(t + 1) * C2, :],
                            preferred_element_type=jnp.float32)

    # ---- skip branch: avg_pool2d(x, 2) via strided f32 sums -> 1x1 conv -----
    # (x is re-read from its VMEM ref here; no long live range across convs.)
    xp = (x_ref[pl.ds(0, Ho, 2), pl.ds(0, Wo, 2), :]
          + x_ref[pl.ds(0, Ho, 2), pl.ds(1, Wo, 2), :]
          + x_ref[pl.ds(1, Ho, 2), pl.ds(0, Wo, 2), :]
          + x_ref[pl.ds(1, Ho, 2), pl.ds(1, Wo, 2), :]) * 0.25
    skip = jnp.dot(xp.reshape(Ho * Wo, Cin).astype(jnp.bfloat16), wl_ref[...],
                   preferred_element_type=jnp.float32) + b_ref[2:3, :]

    # (Ho*Wo, C2) is lane-dense (C2 % 128 == 0): store directly; the NCHW
    # permute and the channel un-pad happen in the wrapper.
    o_ref[...] = acc + skip


# ------------------------------ JAX wrapper ------------------------------- #
@partial(jax.jit, static_argnames=("out_channels",))
def residual_block_down(x_nchw, kernel_params, *, out_channels):
    """x_nchw: (N, Cin, H, W) f32 -> (N, out_channels, H//2, W//2) f32."""
    w1_flat, w2_flat, wl_flat, b_pack = kernel_params
    N, Cin, H, W = x_nchw.shape
    C2 = w1_flat.shape[1]                    # lane-padded Cout
    assert H % 2 == 0 and W % 2 == 0 and H >= 2 and W >= 2
    Ho, Wo = H // 2, W // 2

    x = jnp.transpose(x_nchw, (0, 2, 3, 1)).astype(jnp.float32)          # -> NHWC

    const2d = lambda b: (0, 0)
    out = pl.pallas_call(
        resblock_down_kernel,
        out_shape=jax.ShapeDtypeStruct((N, Ho * Wo, C2), jnp.float32),
        grid_spec=pltpu.PrefetchScalarGridSpec(
            num_scalar_prefetch=0,
            grid=(N,),
            in_specs=[
                pl.BlockSpec((None, H, W, Cin), lambda b: (b, 0, 0, 0)),  # x
                pl.BlockSpec((9 * Cin, C2), const2d),        # conv_r1 (im2col flat)
                pl.BlockSpec((16 * C2, C2), const2d),        # pool-folded conv_r2
                pl.BlockSpec((Cin, C2), const2d),            # 1x1 skip weight
                pl.BlockSpec((3, C2), const2d),              # [b_r1; b_r2; b_l]
            ],
            out_specs=pl.BlockSpec((None, Ho * Wo, C2), lambda b: (b, 0, 0)),
            scratch_shapes=[
                pltpu.VMEM((H + 2, W + 2, Cin), jnp.float32),   # reflect pad 1
                pltpu.VMEM((H, W, 9 * Cin), jnp.bfloat16),      # im2col (conv_r1)
                pltpu.VMEM((H + 2, W + 2, C2), jnp.float32),    # reflect pad 2
            ],
        ),
        compiler_params=pltpu.CompilerParams(
            dimension_semantics=("parallel",),
            vmem_limit_bytes=_VMEM_LIMIT,
        ),
    )(x, w1_flat, w2_flat, wl_flat, b_pack)

    out = out[:, :, :out_channels].reshape(N, Ho, Wo, out_channels)
    return jnp.transpose(out, (0, 3, 1, 2))                               # NCHW


# ----------------------- parameter construction (glue) -------------------- #
def _spectral_normalize(w_oihw, key, n_iter=5):
    """Emulate torch.nn.utils.spectral_norm at inference: W / sigma_max(W)."""
    O = w_oihw.shape[0]
    wm = w_oihw.reshape(O, -1)
    u = jax.random.normal(key, (O,), jnp.float32)
    u = u / (jnp.linalg.norm(u) + 1e-12)
    v = None
    for _ in range(n_iter):
        v = wm.T @ u
        v = v / (jnp.linalg.norm(v) + 1e-12)
        u = wm @ v
        u = u / (jnp.linalg.norm(u) + 1e-12)
    sigma = u @ (wm @ v)
    return w_oihw / sigma


def pack_kernel_params(w1_hwio, b1, w2_hwio, b2, wl_hwio, bl):
    """Lane-pad Cout to a multiple of 128, fold the 2x2 avg-pool into conv_r2
    (3x3 conv + 2x2/stride-2 avg == one 4x4 stride-2 conv), flatten to im2col
    layout, cast weights to bf16, pack biases into one (3, C2) f32 array."""
    Cin, Cout = w1_hwio.shape[2], w1_hwio.shape[3]
    C2 = _round_up(Cout, _LANE)

    pad_out = lambda w: jnp.pad(w, [(0, 0)] * (w.ndim - 1) + [(0, C2 - Cout)])
    w1 = pad_out(w1_hwio)                                             # (3,3,Cin,C2)
    wl = pad_out(wl_hwio).reshape(Cin, C2)                            # (Cin,C2)

    # conv_r2: pad both channel dims, then fold the pool into the weights:
    # W4[u,v] = 0.25 * sum_{p,q in {0,1}} w2[u-p, v-q]   (valid indices only)
    w2 = jnp.pad(w2_hwio, ((0, 0), (0, 0), (0, C2 - Cout), (0, C2 - Cout)))
    w2_4 = jnp.zeros((4, 4, C2, C2), jnp.float32)
    for p in range(2):
        for q in range(2):
            w2_4 = w2_4.at[p:p + 3, q:q + 3].add(w2)
    w2_4 = 0.25 * w2_4                                                # (4,4,C2,C2)

    pad_b = lambda b: jnp.pad(b, (0, C2 - Cout))
    b_pack = jnp.stack([pad_b(b1), pad_b(b2), pad_b(bl)]).astype(jnp.float32)

    return (w1.reshape(9 * Cin, C2).astype(jnp.bfloat16),
            w2_4.reshape(16 * C2, C2).astype(jnp.bfloat16),
            wl.astype(jnp.bfloat16),
            b_pack)


def make_params(in_channels, out_channels, key):
    Cin, Cout = in_channels, out_channels
    ks = jax.random.split(key, 9)
    # PyTorch layout (O, I, kH, kW), spectral-normalized.
    w_r1 = _spectral_normalize(
        0.2 * jax.random.normal(ks[0], (Cout, Cin, 3, 3), jnp.float32), ks[1])
    w_r2 = _spectral_normalize(
        0.2 * jax.random.normal(ks[2], (Cout, Cout, 3, 3), jnp.float32), ks[3])
    w_l = _spectral_normalize(
        0.2 * jax.random.normal(ks[4], (Cout, Cin, 1, 1), jnp.float32), ks[5])
    b_r1 = 0.1 * jax.random.normal(ks[6], (Cout,), jnp.float32)
    b_r2 = 0.1 * jax.random.normal(ks[7], (Cout,), jnp.float32)
    b_l = 0.1 * jax.random.normal(ks[8], (Cout,), jnp.float32)

    # HWIO for the pure-JAX reference.
    w_r1_hwio = jnp.transpose(w_r1, (2, 3, 1, 0))
    w_r2_hwio = jnp.transpose(w_r2, (2, 3, 1, 0))
    w_l_hwio = jnp.transpose(w_l, (2, 3, 1, 0))

    kernel_params = pack_kernel_params(w_r1_hwio, b_r1, w_r2_hwio, b_r2,
                                       w_l_hwio, b_l)
    ref_params = (w_r1_hwio, b_r1, w_r2_hwio, b_r2, w_l_hwio, b_l)
    return kernel_params, ref_params


# --------------------------- pure-JAX reference ---------------------------- #
def ref_forward(x_nchw, ref_params):
    w1, b1, w2, b2, wl, bl = ref_params
    x = jnp.transpose(x_nchw, (0, 2, 3, 1)).astype(jnp.float32)

    def conv(a, w, b, pad):
        if pad:
            a = jnp.pad(a, ((0, 0), (pad, pad), (pad, pad), (0, 0)), mode="reflect")
        o = jax.lax.conv_general_dilated(
            a, w, window_strides=(1, 1), padding="VALID",
            dimension_numbers=("NHWC", "HWIO", "NHWC"))
        return o + b.reshape(1, 1, 1, -1)

    def avg_pool2(a):
        n, h, w, c = a.shape
        return a.reshape(n, h // 2, 2, w // 2, 2, c).mean(axis=(2, 4))

    out = jnp.maximum(x, 0.0)
    out = conv(out, w1, b1, 1)
    out = jnp.maximum(out, 0.0)
    out = conv(out, w2, b2, 1)
    out = avg_pool2(out)

    res = conv(x, wl, bl, 0)        # 1x1 conv, padding = 1//2 = 0
    res = avg_pool2(res)

    out = out + res
    return jnp.transpose(out, (0, 3, 1, 2))


if __name__ == "__main__":
    key = jax.random.PRNGKey(0)
    kparam, kx = jax.random.split(key)

    N, Cin, Cout, H, W = 2, 4, 4, 16, 16
    kernel_params, ref_params = make_params(Cin, Cout, kparam)
    x = jax.random.normal(kx, (N, Cin, H, W), jnp.float32)

    out = residual_block_down(x, kernel_params, out_channels=Cout)
    out = jax.block_until_ready(out)

    ref = ref_forward(x, ref_params)
    assert out.shape == (N, Cout, H // 2, W // 2), out.shape
    max_err = float(jnp.max(jnp.abs(out - ref)))
    # bf16 matmul operands with f32 accumulation -> bf16-sized tolerance.
    assert jnp.allclose(out, ref, atol=2e-2, rtol=2e-2), f"max abs err {max_err}"

    print("KERNEL_OK")
</pallas_src>

<mosaic_0001>
module attributes {stable_mosaic.version = 11 : i64} {
  func.func @resblock_down_kernel(%arg0: i32, %arg1: memref<1x16x16x4xf32, #tpu.memory_space<vmem>>, %arg2: memref<36x128xbf16, #tpu.memory_space<vmem>>, %arg3: memref<2048x128xbf16, #tpu.memory_space<vmem>>, %arg4: memref<4x128xbf16, #tpu.memory_space<vmem>>, %arg5: memref<3x128xf32, #tpu.memory_space<vmem>>, %arg6: memref<1x64x128xf32, #tpu.memory_space<vmem>>, %arg7: memref<18x18x4xf32, #tpu.memory_space<vmem>>, %arg8: memref<16x16x36xbf16, #tpu.memory_space<vmem>>, %arg9: memref<18x18x128xf32, #tpu.memory_space<vmem>>) attributes {dimension_semantics = [#tpu.dimension_semantics<parallel>], iteration_bounds = array<i64: 2>, scalar_prefetch = 0 : i64, scratch_operands = 3 : i64, tpu.core_type = #tpu.core_type<tc>, window_params = [{transform_indices = @transform_0, window_bounds = array<i64: 1, 16, 16, 4>}, {pipeline_mode = #tpu.pipeline_mode<synchronous>, transform_indices = @transform_1, window_bounds = array<i64: 36, 128>}, {pipeline_mode = #tpu.pipeline_mode<synchronous>, transform_indices = @transform_2, window_bounds = array<i64: 2048, 128>}, {pipeline_mode = #tpu.pipeline_mode<synchronous>, transform_indices = @transform_3, window_bounds = array<i64: 4, 128>}, {pipeline_mode = #tpu.pipeline_mode<synchronous>, transform_indices = @transform_4, window_bounds = array<i64: 3, 128>}, {transform_indices = @transform_5, window_bounds = array<i64: 1, 64, 128>}]} {
    %c0 = arith.constant 0 : index
    %c0_0 = arith.constant 0 : index
    %c0_1 = arith.constant 0 : index
    %c0_2 = arith.constant 0 : index
    %0 = vector.load %arg1[%c0, %c0_0, %c0_1, %c0_2] : memref<1x16x16x4xf32, #tpu.memory_space<vmem>>, vector<1x16x16x4xf32>
    %1 = vector.shape_cast %0 : vector<1x16x16x4xf32> to vector<16x16x4xf32>
    %cst = arith.constant 0.000000e+00 : f32
    %2 = vector.broadcast %cst : f32 to vector<16x16x4xf32>
    %3 = arith.maximumf %1, %2 : vector<16x16x4xf32>
    %c1 = arith.constant 1 : index
    %c1_3 = arith.constant 1 : index
    %c0_4 = arith.constant 0 : index
    %4 = vector.load %arg7[%c1, %c1_3, %c0_4] : memref<18x18x4xf32, #tpu.memory_space<vmem>>, vector<16x16x4xf32>
    tpu.vector_store %arg7[%c1, %c1_3, %c0_4], %3 {strides = array<i32>} : memref<18x18x4xf32, #tpu.memory_space<vmem>>, vector<16x16x4xf32>,
    %c2 = arith.constant 2 : index
    %c1_5 = arith.constant 1 : index
    %c0_6 = arith.constant 0 : index
    %5 = vector.load %arg7[%c2, %c1_5, %c0_6] : memref<18x18x4xf32, #tpu.memory_space<vmem>>, vector<1x16x4xf32>
    %c0_7 = arith.constant 0 : index
    %c1_8 = arith.constant 1 : index
    %c0_9 = arith.constant 0 : index
    %6 = vector.load %arg7[%c0_7, %c1_8, %c0_9] : memref<18x18x4xf32, #tpu.memory_space<vmem>>, vector<1x16x4xf32>
    tpu.vector_store %arg7[%c0_7, %c1_8, %c0_9], %5 {strides = array<i32>} : memref<18x18x4xf32, #tpu.memory_space<vmem>>, vector<1x16x4xf32>,
    %c15 = arith.constant 15 : index
    %c1_10 = arith.constant 1 : index
    %c0_11 = arith.constant 0 : index
    %7 = vector.load %arg7[%c15, %c1_10, %c0_11] : memref<18x18x4xf32, #tpu.memory_space<vmem>>, vector<1x16x4xf32>
    %c17 = arith.constant 17 : index
    %c1_12 = arith.constant 1 : index
    %c0_13 = arith.constant 0 : index
    %8 = vector.load %arg7[%c17, %c1_12, %c0_13] : memref<18x18x4xf32, #tpu.memory_space<vmem>>, vector<1x16x4xf32>
    tpu.vector_store %arg7[%c17, %c1_12, %c0_13], %7 {strides = array<i32>} : memref<18x18x4xf32, #tpu.memory_space<vmem>>, vector<1x16x4xf32>,
    %c0_14 = arith.constant 0 : index
    %c2_15 = arith.constant 2 : index
    %c0_16 = arith.constant 0 : index
    %9 = vector.load %arg7[%c0_14, %c2_15, %c0_16] : memref<18x18x4xf32, #tpu.memory_space<vmem>>, vector<18x1x4xf32>
    %c0_17 = arith.constant 0 : index
    %c0_18 = arith.constant 0 : index
    %c0_19 = arith.constant 0 : index
    %10 = vector.load %arg7[%c0_17, %c0_18, %c0_19] : memref<18x18x4xf32, #tpu.memory_space<vmem>>, vector<18x1x4xf32>
    tpu.vector_store %arg7[%c0_17, %c0_18, %c0_19], %9 {strides = array<i32>} : memref<18x18x4xf32, #tpu.memory_space<vmem>>, vector<18x1x4xf32>,
    %c0_20 = arith.constant 0 : index
    %c15_21 = arith.constant 15 : index
    %c0_22 = arith.constant 0 : index
    %11 = vector.load %arg7[%c0_20, %c15_21, %c0_22] : memref<18x18x4xf32, #tpu.memory_space<vmem>>, vector<18x1x4xf32>
    %c0_23 = arith.constant 0 : index
    %c17_24 = arith.constant 17 : index
    %c0_25 = arith.constant 0 : index
    %12 = vector.load %arg7[%c0_23, %c17_24, %c0_25] : memref<18x18x4xf32, #tpu.memory_space<vmem>>, vector<18x1x4xf32>
    tpu.vector_store %arg7[%c0_23, %c17_24, %c0_25], %11 {strides = array<i32>} : memref<18x18x4xf32, #tpu.memory_space<vmem>>, vector<18x1x4xf32>,
    %c0_26 = arith.constant 0 : index
    %c0_27 = arith.constant 0 : index
    %c0_28 = arith.constant 0 : index
    %13 = vector.load %arg7[%c0_26, %c0_27, %c0_28] : memref<18x18x4xf32, #tpu.memory_space<vmem>>, vector<16x16x4xf32>
    %14 = arith.truncf %13 : vector<16x16x4xf32> to vector<16x16x4xbf16>
    %c0_29 = arith.constant 0 : index
    %c0_30 = arith.constant 0 : index
    %c0_31 = arith.constant 0 : index
    %15 = vector.load %arg8[%c0_29, %c0_30, %c0_31] : memref<16x16x36xbf16, #tpu.memory_space<vmem>>, vector<16x16x4xbf16>
    tpu.vector_store %arg8[%c0_29, %c0_30, %c0_31], %14 {strides = array<i32>} : memref<16x16x36xbf16, #tpu.memory_space<vmem>>, vector<16x16x4xbf16>,
    %c0_32 = arith.constant 0 : index
    %c1_33 = arith.constant 1 : index
    %c0_34 = arith.constant 0 : index
    %16 = vector.load %arg7[%c0_32, %c1_33, %c0_34] : memref<18x18x4xf32, #tpu.memory_space<vmem>>, vector<16x16x4xf32>
    %17 = arith.truncf %16 : vector<16x16x4xf32> to vector<16x16x4xbf16>
    %c0_35 = arith.constant 0 : index
    %c0_36 = arith.constant 0 : index
    %c4 = arith.constant 4 : index
    %18 = vector.load %arg8[%c0_35, %c0_36, %c4] : memref<16x16x36xbf16, #tpu.memory_space<vmem>>, vector<16x16x4xbf16>
    tpu.vector_store %arg8[%c0_35, %c0_36, %c4], %17 {strides = array<i32>} : memref<16x16x36xbf16, #tpu.memory_space<vmem>>, vector<16x16x4xbf16>,
    %c0_37 = arith.constant 0 : index
    %c2_38 = arith.constant 2 : index
    %c0_39 = arith.constant 0 : index
    %19 = vector.load %arg7[%c0_37, %c2_38, %c0_39] : memref<18x18x4xf32, #tpu.memory_space<vmem>>, vector<16x16x4xf32>
    %20 = arith.truncf %19 : vector<16x16x4xf32> to vector<16x16x4xbf16>
    %c0_40 = arith.constant 0 : index
    %c0_41 = arith.constant 0 : index
    %c8 = arith.constant 8 : index
    %21 = vector.load %arg8[%c0_40, %c0_41, %c8] : memref<16x16x36xbf16, #tpu.memory_space<vmem>>, vector<16x16x4xbf16>
    tpu.vector_store %arg8[%c0_40, %c0_41, %c8], %20 {strides = array<i32>} : memref<16x16x36xbf16, #tpu.memory_space<vmem>>, vector<16x16x4xbf16>,
    %c1_42 = arith.constant 1 : index
    %c0_43 = arith.constant 0 : index
    %c0_44 = arith.constant 0 : index
    %22 = vector.load %arg7[%c1_42, %c0_43, %c0_44] : memref<18x18x4xf32, #tpu.memory_space<vmem>>, vector<16x16x4xf32>
    %23 = arith.truncf %22 : vector<16x16x4xf32> to vector<16x16x4xbf16>
    %c0_45 = arith.constant 0 : index
    %c0_46 = arith.constant 0 : index
    %c12 = arith.constant 12 : index
    %24 = vector.load %arg8[%c0_45, %c0_46, %c12] : memref<16x16x36xbf16, #tpu.memory_space<vmem>>, vector<16x16x4xbf16>
    tpu.vector_store %arg8[%c0_45, %c0_46, %c12], %23 {strides = array<i32>} : memref<16x16x36xbf16, #tpu.memory_space<vmem>>, vector<16x16x4xbf16>,
    %c1_47 = arith.constant 1 : index
    %c1_48 = arith.constant 1 : index
    %c0_49 = arith.constant 0 : index
    %25 = vector.load %arg7[%c1_47, %c1_48, %c0_49] : memref<18x18x4xf32, #tpu.memory_space<vmem>>, vector<16x16x4xf32>
    %26 = arith.truncf %25 : vector<16x16x4xf32> to vector<16x16x4xbf16>
    %c0_50 = arith.constant 0 : index
    %c0_51 = arith.constant 0 : index
    %c16 = arith.constant 16 : index
    %27 = vector.load %arg8[%c0_50, %c0_51, %c16] : memref<16x16x36xbf16, #tpu.memory_space<vmem>>, vector<16x16x4xbf16>
    tpu.vector_store %arg8[%c0_50, %c0_51, %c16], %26 {strides = array<i32>} : memref<16x16x36xbf16, #tpu.memory_space<vmem>>, vector<16x16x4xbf16>,
    %c1_52 = arith.constant 1 : index
    %c2_53 = arith.constant 2 : index
    %c0_54 = arith.constant 0 : index
    %28 = vector.load %arg7[%c1_52, %c2_53, %c0_54] : memref<18x18x4xf32, #tpu.memory_space<vmem>>, vector<16x16x4xf32>
    %29 = arith.truncf %28 : vector<16x16x4xf32> to vector<16x16x4xbf16>
    %c0_55 = arith.constant 0 : index
    %c0_56 = arith.constant 0 : index
    %c20 = arith.constant 20 : index
    %30 = vector.load %arg8[%c0_55, %c0_56, %c20] : memref<16x16x36xbf16, #tpu.memory_space<vmem>>, vector<16x16x4xbf16>
    tpu.vector_store %arg8[%c0_55, %c0_56, %c20], %29 {strides = array<i32>} : memref<16x16x36xbf16, #tpu.memory_space<vmem>>, vector<16x16x4xbf16>,
    %c2_57 = arith.constant 2 : index
    %c0_58 = arith.constant 0 : index
    %c0_59 = arith.constant 0 : index
    %31 = vector.load %arg7[%c2_57, %c0_58, %c0_59] : memref<18x18x4xf32, #tpu.memory_space<vmem>>, vector<16x16x4xf32>
    %32 = arith.truncf %31 : vector<16x16x4xf32> to vector<16x16x4xbf16>
    %c0_60 = arith.constant 0 : index
    %c0_61 = arith.constant 0 : index
    %c24 = arith.constant 24 : index
    %33 = vector.load %arg8[%c0_60, %c0_61, %c24] : memref<16x16x36xbf16, #tpu.memory_space<vmem>>, vector<16x16x4xbf16>
    tpu.vector_store %arg8[%c0_60, %c0_61, %c24], %32 {strides = array<i32>} : memref<16x16x36xbf16, #tpu.memory_space<vmem>>, vector<16x16x4xbf16>,
    %c2_62 = arith.constant 2 : index
    %c1_63 = arith.constant 1 : index
    %c0_64 = arith.constant 0 : index
    %34 = vector.load %arg7[%c2_62, %c1_63, %c0_64] : memref<18x18x4xf32, #tpu.memory_space<vmem>>, vector<16x16x4xf32>
    %35 = arith.truncf %34 : vector<16x16x4xf32> to vector<16x16x4xbf16>
    %c0_65 = arith.constant 0 : index
    %c0_66 = arith.constant 0 : index
    %c28 = arith.constant 28 : index
    %36 = vector.load %arg8[%c0_65, %c0_66, %c28] : memref<16x16x36xbf16, #tpu.memory_space<vmem>>, vector<16x16x4xbf16>
    tpu.vector_store %arg8[%c0_65, %c0_66, %c28], %35 {strides = array<i32>} : memref<16x16x36xbf16, #tpu.memory_space<vmem>>, vector<16x16x4xbf16>,
    %c2_67 = arith.constant 2 : index
    %c2_68 = arith.constant 2 : index
    %c0_69 = arith.constant 0 : index
    %37 = vector.load %arg7[%c2_67, %c2_68, %c0_69] : memref<18x18x4xf32, #tpu.memory_space<vmem>>, vector<16x16x4xf32>
    %38 = arith.truncf %37 : vector<16x16x4xf32> to vector<16x16x4xbf16>
    %c0_70 = arith.constant 0 : index
    %c0_71 = arith.constant 0 : index
    %c32 = arith.constant 32 : index
    %39 = vector.load %arg8[%c0_70, %c0_71, %c32] : memref<16x16x36xbf16, #tpu.memory_space<vmem>>, vector<16x16x4xbf16>
    tpu.vector_store %arg8[%c0_70, %c0_71, %c32], %38 {strides = array<i32>} : memref<16x16x36xbf16, #tpu.memory_space<vmem>>, vector<16x16x4xbf16>,
    %c0_72 = arith.constant 0 : index
    %c0_73 = arith.constant 0 : index
    %c0_74 = arith.constant 0 : index
    %40 = vector.load %arg8[%c0_72, %c0_73, %c0_74] : memref<16x16x36xbf16, #tpu.memory_space<vmem>>, vector<16x16x36xbf16>
    %41 = vector.shape_cast %40 : vector<16x16x36xbf16> to vector<256x36xbf16>
    %c0_75 = arith.constant 0 : index
    %c0_76 = arith.constant 0 : index
    %42 = vector.load %arg2[%c0_75, %c0_76] : memref<36x128xbf16, #tpu.memory_space<vmem>>, vector<36x128xbf16>
    %cst_77 = arith.constant dense<0.000000e+00> : vector<256x128xf32>
    %43 = tpu.matmul %41, %42, %cst_77 {dimension_numbers = #tpu.dot_dimension_numbers<[1], [0], [0], [1], [0, 0, 1, 1], [], []>} : vector<256x36xbf16>, vector<36x128xbf16>, vector<256x128xf32> -> vector<256x128xf32>
    %c0_78 = arith.constant 0 : index
    %c0_79 = arith.constant 0 : index
    %44 = vector.load %arg5[%c0_78, %c0_79] : memref<3x128xf32, #tpu.memory_space<vmem>>, vector<1x128xf32>
    %45 = vector.broadcast %44 : vector<1x128xf32> to vector<256x128xf32>
    %46 = arith.addf %43, %45 : vector<256x128xf32>
    %cst_80 = arith.constant 0.000000e+00 : f32
    %47 = vector.broadcast %cst_80 : f32 to vector<256x128xf32>
    %48 = arith.maximumf %46, %47 : vector<256x128xf32>
    %49 = vector.shape_cast %48 : vector<256x128xf32> to vector<16x16x128xf32>
    %c1_81 = arith.constant 1 : index
    %c1_82 = arith.constant 1 : index
    %c0_83 = arith.constant 0 : index
    %50 = vector.load %arg9[%c1_81, %c1_82, %c0_83] : memref<18x18x128xf32, #tpu.memory_space<vmem>>, vector<16x16x128xf32>
    tpu.vector_store %arg9[%c1_81, %c1_82, %c0_83], %49 {strides = array<i32>} : memref<18x18x128xf32, #tpu.memory_space<vmem>>, vector<16x16x128xf32>,
    %c2_84 = arith.constant 2 : index
    %c1_85 = arith.constant 1 : index
    %c0_86 = arith.constant 0 : index
    %51 = vector.load %arg9[%c2_84, %c1_85, %c0_86] : memref<18x18x128xf32, #tpu.memory_space<vmem>>, vector<1x16x128xf32>
    %c0_87 = arith.constant 0 : index
    %c1_88 = arith.constant 1 : index
    %c0_89 = arith.constant 0 : index
    %52 = vector.load %arg9[%c0_87, %c1_88, %c0_89] : memref<18x18x128xf32, #tpu.memory_space<vmem>>, vector<1x16x128xf32>
    tpu.vector_store %arg9[%c0_87, %c1_88, %c0_89], %51 {strides = array<i32>} : memref<18x18x128xf32, #tpu.memory_space<vmem>>, vector<1x16x128xf32>,
    %c15_90 = arith.constant 15 : index
    %c1_91 = arith.constant 1 : index
    %c0_92 = arith.constant 0 : index
    %53 = vector.load %arg9[%c15_90, %c1_91, %c0_92] : memref<18x18x128xf32, #tpu.memory_space<vmem>>, vector<1x16x128xf32>
    %c17_93 = arith.constant 17 : index
    %c1_94 = arith.constant 1 : index
    %c0_95 = arith.constant 0 : index
    %54 = vector.load %arg9[%c17_93, %c1_94, %c0_95] : memref<18x18x128xf32, #tpu.memory_space<vmem>>, vector<1x16x128xf32>
    tpu.vector_store %arg9[%c17_93, %c1_94, %c0_95], %53 {strides = array<i32>} : memref<18x18x128xf32, #tpu.memory_space<vmem>>, vector<1x16x128xf32>,
    %c0_96 = arith.constant 0 : index
    %c2_97 = arith.constant 2 : index
    %c0_98 = arith.constant 0 : index
    %55 = vector.load %arg9[%c0_96, %c2_97, %c0_98] : memref<18x18x128xf32, #tpu.memory_space<vmem>>, vector<18x1x128xf32>
    %c0_99 = arith.constant 0 : index
    %c0_100 = arith.constant 0 : index
    %c0_101 = arith.constant 0 : index
    %56 = vector.load %arg9[%c0_99, %c0_100, %c0_101] : memref<18x18x128xf32, #tpu.memory_space<vmem>>, vector<18x1x128xf32>
    tpu.vector_store %arg9[%c0_99, %c0_100, %c0_101], %55 {strides = array<i32>} : memref<18x18x128xf32, #tpu.memory_space<vmem>>, vector<18x1x128xf32>,
    %c0_102 = arith.constant 0 : index
    %c15_103 = arith.constant 15 : index
    %c0_104 = arith.constant 0 : index
    %57 = vector.load %arg9[%c0_102, %c15_103, %c0_104] : memref<18x18x128xf32, #tpu.memory_space<vmem>>, vector<18x1x128xf32>
    %c0_105 = arith.constant 0 : index
    %c17_106 = arith.constant 17 : index
    %c0_107 = arith.constant 0 : index
    %58 = vector.load %arg9[%c0_105, %c17_106, %c0_107] : memref<18x18x128xf32, #tpu.memory_space<vmem>>, vector<18x1x128xf32>
    tpu.vector_store %arg9[%c0_105, %c17_106, %c0_107], %57 {strides = array<i32>} : memref<18x18x128xf32, #tpu.memory_space<vmem>>, vector<18x1x128xf32>,
    %c1_108 = arith.constant 1 : index
    %c0_109 = arith.constant 0 : index
    %59 = vector.load %arg5[%c1_108, %c0_109] : memref<3x128xf32, #tpu.memory_space<vmem>>, vector<1x128xf32>
    %60 = vector.shape_cast %59 : vector<1x128xf32> to vector<1x128xf32>
    %61 = vector.broadcast %60 : vector<1x128xf32> to vector<64x128xf32>
    %c0_110 = arith.constant 0 : index
    %c0_111 = arith.constant 0 : index
    %c0_112 = arith.constant 0 : index
    %62 = tpu.strided_load %arg9[%c0_110, %c0_111, %c0_112] {strides = array<i32: 2, 2, 1>} : memref<18x18x128xf32, #tpu.memory_space<vmem>>, vector<8x8x128xf32>
    %63 = vector.shape_cast %62 : vector<8x8x128xf32> to vector<64x128xf32>
    %64 = arith.truncf %63 : vector<64x128xf32> to vector<64x128xbf16>
    %c0_113 = arith.constant 0 : index
    %c0_114 = arith.constant 0 : index
    %65 = vector.load %arg3[%c0_113, %c0_114] : memref<2048x128xbf16, #tpu.memory_space<vmem>>, vector<128x128xbf16>
    %cst_115 = arith.constant dense<0.000000e+00> : vector<64x128xf32>
    %66 = tpu.matmul %64, %65, %cst_115 {dimension_numbers = #tpu.dot_dimension_numbers<[1], [0], [0], [1], [0, 0, 1, 1], [], []>} : vector<64x128xbf16>, vector<128x128xbf16>, vector<64x128xf32> -> vector<64x128xf32>
    %67 = arith.addf %61, %66 : vector<64x128xf32>
    %c0_116 = arith.constant 0 : index
    %c1_117 = arith.constant 1 : index
    %c0_118 = arith.constant 0 : index
    %68 = tpu.strided_load %arg9[%c0_116, %c1_117, %c0_118] {strides = array<i32: 2, 2, 1>} : memref<18x18x128xf32, #tpu.memory_space<vmem>>, vector<8x8x128xf32>
    %69 = vector.shape_cast %68 : vector<8x8x128xf32> to vector<64x128xf32>
    %70 = arith.truncf %69 : vector<64x128xf32> to vector<64x128xbf16>
    %c128 = arith.constant 128 : index
    %c0_119 = arith.constant 0 : index
    %71 = vector.load %arg3[%c128, %c0_119] : memref<2048x128xbf16, #tpu.memory_space<vmem>>, vector<128x128xbf16>
    %cst_120 = arith.constant dense<0.000000e+00> : vector<64x128xf32>
    %72 = tpu.matmul %70, %71, %cst_120 {dimension_numbers = #tpu.dot_dimension_numbers<[1], [0], [0], [1], [0, 0, 1, 1], [], []>} : vector<64x128xbf16>, vector<128x128xbf16>, vector<64x128xf32> -> vector<64x128xf32>
    %73 = arith.addf %67, %72 : vector<64x128xf32>
    %c0_121 = arith.constant 0 : index
    %c2_122 = arith.constant 2 : index
    %c0_123 = arith.constant 0 : index
    %74 = tpu.strided_load %arg9[%c0_121, %c2_122, %c0_123] {strides = array<i32: 2, 2, 1>} : memref<18x18x128xf32, #tpu.memory_space<vmem>>, vector<8x8x128xf32>
    %75 = vector.shape_cast %74 : vector<8x8x128xf32> to vector<64x128xf32>
    %76 = arith.truncf %75 : vector<64x128xf32> to vector<64x128xbf16>
    %c256 = arith.constant 256 : index
    %c0_124 = arith.constant 0 : index
    %77 = vector.load %arg3[%c256, %c0_124] : memref<2048x128xbf16, #tpu.memory_space<vmem>>, vector<128x128xbf16>
    %cst_125 = arith.constant dense<0.000000e+00> : vector<64x128xf32>
    %78 = tpu.matmul %76, %77, %cst_125 {dimension_numbers = #tpu.dot_dimension_numbers<[1], [0], [0], [1], [0, 0, 1, 1], [], []>} : vector<64x128xbf16>, vector<128x128xbf16>, vector<64x128xf32> -> vector<64x128xf32>
    %79 = arith.addf %73, %78 : vector<64x128xf32>
    %c0_126 = arith.constant 0 : index
    %c3 = arith.constant 3 : index
    %c0_127 = arith.constant 0 : index
    %80 = tpu.strided_load %arg9[%c0_126, %c3, %c0_127] {strides = array<i32: 2, 2, 1>} : memref<18x18x128xf32, #tpu.memory_space<vmem>>, vector<8x8x128xf32>
    %81 = vector.shape_cast %80 : vector<8x8x128xf32> to vector<64x128xf32>
    %82 = arith.truncf %81 : vector<64x128xf32> to vector<64x128xbf16>
    %c384 = arith.constant 384 : index
    %c0_128 = arith.constant 0 : index
    %83 = vector.load %arg3[%c384, %c0_128] : memref<2048x128xbf16, #tpu.memory_space<vmem>>, vector<128x128xbf16>
    %cst_129 = arith.constant dense<0.000000e+00> : vector<64x128xf32>
    %84 = tpu.matmul %82, %83, %cst_129 {dimension_numbers = #tpu.dot_dimension_numbers<[1], [0], [0], [1], [0, 0, 1, 1], [], []>} : vector<64x128xbf16>, vector<128x128xbf16>, vector<64x128xf32> -> vector<64x128xf32>
    %85 = arith.addf %79, %84 : vector<64x128xf32>
    %c1_130 = arith.constant 1 : index
    %c0_131 = arith.constant 0 : index
    %c0_132 = arith.constant 0 : index
    %86 = tpu.strided_load %arg9[%c1_130, %c0_131, %c0_132] {strides = array<i32: 2, 2, 1>} : memref<18x18x128xf32, #tpu.memory_space<vmem>>, vector<8x8x128xf32>
    %87 = vector.shape_cast %86 : vector<8x8x128xf32> to vector<64x128xf32>
    %88 = arith.truncf %87 : vector<64x128xf32> to vector<64x128xbf16>
    %c512 = arith.constant 512 : index
    %c0_133 = arith.constant 0 : index
    %89 = vector.load %arg3[%c512, %c0_133] : memref<2048x128xbf16, #tpu.memory_space<vmem>>, vector<128x128xbf16>
    %cst_134 = arith.constant dense<0.000000e+00> : vector<64x128xf32>
    %90 = tpu.matmul %88, %89, %cst_134 {dimension_numbers = #tpu.dot_dimension_numbers<[1], [0], [0], [1], [0, 0, 1, 1], [], []>} : vector<64x128xbf16>, vector<128x128xbf16>, vector<64x128xf32> -> vector<64x128xf32>
    %91 = arith.addf %85, %90 : vector<64x128xf32>
    %c1_135 = arith.constant 1 : index
    %c1_136 = arith.constant 1 : index
    %c0_137 = arith.constant 0 : index
    %92 = tpu.strided_load %arg9[%c1_135, %c1_136, %c0_137] {strides = array<i32: 2, 2, 1>} : memref<18x18x128xf32, #tpu.memory_space<vmem>>, vector<8x8x128xf32>
    %93 = vector.shape_cast %92 : vector<8x8x128xf32> to vector<64x128xf32>
    %94 = arith.truncf %93 : vector<64x128xf32> to vector<64x128xbf16>
    %c640 = arith.constant 640 : index
    %c0_138 = arith.constant 0 : index
    %95 = vector.load %arg3[%c640, %c0_138] : memref<2048x128xbf16, #tpu.memory_space<vmem>>, vector<128x128xbf16>
    %cst_139 = arith.constant dense<0.000000e+00> : vector<64x128xf32>
    %96 = tpu.matmul %94, %95, %cst_139 {dimension_numbers = #tpu.dot_dimension_numbers<[1], [0], [0], [1], [0, 0, 1, 1], [], []>} : vector<64x128xbf16>, vector<128x128xbf16>, vector<64x128xf32> -> vector<64x128xf32>
    %97 = arith.addf %91, %96 : vector<64x128xf32>
    %c1_140 = arith.constant 1 : index
    %c2_141 = arith.constant 2 : index
    %c0_142 = arith.constant 0 : index
    %98 = tpu.strided_load %arg9[%c1_140, %c2_141, %c0_142] {strides = array<i32: 2, 2, 1>} : memref<18x18x128xf32, #tpu.memory_space<vmem>>, vector<8x8x128xf32>
    %99 = vector.shape_cast %98 : vector<8x8x128xf32> to vector<64x128xf32>
    %100 = arith.truncf %99 : vector<64x128xf32> to vector<64x128xbf16>
    %c768 = arith.constant 768 : index
    %c0_143 = arith.constant 0 : index
    %101 = vector.load %arg3[%c768, %c0_143] : memref<2048x128xbf16, #tpu.memory_space<vmem>>, vector<128x128xbf16>
    %cst_144 = arith.constant dense<0.000000e+00> : vector<64x128xf32>
    %102 = tpu.matmul %100, %101, %cst_144 {dimension_numbers = #tpu.dot_dimension_numbers<[1], [0], [0], [1], [0, 0, 1, 1], [], []>} : vector<64x128xbf16>, vector<128x128xbf16>, vector<64x128xf32> -> vector<64x128xf32>
    %103 = arith.addf %97, %102 : vector<64x128xf32>
    %c1_145 = arith.constant 1 : index
    %c3_146 = arith.constant 3 : index
    %c0_147 = arith.constant 0 : index
    %104 = tpu.strided_load %arg9[%c1_145, %c3_146, %c0_147] {strides = array<i32: 2, 2, 1>} : memref<18x18x128xf32, #tpu.memory_space<vmem>>, vector<8x8x128xf32>
    %105 = vector.shape_cast %104 : vector<8x8x128xf32> to vector<64x128xf32>
    %106 = arith.truncf %105 : vector<64x128xf32> to vector<64x128xbf16>
    %c896 = arith.constant 896 : index
    %c0_148 = arith.constant 0 : index
    %107 = vector.load %arg3[%c896, %c0_148] : memref<2048x128xbf16, #tpu.memory_space<vmem>>, vector<128x128xbf16>
    %cst_149 = arith.constant dense<0.000000e+00> : vector<64x128xf32>
    %108 = tpu.matmul %106, %107, %cst_149 {dimension_numbers = #tpu.dot_dimension_numbers<[1], [0], [0], [1], [0, 0, 1, 1], [], []>} : vector<64x128xbf16>, vector<128x128xbf16>, vector<64x128xf32> -> vector<64x128xf32>
    %109 = arith.addf %103, %108 : vector<64x128xf32>
    %c2_150 = arith.constant 2 : index
    %c0_151 = arith.constant 0 : index
    %c0_152 = arith.constant 0 : index
    %110 = tpu.strided_load %arg9[%c2_150, %c0_151, %c0_152] {strides = array<i32: 2, 2, 1>} : memref<18x18x128xf32, #tpu.memory_space<vmem>>, vector<8x8x128xf32>
    %111 = vector.shape_cast %110 : vector<8x8x128xf32> to vector<64x128xf32>
    %112 = arith.truncf %111 : vector<64x128xf32> to vector<64x128xbf16>
    %c1024 = arith.constant 1024 : index
    %c0_153 = arith.constant 0 : index
    %113 = vector.load %arg3[%c1024, %c0_153] : memref<2048x128xbf16, #tpu.memory_space<vmem>>, vector<128x128xbf16>
    %cst_154 = arith.constant dense<0.000000e+00> : vector<64x128xf32>
    %114 = tpu.matmul %112, %113, %cst_154 {dimension_numbers = #tpu.dot_dimension_numbers<[1], [0], [0], [1], [0, 0, 1, 1], [], []>} : vector<64x128xbf16>, vector<128x128xbf16>, vector<64x128xf32> -> vector<64x128xf32>
    %115 = arith.addf %109, %114 : vector<64x128xf32>
    %c2_155 = arith.constant 2 : index
    %c1_156 = arith.constant 1 : index
    %c0_157 = arith.constant 0 : index
    %116 = tpu.strided_load %arg9[%c2_155, %c1_156, %c0_157] {strides = array<i32: 2, 2, 1>} : memref<18x18x128xf32, #tpu.memory_space<vmem>>, vector<8x8x128xf32>
    %117 = vector.shape_cast %116 : vector<8x8x128xf32> to vector<64x128xf32>
    %118 = arith.truncf %117 : vector<64x128xf32> to vector<64x128xbf16>
    %c1152 = arith.constant 1152 : index
    %c0_158 = arith.constant 0 : index
    %119 = vector.load %arg3[%c1152, %c0_158] : memref<2048x128xbf16, #tpu.memory_space<vmem>>, vector<128x128xbf16>
    %cst_159 = arith.constant dense<0.000000e+00> : vector<64x128xf32>
    %120 = tpu.matmul %118, %119, %cst_159 {dimension_numbers = #tpu.dot_dimension_numbers<[1], [0], [0], [1], [0, 0, 1, 1], [], []>} : vector<64x128xbf16>, vector<128x128xbf16>, vector<64x128xf32> -> vector<64x128xf32>
    %121 = arith.addf %115, %120 : vector<64x128xf32>
    %c2_160 = arith.constant 2 : index
    %c2_161 = arith.constant 2 : index
    %c0_162 = arith.constant 0 : index
    %122 = tpu.strided_load %arg9[%c2_160, %c2_161, %c0_162] {strides = array<i32: 2, 2, 1>} : memref<18x18x128xf32, #tpu.memory_space<vmem>>, vector<8x8x128xf32>
    %123 = vector.shape_cast %122 : vector<8x8x128xf32> to vector<64x128xf32>
    %124 = arith.truncf %123 : vector<64x128xf32> to vector<64x128xbf16>
    %c1280 = arith.constant 1280 : index
    %c0_163 = arith.constant 0 : index
    %125 = vector.load %arg3[%c1280, %c0_163] : memref<2048x128xbf16, #tpu.memory_space<vmem>>, vector<128x128xbf16>
    %cst_164 = arith.constant dense<0.000000e+00> : vector<64x128xf32>
    %126 = tpu.matmul %124, %125, %cst_164 {dimension_numbers = #tpu.dot_dimension_numbers<[1], [0], [0], [1], [0, 0, 1, 1], [], []>} : vector<64x128xbf16>, vector<128x128xbf16>, vector<64x128xf32> -> vector<64x128xf32>
    %127 = arith.addf %121, %126 : vector<64x128xf32>
    %c2_165 = arith.constant 2 : index
    %c3_166 = arith.constant 3 : index
    %c0_167 = arith.constant 0 : index
    %128 = tpu.strided_load %arg9[%c2_165, %c3_166, %c0_167] {strides = array<i32: 2, 2, 1>} : memref<18x18x128xf32, #tpu.memory_space<vmem>>, vector<8x8x128xf32>
    %129 = vector.shape_cast %128 : vector<8x8x128xf32> to vector<64x128xf32>
    %130 = arith.truncf %129 : vector<64x128xf32> to vector<64x128xbf16>
    %c1408 = arith.constant 1408 : index
    %c0_168 = arith.constant 0 : index
    %131 = vector.load %arg3[%c1408, %c0_168] : memref<2048x128xbf16, #tpu.memory_space<vmem>>, vector<128x128xbf16>
    %cst_169 = arith.constant dense<0.000000e+00> : vector<64x128xf32>
    %132 = tpu.matmul %130, %131, %cst_169 {dimension_numbers = #tpu.dot_dimension_numbers<[1], [0], [0], [1], [0, 0, 1, 1], [], []>} : vector<64x128xbf16>, vector<128x128xbf16>, vector<64x128xf32> -> vector<64x128xf32>
    %133 = arith.addf %127, %132 : vector<64x128xf32>
    %c3_170 = arith.constant 3 : index
    %c0_171 = arith.constant 0 : index
    %c0_172 = arith.constant 0 : index
    %134 = tpu.strided_load %arg9[%c3_170, %c0_171, %c0_172] {strides = array<i32: 2, 2, 1>} : memref<18x18x128xf32, #tpu.memory_space<vmem>>, vector<8x8x128xf32>
    %135 = vector.shape_cast %134 : vector<8x8x128xf32> to vector<64x128xf32>
    %136 = arith.truncf %135 : vector<64x128xf32> to vector<64x128xbf16>
    %c1536 = arith.constant 1536 : index
    %c0_173 = arith.constant 0 : index
    %137 = vector.load %arg3[%c1536, %c0_173] : memref<2048x128xbf16, #tpu.memory_space<vmem>>, vector<128x128xbf16>
    %cst_174 = arith.constant dense<0.000000e+00> : vector<64x128xf32>
    %138 = tpu.matmul %136, %137, %cst_174 {dimension_numbers = #tpu.dot_dimension_numbers<[1], [0], [0], [1], [0, 0, 1, 1], [], []>} : vector<64x128xbf16>, vector<128x128xbf16>, vector<64x128xf32> -> vector<64x128xf32>
    %139 = arith.addf %133, %138 : vector<64x128xf32>
    %c3_175 = arith.constant 3 : index
    %c1_176 = arith.constant 1 : index
    %c0_177 = arith.constant 0 : index
    %140 = tpu.strided_load %arg9[%c3_175, %c1_176, %c0_177] {strides = array<i32: 2, 2, 1>} : memref<18x18x128xf32, #tpu.memory_space<vmem>>, vector<8x8x128xf32>
    %141 = vector.shape_cast %140 : vector<8x8x128xf32> to vector<64x128xf32>
    %142 = arith.truncf %141 : vector<64x128xf32> to vector<64x128xbf16>
    %c1664 = arith.constant 1664 : index
    %c0_178 = arith.constant 0 : index
    %143 = vector.load %arg3[%c1664, %c0_178] : memref<2048x128xbf16, #tpu.memory_space<vmem>>, vector<128x128xbf16>
    %cst_179 = arith.constant dense<0.000000e+00> : vector<64x128xf32>
    %144 = tpu.matmul %142, %143, %cst_179 {dimension_numbers = #tpu.dot_dimension_numbers<[1], [0], [0], [1], [0, 0, 1, 1], [], []>} : vector<64x128xbf16>, vector<128x128xbf16>, vector<64x128xf32> -> vector<64x128xf32>
    %145 = arith.addf %139, %144 : vector<64x128xf32>
    %c3_180 = arith.constant 3 : index
    %c2_181 = arith.constant 2 : index
    %c0_182 = arith.constant 0 : index
    %146 = tpu.strided_load %arg9[%c3_180, %c2_181, %c0_182] {strides = array<i32: 2, 2, 1>} : memref<18x18x128xf32, #tpu.memory_space<vmem>>, vector<8x8x128xf32>
    %147 = vector.shape_cast %146 : vector<8x8x128xf32> to vector<64x128xf32>
    %148 = arith.truncf %147 : vector<64x128xf32> to vector<64x128xbf16>
    %c1792 = arith.constant 1792 : index
    %c0_183 = arith.constant 0 : index
    %149 = vector.load %arg3[%c1792, %c0_183] : memref<2048x128xbf16, #tpu.memory_space<vmem>>, vector<128x128xbf16>
    %cst_184 = arith.constant dense<0.000000e+00> : vector<64x128xf32>
    %150 = tpu.matmul %148, %149, %cst_184 {dimension_numbers = #tpu.dot_dimension_numbers<[1], [0], [0], [1], [0, 0, 1, 1], [], []>} : vector<64x128xbf16>, vector<128x128xbf16>, vector<64x128xf32> -> vector<64x128xf32>
    %151 = arith.addf %145, %150 : vector<64x128xf32>
    %c3_185 = arith.constant 3 : index
    %c3_186 = arith.constant 3 : index
    %c0_187 = arith.constant 0 : index
    %152 = tpu.strided_load %arg9[%c3_185, %c3_186, %c0_187] {strides = array<i32: 2, 2, 1>} : memref<18x18x128xf32, #tpu.memory_space<vmem>>, vector<8x8x128xf32>
    %153 = vector.shape_cast %152 : vector<8x8x128xf32> to vector<64x128xf32>
    %154 = arith.truncf %153 : vector<64x128xf32> to vector<64x128xbf16>
    %c1920 = arith.constant 1920 : index
    %c0_188 = arith.constant 0 : index
    %155 = vector.load %arg3[%c1920, %c0_188] : memref<2048x128xbf16, #tpu.memory_space<vmem>>, vector<128x128xbf16>
    %cst_189 = arith.constant dense<0.000000e+00> : vector<64x128xf32>
    %156 = tpu.matmul %154, %155, %cst_189 {dimension_numbers = #tpu.dot_dimension_numbers<[1], [0], [0], [1], [0, 0, 1, 1], [], []>} : vector<64x128xbf16>, vector<128x128xbf16>, vector<64x128xf32> -> vector<64x128xf32>
    %157 = arith.addf %151, %156 : vector<64x128xf32>
    %c0_190 = arith.constant 0 : index
    %c0_191 = arith.constant 0 : index
    %c0_192 = arith.constant 0 : index
    %c0_193 = arith.constant 0 : index
    %158 = tpu.strided_load %arg1[%c0_190, %c0_191, %c0_192, %c0_193] {strides = array<i32: 1, 2, 2, 1>} : memref<1x16x16x4xf32, #tpu.memory_space<vmem>>, vector<1x8x8x4xf32>
    %159 = vector.shape_cast %158 : vector<1x8x8x4xf32> to vector<8x8x4xf32>
    %c0_194 = arith.constant 0 : index
    %c0_195 = arith.constant 0 : index
    %c1_196 = arith.constant 1 : index
    %c0_197 = arith.constant 0 : index
    %160 = tpu.strided_load %arg1[%c0_194, %c0_195, %c1_196, %c0_197] {strides = array<i32: 1, 2, 2, 1>} : memref<1x16x16x4xf32, #tpu.memory_space<vmem>>, vector<1x8x8x4xf32>
    %161 = vector.shape_cast %160 : vector<1x8x8x4xf32> to vector<8x8x4xf32>
    %162 = arith.addf %159, %161 : vector<8x8x4xf32>
    %c0_198 = arith.constant 0 : index
    %c1_199 = arith.constant 1 : index
    %c0_200 = arith.constant 0 : index
    %c0_201 = arith.constant 0 : index
    %163 = tpu.strided_load %arg1[%c0_198, %c1_199, %c0_200, %c0_201] {strides = array<i32: 1, 2, 2, 1>} : memref<1x16x16x4xf32, #tpu.memory_space<vmem>>, vector<1x8x8x4xf32>
    %164 = vector.shape_cast %163 : vector<1x8x8x4xf32> to vector<8x8x4xf32>
    %165 = arith.addf %162, %164 : vector<8x8x4xf32>
    %c0_202 = arith.constant 0 : index
    %c1_203 = arith.constant 1 : index
    %c1_204 = arith.constant 1 : index
    %c0_205 = arith.constant 0 : index
    %166 = tpu.strided_load %arg1[%c0_202, %c1_203, %c1_204, %c0_205] {strides = array<i32: 1, 2, 2, 1>} : memref<1x16x16x4xf32, #tpu.memory_space<vmem>>, vector<1x8x8x4xf32>
    %167 = vector.shape_cast %166 : vector<1x8x8x4xf32> to vector<8x8x4xf32>
    %168 = arith.addf %165, %167 : vector<8x8x4xf32>
    %cst_206 = arith.constant 2.500000e-01 : f32
    %169 = vector.broadcast %cst_206 : f32 to vector<8x8x4xf32>
    %170 = arith.mulf %168, %169 : vector<8x8x4xf32>
    %171 = vector.shape_cast %170 : vector<8x8x4xf32> to vector<64x4xf32>
    %172 = arith.truncf %171 : vector<64x4xf32> to vector<64x4xbf16>
    %c0_207 = arith.constant 0 : index
    %c0_208 = arith.constant 0 : index
    %173 = vector.load %arg4[%c0_207, %c0_208] : memref<4x128xbf16, #tpu.memory_space<vmem>>, vector<4x128xbf16>
    %cst_209 = arith.constant dense<0.000000e+00> : vector<64x128xf32>
    %174 = tpu.matmul %172, %173, %cst_209 {dimension_numbers = #tpu.dot_dimension_numbers<[1], [0], [0], [1], [0, 0, 1, 1], [], []>} : vector<64x4xbf16>, vector<4x128xbf16>, vector<64x128xf32> -> vector<64x128xf32>
    %c2_210 = arith.constant 2 : index
    %c0_211 = arith.constant 0 : index
    %175 = vector.load %arg5[%c2_210, %c0_211] : memref<3x128xf32, #tpu.memory_space<vmem>>, vector<1x128xf32>
    %176 = vector.broadcast %175 : vector<1x128xf32> to vector<64x128xf32>
    %177 = arith.addf %174, %176 : vector<64x128xf32>
    %178 = arith.addf %157, %177 : vector<64x128xf32>
    %c0_212 = arith.constant 0 : index
    %c0_213 = arith.constant 0 : index
    %c0_214 = arith.constant 0 : index
    %179 = vector.load %arg6[%c0_212, %c0_213, %c0_214] : memref<1x64x128xf32, #tpu.memory_space<vmem>>, vector<1x64x128xf32>
    %180 = vector.shape_cast %179 : vector<1x64x128xf32> to vector<64x128xf32>
    %181 = vector.shape_cast %178 : vector<64x128xf32> to vector<1x64x128xf32>
    tpu.vector_store %arg6[%c0_212, %c0_213, %c0_214], %181 {strides = array<i32>} : memref<1x64x128xf32, #tpu.memory_space<vmem>>, vector<1x64x128xf32>,
    return
  }
  func.func @transform_0(%arg0: i32) -> (i32, i32, i32, i32) {
    %c0_i32 = arith.constant 0 : i32
    %c0_i32_0 = arith.constant 0 : i32
    %c0_i32_1 = arith.constant 0 : i32
    %c0_i32_2 = arith.constant 0 : i32
    return %arg0, %c0_i32, %c0_i32_0, %c0_i32_1 : i32, i32, i32, i32
  }
  func.func @transform_1(%arg0: i32) -> (i32, i32) {
    %c0_i32 = arith.constant 0 : i32
    %c0_i32_0 = arith.constant 0 : i32
    %c0_i32_1 = arith.constant 0 : i32
    return %c0_i32, %c0_i32_0 : i32, i32
  }
  func.func @transform_2(%arg0: i32) -> (i32, i32) {
    %c0_i32 = arith.constant 0 : i32
    %c0_i32_0 = arith.constant 0 : i32
    %c0_i32_1 = arith.constant 0 : i32
    return %c0_i32, %c0_i32_0 : i32, i32
  }
  func.func @transform_3(%arg0: i32) -> (i32, i32) {
    %c0_i32 = arith.constant 0 : i32
    %c0_i32_0 = arith.constant 0 : i32
    %c0_i32_1 = arith.constant 0 : i32
    return %c0_i32, %c0_i32_0 : i32, i32
  }
  func.func @transform_4(%arg0: i32) -> (i32, i32) {
    %c0_i32 = arith.constant 0 : i32
    %c0_i32_0 = arith.constant 0 : i32
    %c0_i32_1 = arith.constant 0 : i32
    return %c0_i32, %c0_i32_0 : i32, i32
  }
  func.func @transform_5(%arg0: i32) -> (i32, i32, i32) {
    %c0_i32 = arith.constant 0 : i32
    %c0_i32_0 = arith.constant 0 : i32
    %c0_i32_1 = arith.constant 0 : i32
    return %arg0, %c0_i32, %c0_i32_0 : i32, i32, i32
  }
}

</mosaic_0001>

<llo_original>
// kernel: residual_block_down.1
$region0: #{residual_block_down.1}
  #allocation0 [shape = 'u32[]', space=smem, size = 0x4, offset = 0x4, fixed_abs, tag = 'smem constant byte address 0x4 - core index']
  #allocation1 [shape = 'u32[144,128]{1,0:T(1,128)}', space=vmem, size = 0x12000, scoped, tag = 'internal scratch']
  #allocation2 [shape = 'f32[18,18,4]{2,1,0:T(8,128)}', space=vmem, size = 0x36000, scoped, tag = 'scratch operand']
  #allocation3 [shape = 'bf16[16,16,36]{2,1,0:T(16,128)(2,1)}', space=vmem, size = 0x10000, scoped, tag = 'scratch operand']
  #allocation4 [shape = 'f32[18,18,128]{2,1,0:T(8,128)}', space=vmem, size = 0x36000, scoped, tag = 'scratch operand']
  %s0 = inlined_call_operand.hbm [shape: f32[2,16,16,4], index: 0, kind: input, shape index: {}]
  %s1 = inlined_call_operand.hbm [shape: bf16[36,128], index: 1, kind: input, shape index: {}]
  %s2 = inlined_call_operand.hbm [shape: bf16[2048,128], index: 2, kind: input, shape index: {}]
  %s3 = inlined_call_operand.hbm [shape: bf16[4,128], index: 3, kind: input, shape index: {}]
  %s4 = inlined_call_operand.hbm [shape: f32[3,128], index: 4, kind: input, shape index: {}]
  %s5 = inlined_call_operand.hbm [shape: f32[2,64,128], index: 5, kind: output, shape index: {}]
  %s6 = sld [smem:[#allocation0]]
  $region73: #{residual_block_down.1} parent=0
    _
  %s8 = ssub.s32 1, %s6
  %s9 = scalar_select 0, %s8, %s6
  $region1: #{residual_block_down.1} parent=0
    #allocation5 [shape = 'u8[262144]{0}', space=vmem, size = 0x40000, scoped, tag = 'input window, operand 0']
    #allocation6 [shape = 's32[2]{0}', space=sflag, size = 0x8, scoped, tag = 'scoped memory for residual_block_down.1']
    #allocation7 [shape = 's32[2]{0}', space=sflag, size = 0x8, scoped, tag = 'scoped memory for residual_block_down.1']
    #allocation8 [shape = 'u8[10240]{0}', space=vmem, size = 0x2800, scoped, tag = 'input window, operand 1, single buffered']
    #allocation9 [shape = 's32[1]{0}', space=sflag, size = 0x4, scoped, tag = 'scoped memory for residual_block_down.1']
    #allocation10 [shape = 'u8[524288]{0}', space=vmem, size = 0x80000, scoped, tag = 'input window, operand 2, single buffered']
    #allocation11 [shape = 'u8[1024]{0}', space=vmem, size = 0x400, scoped, tag = 'input window, operand 3, single buffered']
    #allocation12 [shape = 's32[1]{0}', space=sflag, size = 0x4, scoped, tag = 'scoped memory for residual_block_down.1']
    #allocation13 [shape = 'u8[2048]{0}', space=vmem, size = 0x800, scoped, tag = 'input window, operand 4, single buffered']
    #allocation14 [shape = 'u8[65536]{0}', space=vmem, size = 0x10000, scoped, tag = 'output window, operand 0']
    %10 = vsyncpa [#allocation6], 0
    %s11 = scalar_lea.sflag [#allocation6], 1
    %12 = vsyncpa %s11, 0
    %13 = vsyncpa [#allocation9], 0
    %14 = vsyncpa [#allocation12], 0
    %15 = vsyncpa [#allocation7], 0
    %s16 = scalar_lea.sflag [#allocation7], 1
    %17 = vsyncpa %s16, 0
    loop: start=0, step=1, limit=4
    $region2: #{residual_block_down.1} parent=1 // loop_pre_header
      _
    $region3: #{residual_block_down.1} parent=1 // loop_header
      %s19 = sphi 0, %s23
      %p20 = scmp.ge.s32.totalorder %s19, 4
      %s29 = sphi 0, %s31
      %s32 = sphi 0, %s29
      %s33 = sphi 0, %s32
      %s49 = sphi 0, %s33
      %s53 = sphi 0, %s53
      %s55 = sphi 0, %s53
      %s56 = sphi 0, %s55
      %s70 = sphi 0, %s56
      %s74 = sphi 0, %s74
      %s76 = sphi 0, %s74
      %s77 = sphi 0, %s76
      %s91 = sphi 0, %s77
      %s95 = sphi 0, %s95
      %s97 = sphi 0, %s95
      %s98 = sphi 0, %s97
      %s112 = sphi 0, %s98
      %s116 = sphi 0, %s116
      %s118 = sphi 0, %s116
      %s119 = sphi 0, %s118
      %s133 = sphi 0, %s119
      %s139 = sphi 0, %s141
      %s142 = sphi 0, %s139
      %s143 = sphi 0, %s142
      %s159 = sphi 0, %s143
    $region4: #{residual_block_down.1} parent=1 // loop_header_branch
      %22 = sbr.rel (%p20) target = $region8
    $region5: #{residual_block_down.1} parent=1 // loop_body
      %s24 = ssub.s32 %s19, 1
      %s25 = ssub.s32 %s19, 2
      %s26 = sadd.s32 %s19, 1
      %s27 = ssub.s32 %s19, %s26
      %p28 = scmp.eq.s32.totalorder %s27, 0
      %s30 = sadd.s32 %s29, 1
      %s31 = scalar_select %p28, %s29, %s30
      %p34 = pneg %p28
      %p35 = scmp.eq.s32.totalorder %s19, 1
      %p36 = por %p34, %p35
      %p37 = scmp.ne.s32.totalorder %s29, %s32
      %p38 = scmp.eq.s32.totalorder %s19, 0
      %p39 = por %p37, %p38
      %p40 = scmp.ne.s32.totalorder %s29, %s32
      %p41 = scmp.eq.s32.totalorder %s24, 1
      %p42 = por %p40, %p41
      %p43 = scmp.ne.s32.totalorder %s32, %s33
      %p44 = scmp.eq.s32.totalorder %s24, 0
      %p45 = por %p43, %p44
      %p46 = scmp.ne.s32.totalorder %s32, %s33
      %p47 = scmp.eq.s32.totalorder %s25, 1
      %p48 = por %p46, %p47
      %p50 = scmp.ne.s32.totalorder %s33, %s49
      %p51 = scmp.eq.s32.totalorder %s25, 0
      %p52 = por %p50, %p51
      %s54 = sadd.s32 %s53, 1
      %p57 = scmp.eq.s32.totalorder %s19, 1
      %p58 = scmp.ne.s32.totalorder %s53, %s55
      %p59 = scmp.eq.s32.totalorder %s19, 0
      %p60 = por %p58, %p59
      %p61 = scmp.ne.s32.totalorder %s53, %s55
      %p62 = scmp.eq.s32.totalorder %s24, 1
      %p63 = por %p61, %p62
      %p64 = scmp.ne.s32.totalorder %s55, %s56
      %p65 = scmp.eq.s32.totalorder %s24, 0
      %p66 = por %p64, %p65
      %p67 = scmp.ne.s32.totalorder %s55, %s56
      %p68 = scmp.eq.s32.totalorder %s25, 1
      %p69 = por %p67, %p68
      %p71 = scmp.ne.s32.totalorder %s56, %s70
      %p72 = scmp.eq.s32.totalorder %s25, 0
      %p73 = por %p71, %p72
      %s75 = sadd.s32 %s74, 1
      %p78 = scmp.eq.s32.totalorder %s19, 1
      %p79 = scmp.ne.s32.totalorder %s74, %s76
      %p80 = scmp.eq.s32.totalorder %s19, 0
      %p81 = por %p79, %p80
      %p82 = scmp.ne.s32.totalorder %s74, %s76
      %p83 = scmp.eq.s32.totalorder %s24, 1
      %p84 = por %p82, %p83
      %p85 = scmp.ne.s32.totalorder %s76, %s77
      %p86 = scmp.eq.s32.totalorder %s24, 0
      %p87 = por %p85, %p86
      %p88 = scmp.ne.s32.totalorder %s76, %s77
      %p89 = scmp.eq.s32.totalorder %s25, 1
      %p90 = por %p88, %p89
      %p92 = scmp.ne.s32.totalorder %s77, %s91
      %p93 = scmp.eq.s32.totalorder %s25, 0
      %p94 = por %p92, %p93
      %s96 = sadd.s32 %s95, 1
      %p99 = scmp.eq.s32.totalorder %s19, 1
      %p100 = scmp.ne.s32.totalorder %s95, %s97
      %p101 = scmp.eq.s32.totalorder %s19, 0
      %p102 = por %p100, %p101
      %p103 = scmp.ne.s32.totalorder %s95, %s97
      %p104 = scmp.eq.s32.totalorder %s24, 1
      %p105 = por %p103, %p104
      %p106 = scmp.ne.s32.totalorder %s97, %s98
      %p107 = scmp.eq.s32.totalorder %s24, 0
      %p108 = por %p106, %p107
      %p109 = scmp.ne.s32.totalorder %s97, %s98
      %p110 = scmp.eq.s32.totalorder %s25, 1
      %p111 = por %p109, %p110
      %p113 = scmp.ne.s32.totalorder %s98, %s112
      %p114 = scmp.eq.s32.totalorder %s25, 0
      %p115 = por %p113, %p114
      %s117 = sadd.s32 %s116, 1
      %p120 = scmp.eq.s32.totalorder %s19, 1
      %p121 = scmp.ne.s32.totalorder %s116, %s118
      %p122 = scmp.eq.s32.totalorder %s19, 0
      %p123 = por %p121, %p122
      %p124 = scmp.ne.s32.totalorder %s116, %s118
      %p125 = scmp.eq.s32.totalorder %s24, 1
      %p126 = por %p124, %p125
      %p127 = scmp.ne.s32.totalorder %s118, %s119
      %p128 = scmp.eq.s32.totalorder %s24, 0
      %p129 = por %p127, %p128
      %p130 = scmp.ne.s32.totalorder %s118, %s119
      %p131 = scmp.eq.s32.totalorder %s25, 1
      %p132 = por %p130, %p131
      %p134 = scmp.ne.s32.totalorder %s119, %s133
      %p135 = scmp.eq.s32.totalorder %s25, 0
      %p136 = por %p134, %p135
      %s137 = ssub.s32 %s19, %s26
      %p138 = scmp.eq.s32.totalorder %s137, 0
      %s140 = sadd.s32 %s139, 1
      %s141 = scalar_select %p138, %s139, %s140
      %p144 = pneg %p138
      %p145 = scmp.eq.s32.totalorder %s19, 1
      %p146 = por %p144, %p145
      %p147 = scmp.ne.s32.totalorder %s139, %s142
      %p148 = scmp.eq.s32.totalorder %s19, 0
      %p149 = por %p147, %p148
      %p150 = scmp.ne.s32.totalorder %s139, %s142
      %p151 = scmp.eq.s32.totalorder %s24, 1
      %p152 = por %p150, %p151
      %p153 = scmp.ne.s32.totalorder %s142, %s143
      %p154 = scmp.eq.s32.totalorder %s24, 0
      %p155 = por %p153, %p154
      %p156 = scmp.ne.s32.totalorder %s142, %s143
      %p157 = scmp.eq.s32.totalorder %s25, 1
      %p158 = por %p156, %p157
      %p160 = scmp.ne.s32.totalorder %s143, %s159
      %p161 = scmp.eq.s32.totalorder %s25, 0
      %p162 = por %p160, %p161
      %p163 = scmp.le.s32.totalorder 1, %s19
      %p164 = scmp.lt.s32.totalorder %s19, 3
      %p165 = pnand %p163, %p164
      %p166 = pneg %p165
      // Predicated region
      $region9: #{residual_block_down.1} parent=5 // pred_check
        _
      $region10: #{residual_block_down.1} parent=5 // pred_check_branch
        %168 = sbr.rel (%p165) target = $region12
      $region11: #{residual_block_down.1} parent=5 // pred_region
        %s169 = ssub.s32 %s19, 1
        // Predicated region
        $region13: #{residual_block_down.1} parent=11 // pred_check
          %p170 = pneg %p66
        $region14: #{residual_block_down.1} parent=11 // pred_check_branch
          %172 = sbr.rel (%p170) target = $region16
        $region15: #{residual_block_down.1} parent=11 // pred_region
          %s174 = ssub.s32 320, 320
          %175 = vsyncadd [#allocation9], %s174
          %s176 = sshll.u32 [#allocation8], 4
          %s177 = int_to_ptr.vmem [resolvable:$true] %s176
          %182 = dma.hbm_to_vmem [thread:$0]  %s1, 320, %s177, [#allocation9], 64, 64, 4
        $region16: #{residual_block_down.1} parent=11 // pred_fallthru
          _
        // Predicated region
        $region17: #{residual_block_down.1} parent=11 // pred_check
          %p183 = pneg %p87
        $region18: #{residual_block_down.1} parent=11 // pred_check_branch
          %185 = sbr.rel (%p183) target = $region20
        $region19: #{residual_block_down.1} parent=11 // pred_region
          %s187 = ssub.s32 16384, 16384
          %188 = vsyncadd [#allocation9], %s187
          %s189 = sshll.u32 [#allocation10], 4
          %s190 = int_to_ptr.vmem [resolvable:$true] %s189
          %195 = dma.hbm_to_vmem [thread:$0]  %s2, 16384, %s190, [#allocation9], 64, 64, 4
        $region20: #{residual_block_down.1} parent=11 // pred_fallthru
          _
        // Predicated region
        $region21: #{residual_block_down.1} parent=11 // pred_check
          %p196 = pneg %p108
        $region22: #{residual_block_down.1} parent=11 // pred_check_branch
          %198 = sbr.rel (%p196) target = $region24
        $region23: #{residual_block_down.1} parent=11 // pred_region
          %s200 = ssub.s32 32, 32
          %201 = vsyncadd [#allocation12], %s200
          %s203 = sshll.u32 [#allocation11], 4
          %s204 = int_to_ptr.vmem [resolvable:$true] %s203
          %206 = dma.hbm_to_vmem [thread:$0]  %s3, 32, %s204, [#allocation12]
        $region24: #{residual_block_down.1} parent=11 // pred_fallthru
          _
        // Predicated region
        $region25: #{residual_block_down.1} parent=11 // pred_check
          %p207 = pneg %p129
        $region26: #{residual_block_down.1} parent=11 // pred_check_branch
          %209 = sbr.rel (%p207) target = $region28
        $region27: #{residual_block_down.1} parent=11 // pred_region
          %s211 = ssub.s32 64, 64
          %212 = vsyncadd [#allocation12], %s211
          %s214 = sshll.u32 [#allocation13], 4
          %s215 = int_to_ptr.vmem [resolvable:$true] %s214
          %217 = dma.hbm_to_vmem [thread:$0]  %s4, 64, %s215, [#allocation12]
        $region28: #{residual_block_down.1} parent=11 // pred_fallthru
          _
      $region12: #{residual_block_down.1} parent=5 // pred_fallthru
        _
      %p218 = scmp.lt.s32.totalorder %s19, 2
      // Predicated region
      $region29: #{residual_block_down.1} parent=5 // pred_check
        %p219 = pneg %p218
      $region30: #{residual_block_down.1} parent=5 // pred_check_branch
        %221 = sbr.rel (%p219) target = $region32
      $region31: #{residual_block_down.1} parent=5 // pred_region
        // Predicated region
        $region33: #{residual_block_down.1} parent=31 // pred_check
          %p222 = pneg %p39
        $region34: #{residual_block_down.1} parent=31 // pred_check_branch
          %224 = sbr.rel (%p222) target = $region36
        $region35: #{residual_block_down.1} parent=31 // pred_region
          %s225 = sand.u32 %s29, 1
          %s226 = scalar_lea.sflag [#allocation6], %s225
          %s227 = sand.u32 %s29, 1
          %s228 = smul.addr %s227, 256
          %s229 = scalar_lea.vmem [#allocation5], %s228
          %s231 = ssub.s32 4096, 4096
          %232 = vsyncadd %s226, %s231
          %s233 = smul.addr %s19, 32
          %s234 = smul.addr %s233, 128
          %s235 = scalar_lea.hbm %s0, %s234
          %s236 = sshll.u32 %s229, 4
          %s237 = int_to_ptr.vmem [resolvable:$true] %s236
          %242 = dma.hbm_to_vmem [thread:$0]  %s235, 4096, %s237, %s226, 128, 128, 8
        $region36: #{residual_block_down.1} parent=31 // pred_fallthru
          _
      $region32: #{residual_block_down.1} parent=5 // pred_fallthru
        _
      %p243 = scmp.le.s32.totalorder 1, %s19
      %p244 = scmp.lt.s32.totalorder %s19, 3
      %p245 = pnand %p243, %p244
      %p246 = pneg %p245
      // Predicated region
      $region37: #{residual_block_down.1} parent=5 // pred_check
        _
      $region38: #{residual_block_down.1} parent=5 // pred_check_branch
        %248 = sbr.rel (%p245) target = $region40
      $region39: #{residual_block_down.1} parent=5 // pred_region
        %s249 = ssub.s32 %s19, 1
        %s250 = sand.u32 %s32, 1
        %s251 = scalar_lea.sflag [#allocation6], %s250
        %s252 = sand.u32 %s32, 1
        %s253 = smul.addr %s252, 256
        %s254 = scalar_lea.vmem [#allocation5], %s253
        // Predicated region
        $region41: #{residual_block_down.1} parent=39 // pred_check
          %p255 = pneg %p45
        $region42: #{residual_block_down.1} parent=39 // pred_check_branch
          %257 = sbr.rel (%p255) target = $region44
        $region43: #{residual_block_down.1} parent=39 // pred_region
          %258 = dma.done %s251, 4096
        $region44: #{residual_block_down.1} parent=39 // pred_fallthru
          _
        // Predicated region
        $region45: #{residual_block_down.1} parent=39 // pred_check
          %p259 = pneg %p66
        $region46: #{residual_block_down.1} parent=39 // pred_check_branch
          %261 = sbr.rel (%p259) target = $region48
        $region47: #{residual_block_down.1} parent=39 // pred_region
          %262 = dma.done [#allocation9], 320
        $region48: #{residual_block_down.1} parent=39 // pred_fallthru
          _
        // Predicated region
        $region49: #{residual_block_down.1} parent=39 // pred_check
          %p263 = pneg %p87
        $region50: #{residual_block_down.1} parent=39 // pred_check_branch
          %265 = sbr.rel (%p263) target = $region52
        $region51: #{residual_block_down.1} parent=39 // pred_region
          %266 = dma.done [#allocation9], 16384
        $region52: #{residual_block_down.1} parent=39 // pred_fallthru
          _
        // Predicated region
        $region53: #{residual_block_down.1} parent=39 // pred_check
          %p267 = pneg %p108
        $region54: #{residual_block_down.1} parent=39 // pred_check_branch
          %269 = sbr.rel (%p267) target = $region56
        $region55: #{residual_block_down.1} parent=39 // pred_region
          %270 = dma.done [#allocation12], 32
        $region56: #{residual_block_down.1} parent=39 // pred_fallthru
          _
        // Predicated region
        $region57: #{residual_block_down.1} parent=39 // pred_check
          %p271 = pneg %p129
        $region58: #{residual_block_down.1} parent=39 // pred_check_branch
          %273 = sbr.rel (%p271) target = $region60
        $region59: #{residual_block_down.1} parent=39 // pred_region
          %274 = dma.done [#allocation12], 64
        $region60: #{residual_block_down.1} parent=39 // pred_fallthru
          _
        %s275 = sand.u32 %s32, 1
        %s276 = scalar_lea.sflag [#allocation6], %s275
        %s277 = sand.u32 %s32, 1
        %s278 = smul.addr %s277, 256
        %s279 = scalar_lea.vmem [#allocation5], %s278
        %p280 = pneg %p45
        %p281 = pneg %p42
        %p282 = pneg %p66
        %p283 = pneg %p63
        %p284 = pneg %p87
        %p285 = pneg %p84
        %p286 = pneg %p108
        %p287 = pneg %p105
        %p288 = pneg %p129
        %p289 = pneg %p126
        %p290 = pneg %p155
        %p291 = pneg %p152
        %s292 = sand.u32 %s142, 1
        %s293 = scalar_lea.sflag [#allocation7], %s292
        %s294 = sand.u32 %s142, 1
        %s295 = smul.addr %s294, 64
        %s296 = scalar_lea.vmem [#allocation14], %s295
        %v298 = vld [vmem:[%s254] sm:$0xff]
        %v299 = vld [vmem:[%s254 + $0x8] sm:$0xff]
        %v300 = vld [vmem:[%s254 + $0x10] sm:$0xff]
        %v301 = vld [vmem:[%s254 + $0x18] sm:$0xff]
        %v302 = vld [vmem:[%s254 + $0x20] sm:$0xff]
        %v303 = vld [vmem:[%s254 + $0x28] sm:$0xff]
        %v304 = vld [vmem:[%s254 + $0x30] sm:$0xff]
        %v305 = vld [vmem:[%s254 + $0x38] sm:$0xff]
        %v306 = vld [vmem:[%s254 + $0x40] sm:$0xff]
        %v307 = vld [vmem:[%s254 + $0x48] sm:$0xff]
        %v308 = vld [vmem:[%s254 + $0x50] sm:$0xff]
        %v309 = vld [vmem:[%s254 + $0x58] sm:$0xff]
        %v310 = vld [vmem:[%s254 + $0x60] sm:$0xff]
        %v311 = vld [vmem:[%s254 + $0x68] sm:$0xff]
        %v312 = vld [vmem:[%s254 + $0x70] sm:$0xff]
        %v313 = vld [vmem:[%s254 + $0x78] sm:$0xff]
        %v314 = vld [vmem:[%s254 + $0x80] sm:$0xff]
        %v315 = vld [vmem:[%s254 + $0x88] sm:$0xff]
        %v316 = vld [vmem:[%s254 + $0x90] sm:$0xff]
        %v317 = vld [vmem:[%s254 + $0x98] sm:$0xff]
        %v318 = vld [vmem:[%s254 + $0xa0] sm:$0xff]
        %v319 = vld [vmem:[%s254 + $0xa8] sm:$0xff]
        %v320 = vld [vmem:[%s254 + $0xb0] sm:$0xff]
        %v321 = vld [vmem:[%s254 + $0xb8] sm:$0xff]
        %v322 = vld [vmem:[%s254 + $0xc0] sm:$0xff]
        %v323 = vld [vmem:[%s254 + $0xc8] sm:$0xff]
        %v324 = vld [vmem:[%s254 + $0xd0] sm:$0xff]
        %v325 = vld [vmem:[%s254 + $0xd8] sm:$0xff]
        %v326 = vld [vmem:[%s254 + $0xe0] sm:$0xff]
        %v327 = vld [vmem:[%s254 + $0xe8] sm:$0xff]
        %v328 = vld [vmem:[%s254 + $0xf0] sm:$0xff]
        %v329 = vld [vmem:[%s254 + $0xf8] sm:$0xff]
        %v330 = vmax.f32 %v298, 0.0
        %v331 = vmax.f32 %v299, 0.0
        %v332 = vmax.f32 %v300, 0.0
        %v333 = vmax.f32 %v301, 0.0
        %v334 = vmax.f32 %v302, 0.0
        %v335 = vmax.f32 %v303, 0.0
        %v336 = vmax.f32 %v304, 0.0
        %v337 = vmax.f32 %v305, 0.0
        %v338 = vmax.f32 %v306, 0.0
        %v339 = vmax.f32 %v307, 0.0
        %v340 = vmax.f32 %v308, 0.0
        %v341 = vmax.f32 %v309, 0.0
        %v342 = vmax.f32 %v310, 0.0
        %v343 = vmax.f32 %v311, 0.0
        %v344 = vmax.f32 %v312, 0.0
        %v345 = vmax.f32 %v313, 0.0
        %v346 = vmax.f32 %v314, 0.0
        %v347 = vmax.f32 %v315, 0.0
        %v348 = vmax.f32 %v316, 0.0
        %v349 = vmax.f32 %v317, 0.0
        %v350 = vmax.f32 %v318, 0.0
        %v351 = vmax.f32 %v319, 0.0
        %v352 = vmax.f32 %v320, 0.0
        %v353 = vmax.f32 %v321, 0.0
        %v354 = vmax.f32 %v322, 0.0
        %v355 = vmax.f32 %v323, 0.0
        %v356 = vmax.f32 %v324, 0.0
        %v357 = vmax.f32 %v325, 0.0
        %v358 = vmax.f32 %v326, 0.0
        %v359 = vmax.f32 %v327, 0.0
        %v360 = vmax.f32 %v328, 0.0
        %v361 = vmax.f32 %v329, 0.0
        %s362 = scalar_lea.vmem [#allocation2], 24
        %vm363 = vcmask 31744
        %364 = vst.msk [vmem:[%s362 + $0x1] sm:$0xff] %vm363, %v330
        %365 = vst.msk [vmem:[%s362 + $0x9] sm:$0xff] %vm363, %v331
        %366 = vst.msk [vmem:[%s362 + $0x19] sm:$0xff] %vm363, %v332
        %367 = vst.msk [vmem:[%s362 + $0x21] sm:$0xff] %vm363, %v333
        %368 = vst.msk [vmem:[%s362 + $0x31] sm:$0xff] %vm363, %v334
        %369 = vst.msk [vmem:[%s362 + $0x39] sm:$0xff] %vm363, %v335
        %370 = vst.msk [vmem:[%s362 + $0x49] sm:$0xff] %vm363, %v336
        %371 = vst.msk [vmem:[%s362 + $0x51] sm:$0xff] %vm363, %v337
        %372 = vst.msk [vmem:[%s362 + $0x61] sm:$0xff] %vm363, %v338
        %373 = vst.msk [vmem:[%s362 + $0x69] sm:$0xff] %vm363, %v339
        %374 = vst.msk [vmem:[%s362 + $0x79] sm:$0xff] %vm363, %v340
        %375 = vst.msk [vmem:[%s362 + $0x81] sm:$0xff] %vm363, %v341
        %376 = vst.msk [vmem:[%s362 + $0x91] sm:$0xff] %vm363, %v342
        %377 = vst.msk [vmem:[%s362 + $0x99] sm:$0xff] %vm363, %v343
        %378 = vst.msk [vmem:[%s362 + $0xa9] sm:$0xff] %vm363, %v344
        %379 = vst.msk [vmem:[%s362 + $0xb1] sm:$0xff] %vm363, %v345
        %380 = vst.msk [vmem:[%s362 + $0xc1] sm:$0xff] %vm363, %v346
        %381 = vst.msk [vmem:[%s362 + $0xc9] sm:$0xff] %vm363, %v347
        %382 = vst.msk [vmem:[%s362 + $0xd9] sm:$0xff] %vm363, %v348
        %383 = vst.msk [vmem:[%s362 + $0xe1] sm:$0xff] %vm363, %v349
        %384 = vst.msk [vmem:[%s362 + $0xf1] sm:$0xff] %vm363, %v350
        %385 = vst.msk [vmem:[%s362 + $0xf9] sm:$0xff] %vm363, %v351
        %386 = vst.msk [vmem:[%s362 + $0x109] sm:$0xff] %vm363, %v352
        %387 = vst.msk [vmem:[%s362 + $0x111] sm:$0xff] %vm363, %v353
        %388 = vst.msk [vmem:[%s362 + $0x121] sm:$0xff] %vm363, %v354
        %389 = vst.msk [vmem:[%s362 + $0x129] sm:$0xff] %vm363, %v355
        %390 = vst.msk [vmem:[%s362 + $0x139] sm:$0xff] %vm363, %v356
        %391 = vst.msk [vmem:[%s362 + $0x141] sm:$0xff] %vm363, %v357
        %392 = vst.msk [vmem:[%s362 + $0x151] sm:$0xff] %vm363, %v358
        %393 = vst.msk [vmem:[%s362 + $0x159] sm:$0xff] %vm363, %v359
        %394 = vst.msk [vmem:[%s362 + $0x169] sm:$0xff] %vm363, %v360
        %395 = vst.msk [vmem:[%s362 + $0x171] sm:$0xff] %vm363, %v361
        %s396 = scalar_lea.vmem [#allocation2], 48
        %v397 = vld [vmem:[%s396 + $0x1] sm:$0xff]
        %v398 = vld [vmem:[%s396 + $0x9] sm:$0xff]
        %399 = vst.msk [vmem:[#allocation2 + $0x1] sm:$0xff] %vm363, %v397
        %400 = vst.msk [vmem:[#allocation2 + $0x9] sm:$0xff] %vm363, %v398
        %s401 = scalar_lea.vmem [#allocation2], 360
        %v402 = vld [vmem:[%s401 + $0x1] sm:$0xff]
        %v403 = vld [vmem:[%s401 + $0x9] sm:$0xff]
        %s404 = scalar_lea.vmem [#allocation2], 408
        %405 = vst.msk [vmem:[%s404 + $0x1] sm:$0xff] %vm363, %v402
        %406 = vst.msk [vmem:[%s404 + $0x9] sm:$0xff] %vm363, %v403
        %v407 = vld [vmem:[#allocation2 + $0x2] sm:$0x1]
        %v408 = vld [vmem:[#allocation2 + $0x1a] sm:$0x1]
        %v409 = vld [vmem:[#allocation2 + $0x32] sm:$0x1]
        %v410 = vld [vmem:[#allocation2 + $0x4a] sm:$0x1]
        %v411 = vld [vmem:[#allocation2 + $0x62] sm:$0x1]
        %v412 = vld [vmem:[#allocation2 + $0x7a] sm:$0x1]
        %v413 = vld [vmem:[#allocation2 + $0x92] sm:$0x1]
        %v414 = vld [vmem:[#allocation2 + $0xaa] sm:$0x1]
        %v415 = vld [vmem:[#allocation2 + $0xc2] sm:$0x1]
        %v416 = vld [vmem:[#allocation2 + $0xda] sm:$0x1]
        %v417 = vld [vmem:[#allocation2 + $0xf2] sm:$0x1]
        %v418 = vld [vmem:[#allocation2 + $0x10a] sm:$0x1]
        %v419 = vld [vmem:[#allocation2 + $0x122] sm:$0x1]
        %v420 = vld [vmem:[#allocation2 + $0x13a] sm:$0x1]
        %v421 = vld [vmem:[#allocation2 + $0x152] sm:$0x1]
        %v422 = vld [vmem:[#allocation2 + $0x16a] sm:$0x1]
        %v423 = vld [vmem:[#allocation2 + $0x182] sm:$0x1]
        %v424 = vld [vmem:[#allocation2 + $0x19a] sm:$0x1]
        %vm425 = vcmask 24576
        %426 = vst.msk [vmem:[#allocation2] sm:$0x1] %vm425, %v407
        %427 = vst.msk [vmem:[#allocation2 + $0x18] sm:$0x1] %vm425, %v408
        %428 = vst.msk [vmem:[#allocation2 + $0x30] sm:$0x1] %vm425, %v409
        %429 = vst.msk [vmem:[#allocation2 + $0x48] sm:$0x1] %vm425, %v410
        %430 = vst.msk [vmem:[#allocation2 + $0x60] sm:$0x1] %vm425, %v411
        %431 = vst.msk [vmem:[#allocation2 + $0x78] sm:$0x1] %vm425, %v412
        %432 = vst.msk [vmem:[#allocation2 + $0x90] sm:$0x1] %vm425, %v413
        %433 = vst.msk [vmem:[#allocation2 + $0xa8] sm:$0x1] %vm425, %v414
        %434 = vst.msk [vmem:[#allocation2 + $0xc0] sm:$0x1] %vm425, %v415
        %435 = vst.msk [vmem:[#allocation2 + $0xd8] sm:$0x1] %vm425, %v416
        %436 = vst.msk [vmem:[#allocation2 + $0xf0] sm:$0x1] %vm425, %v417
        %437 = vst.msk [vmem:[#allocation2 + $0x108] sm:$0x1] %vm425, %v418
        %438 = vst.msk [vmem:[#allocation2 + $0x120] sm:$0x1] %vm425, %v419
        %439 = vst.msk [vmem:[#allocation2 + $0x138] sm:$0x1] %vm425, %v420
        %440 = vst.msk [vmem:[#allocation2 + $0x150] sm:$0x1] %vm425, %v421
        %441 = vst.msk [vmem:[#allocation2 + $0x168] sm:$0x1] %vm425, %v422
        %442 = vst.msk [vmem:[#allocation2 + $0x180] sm:$0x1] %vm425, %v423
        %443 = vst.msk [vmem:[#allocation2 + $0x198] sm:$0x1] %vm425, %v424
        %v444 = vld [vmem:[#allocation2 + $0xf] sm:$0x1]
        %v445 = vld [vmem:[#allocation2 + $0x27] sm:$0x1]
        %v446 = vld [vmem:[#allocation2 + $0x3f] sm:$0x1]
        %v447 = vld [vmem:[#allocation2 + $0x57] sm:$0x1]
        %v448 = vld [vmem:[#allocation2 + $0x6f] sm:$0x1]
        %v449 = vld [vmem:[#allocation2 + $0x87] sm:$0x1]
        %v450 = vld [vmem:[#allocation2 + $0x9f] sm:$0x1]
        %v451 = vld [vmem:[#allocation2 + $0xb7] sm:$0x1]
        %v452 = vld [vmem:[#allocation2 + $0xcf] sm:$0x1]
        %v453 = vld [vmem:[#allocation2 + $0xe7] sm:$0x1]
        %v454 = vld [vmem:[#allocation2 + $0xff] sm:$0x1]
        %v455 = vld [vmem:[#allocation2 + $0x117] sm:$0x1]
        %v456 = vld [vmem:[#allocation2 + $0x12f] sm:$0x1]
        %v457 = vld [vmem:[#allocation2 + $0x147] sm:$0x1]
        %v458 = vld [vmem:[#allocation2 + $0x15f] sm:$0x1]
        %v459 = vld [vmem:[#allocation2 + $0x177] sm:$0x1]
        %v460 = vld [vmem:[#allocation2 + $0x18f] sm:$0x1]
        %v461 = vld [vmem:[#allocation2 + $0x1a7] sm:$0x1]
        %462 = vst.msk [vmem:[#allocation2 + $0x11] sm:$0x1] %vm425, %v444
        %463 = vst.msk [vmem:[#allocation2 + $0x29] sm:$0x1] %vm425, %v445
        %464 = vst.msk [vmem:[#allocation2 + $0x41] sm:$0x1] %vm425, %v446
        %465 = vst.msk [vmem:[#allocation2 + $0x59] sm:$0x1] %vm425, %v447
        %466 = vst.msk [vmem:[#allocation2 + $0x71] sm:$0x1] %vm425, %v448
        %467 = vst.msk [vmem:[#allocation2 + $0x89] sm:$0x1] %vm425, %v449
        %468 = vst.msk [vmem:[#allocation2 + $0xa1] sm:$0x1] %vm425, %v450
        %469 = vst.msk [vmem:[#allocation2 + $0xb9] sm:$0x1] %vm425, %v451
        %470 = vst.msk [vmem:[#allocation2 + $0xd1] sm:$0x1] %vm425, %v452
        %471 = vst.msk [vmem:[#allocation2 + $0xe9] sm:$0x1] %vm425, %v453
        %472 = vst.msk [vmem:[#allocation2 + $0x101] sm:$0x1] %vm425, %v454
        %473 = vst.msk [vmem:[#allocation2 + $0x119] sm:$0x1] %vm425, %v455
        %474 = vst.msk [vmem:[#allocation2 + $0x131] sm:$0x1] %vm425, %v456
        %475 = vst.msk [vmem:[#allocation2 + $0x149] sm:$0x1] %vm425, %v457
        %476 = vst.msk [vmem:[#allocation2 + $0x161] sm:$0x1] %vm425, %v458
        %477 = vst.msk [vmem:[#allocation2 + $0x179] sm:$0x1] %vm425, %v459
        %478 = vst.msk [vmem:[#allocation2 + $0x191] sm:$0x1] %vm425, %v460
        %479 = vst.msk [vmem:[#allocation2 + $0x1a9] sm:$0x1] %vm425, %v461
        %v480 = vld [vmem:[#allocation2] sm:$0xff]
        %v481 = vld [vmem:[#allocation2 + $0x8] sm:$0xff]
        %v482 = vld [vmem:[#allocation2 + $0x18] sm:$0xff]
        %v483 = vld [vmem:[#allocation2 + $0x20] sm:$0xff]
        %v484 = vld [vmem:[#allocation2 + $0x30] sm:$0xff]
        %v485 = vld [vmem:[#allocation2 + $0x38] sm:$0xff]
        %v486 = vld [vmem:[#allocation2 + $0x48] sm:$0xff]
        %v487 = vld [vmem:[#allocation2 + $0x50] sm:$0xff]
        %v488 = vld [vmem:[#allocation2 + $0x60] sm:$0xff]
        %v489 = vld [vmem:[#allocation2 + $0x68] sm:$0xff]
        %v490 = vld [vmem:[#allocation2 + $0x78] sm:$0xff]
        %v491 = vld [vmem:[#allocation2 + $0x80] sm:$0xff]
        %v492 = vld [vmem:[#allocation2 + $0x90] sm:$0xff]
        %v493 = vld [vmem:[#allocation2 + $0x98] sm:$0xff]
        %v494 = vld [vmem:[#allocation2 + $0xa8] sm:$0xff]
        %v495 = vld [vmem:[#allocation2 + $0xb0] sm:$0xff]
        %v496 = vld [vmem:[#allocation2 + $0xc0] sm:$0xff]
        %v497 = vld [vmem:[#allocation2 + $0xc8] sm:$0xff]
        %v498 = vld [vmem:[#allocation2 + $0xd8] sm:$0xff]
        %v499 = vld [vmem:[#allocation2 + $0xe0] sm:$0xff]
        %v500 = vld [vmem:[#allocation2 + $0xf0] sm:$0xff]
        %v501 = vld [vmem:[#allocation2 + $0xf8] sm:$0xff]
        %v502 = vld [vmem:[#allocation2 + $0x108] sm:$0xff]
        %v503 = vld [vmem:[#allocation2 + $0x110] sm:$0xff]
        %v504 = vld [vmem:[#allocation2 + $0x120] sm:$0xff]
        %v505 = vld [vmem:[#allocation2 + $0x128] sm:$0xff]
        %v506 = vld [vmem:[#allocation2 + $0x138] sm:$0xff]
        %v507 = vld [vmem:[#allocation2 + $0x140] sm:$0xff]
        %v508 = vld [vmem:[#allocation2 + $0x150] sm:$0xff]
        %v509 = vld [vmem:[#allocation2 + $0x158] sm:$0xff]
        %v510 = vld [vmem:[#allocation2 + $0x168] sm:$0xff]
        %v511 = vld [vmem:[#allocation2 + $0x170] sm:$0xff]
        %v512 = vpack.c.bf16 %v481, %v480
        %v513 = vpack.c.bf16 %v483, %v482
        %v514 = vpack.c.bf16 %v485, %v484
        %v515 = vpack.c.bf16 %v487, %v486
        %v516 = vpack.c.bf16 %v489, %v488
        %v517 = vpack.c.bf16 %v491, %v490
        %v518 = vpack.c.bf16 %v493, %v492
        %v519 = vpack.c.bf16 %v495, %v494
        %v520 = vpack.c.bf16 %v497, %v496
        %v521 = vpack.c.bf16 %v499, %v498
        %v522 = vpack.c.bf16 %v501, %v500
        %v523 = vpack.c.bf16 %v503, %v502
        %v524 = vpack.c.bf16 %v505, %v504
        %v525 = vpack.c.bf16 %v507, %v506
        %v526 = vpack.c.bf16 %v509, %v508
        %v527 = vpack.c.bf16 %v511, %v510
        %528 = vst.msk [vmem:[#allocation3] sm:$0xff] %vm363, %v512
        %529 = vst.msk [vmem:[#allocation3 + $0x8] sm:$0xff] %vm363, %v513
        %530 = vst.msk [vmem:[#allocation3 + $0x10] sm:$0xff] %vm363, %v514
        %531 = vst.msk [vmem:[#allocation3 + $0x18] sm:$0xff] %vm363, %v515
        %532 = vst.msk [vmem:[#allocation3 + $0x20] sm:$0xff] %vm363, %v516
        %533 = vst.msk [vmem:[#allocation3 + $0x28] sm:$0xff] %vm363, %v517
        %534 = vst.msk [vmem:[#allocation3 + $0x30] sm:$0xff] %vm363, %v518
        %535 = vst.msk [vmem:[#allocation3 + $0x38] sm:$0xff] %vm363, %v519
        %536 = vst.msk [vmem:[#allocation3 + $0x40] sm:$0xff] %vm363, %v520
        %537 = vst.msk [vmem:[#allocation3 + $0x48] sm:$0xff] %vm363, %v521
        %538 = vst.msk [vmem:[#allocation3 + $0x50] sm:$0xff] %vm363, %v522
        %539 = vst.msk [vmem:[#allocation3 + $0x58] sm:$0xff] %vm363, %v523
        %540 = vst.msk [vmem:[#allocation3 + $0x60] sm:$0xff] %vm363, %v524
        %541 = vst.msk [vmem:[#allocation3 + $0x68] sm:$0xff] %vm363, %v525
        %542 = vst.msk [vmem:[#allocation3 + $0x70] sm:$0xff] %vm363, %v526
        %543 = vst.msk [vmem:[#allocation3 + $0x78] sm:$0xff] %vm363, %v527
        %v544 = vld [vmem:[#allocation2 + $0x1] sm:$0xff]
        %v545 = vld [vmem:[#allocation2 + $0x9] sm:$0xff]
        %v546 = vld [vmem:[#allocation2 + $0x19] sm:$0xff]
        %v547 = vld [vmem:[#allocation2 + $0x21] sm:$0xff]
        %v548 = vld [vmem:[#allocation2 + $0x31] sm:$0xff]
        %v549 = vld [vmem:[#allocation2 + $0x39] sm:$0xff]
        %v550 = vld [vmem:[#allocation2 + $0x49] sm:$0xff]
        %v551 = vld [vmem:[#allocation2 + $0x51] sm:$0xff]
        %v552 = vld [vmem:[#allocation2 + $0x61] sm:$0xff]
        %v553 = vld [vmem:[#allocation2 + $0x69] sm:$0xff]
        %v554 = vld [vmem:[#allocation2 + $0x79] sm:$0xff]
        %v555 = vld [vmem:[#allocation2 + $0x81] sm:$0xff]
        %v556 = vld [vmem:[#allocation2 + $0x91] sm:$0xff]
        %v557 = vld [vmem:[#allocation2 + $0x99] sm:$0xff]
        %v558 = vld [vmem:[#allocation2 + $0xa9] sm:$0xff]
        %v559 = vld [vmem:[#allocation2 + $0xb1] sm:$0xff]
        %v560 = vld [vmem:[#allocation2 + $0xc1] sm:$0xff]
        %v561 = vld [vmem:[#allocation2 + $0xc9] sm:$0xff]
        %v562 = vld [vmem:[#allocation2 + $0xd9] sm:$0xff]
        %v563 = vld [vmem:[#allocation2 + $0xe1] sm:$0xff]
        %v564 = vld [vmem:[#allocation2 + $0xf1] sm:$0xff]
        %v565 = vld [vmem:[#allocation2 + $0xf9] sm:$0xff]
        %v566 = vld [vmem:[#allocation2 + $0x109] sm:$0xff]
        %v567 = vld [vmem:[#allocation2 + $0x111] sm:$0xff]
        %v568 = vld [vmem:[#allocation2 + $0x121] sm:$0xff]
        %v569 = vld [vmem:[#allocation2 + $0x129] sm:$0xff]
        %v570 = vld [vmem:[#allocation2 + $0x139] sm:$0xff]
        %v571 = vld [vmem:[#allocation2 + $0x141] sm:$0xff]
        %v572 = vld [vmem:[#allocation2 + $0x151] sm:$0xff]
        %v573 = vld [vmem:[#allocation2 + $0x159] sm:$0xff]
        %v574 = vld [vmem:[#allocation2 + $0x169] sm:$0xff]
        %v575 = vld [vmem:[#allocation2 + $0x171] sm:$0xff]
        %v576 = vpack.c.bf16 %v545, %v544
        %v577 = vpack.c.bf16 %v547, %v546
        %v578 = vpack.c.bf16 %v549, %v548
        %v579 = vpack.c.bf16 %v551, %v550
        %v580 = vpack.c.bf16 %v553, %v552
        %v581 = vpack.c.bf16 %v555, %v554
        %v582 = vpack.c.bf16 %v557, %v556
        %v583 = vpack.c.bf16 %v559, %v558
        %v584 = vpack.c.bf16 %v561, %v560
        %v585 = vpack.c.bf16 %v563, %v562
        %v586 = vpack.c.bf16 %v565, %v564
        %v587 = vpack.c.bf16 %v567, %v566
        %v588 = vpack.c.bf16 %v569, %v568
        %v589 = vpack.c.bf16 %v571, %v570
        %v590 = vpack.c.bf16 %v573, %v572
        %v591 = vpack.c.bf16 %v575, %v574
        %608 = vrot.lane.b32.xlu0 %v576, 4
        %v609 = vpop.permute.xlu0 %608
        %610 = vrot.lane.b32.xlu0 %v577, 4
        %v611 = vpop.permute.xlu0 %610
        %612 = vrot.lane.b32.xlu0 %v578, 4
        %v613 = vpop.permute.xlu0 %612
        %614 = vrot.lane.b32.xlu0 %v579, 4
        %v615 = vpop.permute.xlu0 %614
        %616 = vrot.lane.b32.xlu0 %v580, 4
        %v617 = vpop.permute.xlu0 %616
        %618 = vrot.lane.b32.xlu0 %v581, 4
        %v619 = vpop.permute.xlu0 %618
        %620 = vrot.lane.b32.xlu0 %v582, 4
        %v621 = vpop.permute.xlu0 %620
        %622 = vrot.lane.b32.xlu0 %v583, 4
        %v623 = vpop.permute.xlu0 %622
        %624 = vrot.lane.b32.xlu0 %v584, 4
        %v625 = vpop.permute.xlu0 %624
        %626 = vrot.lane.b32.xlu0 %v585, 4
        %v627 = vpop.permute.xlu0 %626
        %628 = vrot.lane.b32.xlu0 %v586, 4
        %v629 = vpop.permute.xlu0 %628
        %630 = vrot.lane.b32.xlu0 %v587, 4
        %v631 = vpop.permute.xlu0 %630
        %632 = vrot.lane.b32.xlu0 %v588, 4
        %v633 = vpop.permute.xlu0 %632
        %634 = vrot.lane.b32.xlu0 %v589, 4
        %v635 = vpop.permute.xlu0 %634
        %636 = vrot.lane.b32.xlu0 %v590, 4
        %v637 = vpop.permute.xlu0 %636
        %638 = vrot.lane.b32.xlu0 %v591, 4
        %v639 = vpop.permute.xlu0 %638
        %vm656 = vcmask 64544
        %657 = vst.msk [vmem:[#allocation3] sm:$0xff] %vm656, %v609
        %658 = vst.msk [vmem:[#allocation3 + $0x8] sm:$0xff] %vm656, %v611
        %659 = vst.msk [vmem:[#allocation3 + $0x10] sm:$0xff] %vm656, %v613
        %660 = vst.msk [vmem:[#allocation3 + $0x18] sm:$0xff] %vm656, %v615
        %661 = vst.msk [vmem:[#allocation3 + $0x20] sm:$0xff] %vm656, %v617
        %662 = vst.msk [vmem:[#allocation3 + $0x28] sm:$0xff] %vm656, %v619
        %663 = vst.msk [vmem:[#allocation3 + $0x30] sm:$0xff] %vm656, %v621
        %664 = vst.msk [vmem:[#allocation3 + $0x38] sm:$0xff] %vm656, %v623
        %665 = vst.msk [vmem:[#allocation3 + $0x40] sm:$0xff] %vm656, %v625
        %666 = vst.msk [vmem:[#allocation3 + $0x48] sm:$0xff] %vm656, %v627
        %667 = vst.msk [vmem:[#allocation3 + $0x50] sm:$0xff] %vm656, %v629
        %668 = vst.msk [vmem:[#allocation3 + $0x58] sm:$0xff] %vm656, %v631
        %669 = vst.msk [vmem:[#allocation3 + $0x60] sm:$0xff] %vm656, %v633
        %670 = vst.msk [vmem:[#allocation3 + $0x68] sm:$0xff] %vm656, %v635
        %671 = vst.msk [vmem:[#allocation3 + $0x70] sm:$0xff] %vm656, %v637
        %672 = vst.msk [vmem:[#allocation3 + $0x78] sm:$0xff] %vm656, %v639
        %v673 = vld [vmem:[#allocation2 + $0x2] sm:$0xff]
        %v674 = vld [vmem:[#allocation2 + $0xa] sm:$0xff]
        %v675 = vld [vmem:[#allocation2 + $0x1a] sm:$0xff]
        %v676 = vld [vmem:[#allocation2 + $0x22] sm:$0xff]
        %v677 = vld [vmem:[#allocation2 + $0x32] sm:$0xff]
        %v678 = vld [vmem:[#allocation2 + $0x3a] sm:$0xff]
        %v679 = vld [vmem:[#allocation2 + $0x4a] sm:$0xff]
        %v680 = vld [vmem:[#allocation2 + $0x52] sm:$0xff]
        %v681 = vld [vmem:[#allocation2 + $0x62] sm:$0xff]
        %v682 = vld [vmem:[#allocation2 + $0x6a] sm:$0xff]
        %v683 = vld [vmem:[#allocation2 + $0x7a] sm:$0xff]
        %v684 = vld [vmem:[#allocation2 + $0x82] sm:$0xff]
        %v685 = vld [vmem:[#allocation2 + $0x92] sm:$0xff]
        %v686 = vld [vmem:[#allocation2 + $0x9a] sm:$0xff]
        %v687 = vld [vmem:[#allocation2 + $0xaa] sm:$0xff]
        %v688 = vld [vmem:[#allocation2 + $0xb2] sm:$0xff]
        %v689 = vld [vmem:[#allocation2 + $0xc2] sm:$0xff]
        %v690 = vld [vmem:[#allocation2 + $0xca] sm:$0xff]
        %v691 = vld [vmem:[#allocation2 + $0xda] sm:$0xff]
        %v692 = vld [vmem:[#allocation2 + $0xe2] sm:$0xff]
        %v693 = vld [vmem:[#allocation2 + $0xf2] sm:$0xff]
        %v694 = vld [vmem:[#allocation2 + $0xfa] sm:$0xff]
        %v695 = vld [vmem:[#allocation2 + $0x10a] sm:$0xff]
        %v696 = vld [vmem:[#allocation2 + $0x112] sm:$0xff]
        %v697 = vld [vmem:[#allocation2 + $0x122] sm:$0xff]
        %v698 = vld [vmem:[#allocation2 + $0x12a] sm:$0xff]
        %v699 = vld [vmem:[#allocation2 + $0x13a] sm:$0xff]
        %v700 = vld [vmem:[#allocation2 + $0x142] sm:$0xff]
        %v701 = vld [vmem:[#allocation2 + $0x152] sm:$0xff]
        %v702 = vld [vmem:[#allocation2 + $0x15a] sm:$0xff]
        %v703 = vld [vmem:[#allocation2 + $0x16a] sm:$0xff]
        %v704 = vld [vmem:[#allocation2 + $0x172] sm:$0xff]
        %v705 = vpack.c.bf16 %v674, %v673
        %v706 = vpack.c.bf16 %v676, %v675
        %v707 = vpack.c.bf16 %v678, %v677
        %v708 = vpack.c.bf16 %v680, %v679
        %v709 = vpack.c.bf16 %v682, %v681
        %v710 = vpack.c.bf16 %v684, %v683
        %v711 = vpack.c.bf16 %v686, %v685
        %v712 = vpack.c.bf16 %v688, %v687
        %v713 = vpack.c.bf16 %v690, %v689
        %v714 = vpack.c.bf16 %v692, %v691
        %v715 = vpack.c.bf16 %v694, %v693
        %v716 = vpack.c.bf16 %v696, %v695
        %v717 = vpack.c.bf16 %v698, %v697
        %v718 = vpack.c.bf16 %v700, %v699
        %v719 = vpack.c.bf16 %v702, %v701
        %v720 = vpack.c.bf16 %v704, %v703
        %737 = vrot.lane.b32.xlu0 %v705, 8
        %v738 = vpop.permute.xlu0 %737
        %739 = vrot.lane.b32.xlu0 %v706, 8
        %v740 = vpop.permute.xlu0 %739
        %741 = vrot.lane.b32.xlu0 %v707, 8
        %v742 = vpop.permute.xlu0 %741
        %743 = vrot.lane.b32.xlu0 %v708, 8
        %v744 = vpop.permute.xlu0 %743
        %745 = vrot.lane.b32.xlu0 %v709, 8
        %v746 = vpop.permute.xlu0 %745
        %747 = vrot.lane.b32.xlu0 %v710, 8
        %v748 = vpop.permute.xlu0 %747
        %749 = vrot.lane.b32.xlu0 %v711, 8
        %v750 = vpop.permute.xlu0 %749
        %751 = vrot.lane.b32.xlu0 %v712, 8
        %v752 = vpop.permute.xlu0 %751
        %753 = vrot.lane.b32.xlu0 %v713, 8
        %v754 = vpop.permute.xlu0 %753
        %755 = vrot.lane.b32.xlu0 %v714, 8
        %v756 = vpop.permute.xlu0 %755
        %757 = vrot.lane.b32.xlu0 %v715, 8
        %v758 = vpop.permute.xlu0 %757
        %759 = vrot.lane.b32.xlu0 %v716, 8
        %v760 = vpop.permute.xlu0 %759
        %761 = vrot.lane.b32.xlu0 %v717, 8
        %v762 = vpop.permute.xlu0 %761
        %763 = vrot.lane.b32.xlu0 %v718, 8
        %v764 = vpop.permute.xlu0 %763
        %765 = vrot.lane.b32.xlu0 %v719, 8
        %v766 = vpop.permute.xlu0 %765
        %767 = vrot.lane.b32.xlu0 %v720, 8
        %v768 = vpop.permute.xlu0 %767
        %vm785 = vcmask 97344
        %786 = vst.msk [vmem:[#allocation3] sm:$0xff] %vm785, %v738
        %787 = vst.msk [vmem:[#allocation3 + $0x8] sm:$0xff] %vm785, %v740
        %788 = vst.msk [vmem:[#allocation3 + $0x10] sm:$0xff] %vm785, %v742
        %789 = vst.msk [vmem:[#allocation3 + $0x18] sm:$0xff] %vm785, %v744
        %790 = vst.msk [vmem:[#allocation3 + $0x20] sm:$0xff] %vm785, %v746
        %791 = vst.msk [vmem:[#allocation3 + $0x28] sm:$0xff] %vm785, %v748
        %792 = vst.msk [vmem:[#allocation3 + $0x30] sm:$0xff] %vm785, %v750
        %793 = vst.msk [vmem:[#allocation3 + $0x38] sm:$0xff] %vm785, %v752
        %794 = vst.msk [vmem:[#allocation3 + $0x40] sm:$0xff] %vm785, %v754
        %795 = vst.msk [vmem:[#allocation3 + $0x48] sm:$0xff] %vm785, %v756
        %796 = vst.msk [vmem:[#allocation3 + $0x50] sm:$0xff] %vm785, %v758
        %797 = vst.msk [vmem:[#allocation3 + $0x58] sm:$0xff] %vm785, %v760
        %798 = vst.msk [vmem:[#allocation3 + $0x60] sm:$0xff] %vm785, %v762
        %799 = vst.msk [vmem:[#allocation3 + $0x68] sm:$0xff] %vm785, %v764
        %800 = vst.msk [vmem:[#allocation3 + $0x70] sm:$0xff] %vm785, %v766
        %801 = vst.msk [vmem:[#allocation3 + $0x78] sm:$0xff] %vm785, %v768
        %v802 = vld [vmem:[%s362] sm:$0xff]
        %v803 = vld [vmem:[%s362 + $0x8] sm:$0xff]
        %v804 = vld [vmem:[%s362 + $0x18] sm:$0xff]
        %v805 = vld [vmem:[%s362 + $0x20] sm:$0xff]
        %v806 = vld [vmem:[%s362 + $0x30] sm:$0xff]
        %v807 = vld [vmem:[%s362 + $0x38] sm:$0xff]
        %v808 = vld [vmem:[%s362 + $0x48] sm:$0xff]
        %v809 = vld [vmem:[%s362 + $0x50] sm:$0xff]
        %v810 = vld [vmem:[%s362 + $0x60] sm:$0xff]
        %v811 = vld [vmem:[%s362 + $0x68] sm:$0xff]
        %v812 = vld [vmem:[%s362 + $0x78] sm:$0xff]
        %v813 = vld [vmem:[%s362 + $0x80] sm:$0xff]
        %v814 = vld [vmem:[%s362 + $0x90] sm:$0xff]
        %v815 = vld [vmem:[%s362 + $0x98] sm:$0xff]
        %v816 = vld [vmem:[%s362 + $0xa8] sm:$0xff]
        %v817 = vld [vmem:[%s362 + $0xb0] sm:$0xff]
        %v818 = vld [vmem:[%s362 + $0xc0] sm:$0xff]
        %v819 = vld [vmem:[%s362 + $0xc8] sm:$0xff]
        %v820 = vld [vmem:[%s362 + $0xd8] sm:$0xff]
        %v821 = vld [vmem:[%s362 + $0xe0] sm:$0xff]
        %v822 = vld [vmem:[%s362 + $0xf0] sm:$0xff]
        %v823 = vld [vmem:[%s362 + $0xf8] sm:$0xff]
        %v824 = vld [vmem:[%s362 + $0x108] sm:$0xff]
        %v825 = vld [vmem:[%s362 + $0x110] sm:$0xff]
        %v826 = vld [vmem:[%s362 + $0x120] sm:$0xff]
        %v827 = vld [vmem:[%s362 + $0x128] sm:$0xff]
        %v828 = vld [vmem:[%s362 + $0x138] sm:$0xff]
        %v829 = vld [vmem:[%s362 + $0x140] sm:$0xff]
        %v830 = vld [vmem:[%s362 + $0x150] sm:$0xff]
        %v831 = vld [vmem:[%s362 + $0x158] sm:$0xff]
        %v832 = vld [vmem:[%s362 + $0x168] sm:$0xff]
        %v833 = vld [vmem:[%s362 + $0x170] sm:$0xff]
        %v834 = vpack.c.bf16 %v803, %v802
        %v835 = vpack.c.bf16 %v805, %v804
        %v836 = vpack.c.bf16 %v807, %v806
        %v837 = vpack.c.bf16 %v809, %v808
        %v838 = vpack.c.bf16 %v811, %v810
        %v839 = vpack.c.bf16 %v813, %v812
        %v840 = vpack.c.bf16 %v815, %v814
        %v841 = vpack.c.bf16 %v817, %v816
        %v842 = vpack.c.bf16 %v819, %v818
        %v843 = vpack.c.bf16 %v821, %v820
        %v844 = vpack.c.bf16 %v823, %v822
        %v845 = vpack.c.bf16 %v825, %v824
        %v846 = vpack.c.bf16 %v827, %v826
        %v847 = vpack.c.bf16 %v829, %v828
        %v848 = vpack.c.bf16 %v831, %v830
        %v849 = vpack.c.bf16 %v833, %v832
        %866 = vrot.lane.b32.xlu0 %v834, 12
        %v867 = vpop.permute.xlu0 %866
        %868 = vrot.lane.b32.xlu0 %v835, 12
        %v869 = vpop.permute.xlu0 %868
        %870 = vrot.lane.b32.xlu0 %v836, 12
        %v871 = vpop.permute.xlu0 %870
        %872 = vrot.lane.b32.xlu0 %v837, 12
        %v873 = vpop.permute.xlu0 %872
        %874 = vrot.lane.b32.xlu0 %v838, 12
        %v875 = vpop.permute.xlu0 %874
        %876 = vrot.lane.b32.xlu0 %v839, 12
        %v877 = vpop.permute.xlu0 %876
        %878 = vrot.lane.b32.xlu0 %v840, 12
        %v879 = vpop.permute.xlu0 %878
        %880 = vrot.lane.b32.xlu0 %v841, 12
        %v881 = vpop.permute.xlu0 %880
        %882 = vrot.lane.b32.xlu0 %v842, 12
        %v883 = vpop.permute.xlu0 %882
        %884 = vrot.lane.b32.xlu0 %v843, 12
        %v885 = vpop.permute.xlu0 %884
        %886 = vrot.lane.b32.xlu0 %v844, 12
        %v887 = vpop.permute.xlu0 %886
        %888 = vrot.lane.b32.xlu0 %v845, 12
        %v889 = vpop.permute.xlu0 %888
        %890 = vrot.lane.b32.xlu0 %v846, 12
        %v891 = vpop.permute.xlu0 %890
        %892 = vrot.lane.b32.xlu0 %v847, 12
        %v893 = vpop.permute.xlu0 %892
        %894 = vrot.lane.b32.xlu0 %v848, 12
        %v895 = vpop.permute.xlu0 %894
        %896 = vrot.lane.b32.xlu0 %v849, 12
        %v897 = vpop.permute.xlu0 %896
        %vm914 = vcmask 130144
        %915 = vst.msk [vmem:[#allocation3] sm:$0xff] %vm914, %v867
        %916 = vst.msk [vmem:[#allocation3 + $0x8] sm:$0xff] %vm914, %v869
        %917 = vst.msk [vmem:[#allocation3 + $0x10] sm:$0xff] %vm914, %v871
        %918 = vst.msk [vmem:[#allocation3 + $0x18] sm:$0xff] %vm914, %v873
        %919 = vst.msk [vmem:[#allocation3 + $0x20] sm:$0xff] %vm914, %v875
        %920 = vst.msk [vmem:[#allocation3 + $0x28] sm:$0xff] %vm914, %v877
        %921 = vst.msk [vmem:[#allocation3 + $0x30] sm:$0xff] %vm914, %v879
        %922 = vst.msk [vmem:[#allocation3 + $0x38] sm:$0xff] %vm914, %v881
        %923 = vst.msk [vmem:[#allocation3 + $0x40] sm:$0xff] %vm914, %v883
        %924 = vst.msk [vmem:[#allocation3 + $0x48] sm:$0xff] %vm914, %v885
        %925 = vst.msk [vmem:[#allocation3 + $0x50] sm:$0xff] %vm914, %v887
        %926 = vst.msk [vmem:[#allocation3 + $0x58] sm:$0xff] %vm914, %v889
        %927 = vst.msk [vmem:[#allocation3 + $0x60] sm:$0xff] %vm914, %v891
        %928 = vst.msk [vmem:[#allocation3 + $0x68] sm:$0xff] %vm914, %v893
        %929 = vst.msk [vmem:[#allocation3 + $0x70] sm:$0xff] %vm914, %v895
        %930 = vst.msk [vmem:[#allocation3 + $0x78] sm:$0xff] %vm914, %v897
        %v931 = vld [vmem:[%s362 + $0x1] sm:$0xff]
        %v932 = vld [vmem:[%s362 + $0x9] sm:$0xff]
        %v933 = vld [vmem:[%s362 + $0x19] sm:$0xff]
        %v934 = vld [vmem:[%s362 + $0x21] sm:$0xff]
        %v935 = vld [vmem:[%s362 + $0x31] sm:$0xff]
        %v936 = vld [vmem:[%s362 + $0x39] sm:$0xff]
        %v937 = vld [vmem:[%s362 + $0x49] sm:$0xff]
        %v938 = vld [vmem:[%s362 + $0x51] sm:$0xff]
        %v939 = vld [vmem:[%s362 + $0x61] sm:$0xff]
        %v940 = vld [vmem:[%s362 + $0x69] sm:$0xff]
        %v941 = vld [vmem:[%s362 + $0x79] sm:$0xff]
        %v942 = vld [vmem:[%s362 + $0x81] sm:$0xff]
        %v943 = vld [vmem:[%s362 + $0x91] sm:$0xff]
        %v944 = vld [vmem:[%s362 + $0x99] sm:$0xff]
        %v945 = vld [vmem:[%s362 + $0xa9] sm:$0xff]
        %v946 = vld [vmem:[%s362 + $0xb1] sm:$0xff]
        %v947 = vld [vmem:[%s362 + $0xc1] sm:$0xff]
        %v948 = vld [vmem:[%s362 + $0xc9] sm:$0xff]
        %v949 = vld [vmem:[%s362 + $0xd9] sm:$0xff]
        %v950 = vld [vmem:[%s362 + $0xe1] sm:$0xff]
        %v951 = vld [vmem:[%s362 + $0xf1] sm:$0xff]
        %v952 = vld [vmem:[%s362 + $0xf9] sm:$0xff]
        %v953 = vld [vmem:[%s362 + $0x109] sm:$0xff]
        %v954 = vld [vmem:[%s362 + $0x111] sm:$0xff]
        %v955 = vld [vmem:[%s362 + $0x121] sm:$0xff]
        %v956 = vld [vmem:[%s362 + $0x129] sm:$0xff]
        %v957 = vld [vmem:[%s362 + $0x139] sm:$0xff]
        %v958 = vld [vmem:[%s362 + $0x141] sm:$0xff]
        %v959 = vld [vmem:[%s362 + $0x151] sm:$0xff]
        %v960 = vld [vmem:[%s362 + $0x159] sm:$0xff]
        %v961 = vld [vmem:[%s362 + $0x169] sm:$0xff]
        %v962 = vld [vmem:[%s362 + $0x171] sm:$0xff]
        %v963 = vpack.c.bf16 %v932, %v931
        %v964 = vpack.c.bf16 %v934, %v933
        %v965 = vpack.c.bf16 %v936, %v935
        %v966 = vpack.c.bf16 %v938, %v937
        %v967 = vpack.c.bf16 %v940, %v939
        %v968 = vpack.c.bf16 %v942, %v941
        %v969 = vpack.c.bf16 %v944, %v943
        %v970 = vpack.c.bf16 %v946, %v945
        %v971 = vpack.c.bf16 %v948, %v947
        %v972 = vpack.c.bf16 %v950, %v949
        %v973 = vpack.c.bf16 %v952, %v951
        %v974 = vpack.c.bf16 %v954, %v953
        %v975 = vpack.c.bf16 %v956, %v955
        %v976 = vpack.c.bf16 %v958, %v957
        %v977 = vpack.c.bf16 %v960, %v959
        %v978 = vpack.c.bf16 %v962, %v961
        %995 = vrot.lane.b32.xlu0 %v963, 16
        %v996 = vpop.permute.xlu0 %995
        %997 = vrot.lane.b32.xlu0 %v964, 16
        %v998 = vpop.permute.xlu0 %997
        %999 = vrot.lane.b32.xlu0 %v965, 16
        %v1000 = vpop.permute.xlu0 %999
        %1001 = vrot.lane.b32.xlu0 %v966, 16
        %v1002 = vpop.permute.xlu0 %1001
        %1003 = vrot.lane.b32.xlu0 %v967, 16
        %v1004 = vpop.permute.xlu0 %1003
        %1005 = vrot.lane.b32.xlu0 %v968, 16
        %v1006 = vpop.permute.xlu0 %1005
        %1007 = vrot.lane.b32.xlu0 %v969, 16
        %v1008 = vpop.permute.xlu0 %1007
        %1009 = vrot.lane.b32.xlu0 %v970, 16
        %v1010 = vpop.permute.xlu0 %1009
        %1011 = vrot.lane.b32.xlu0 %v971, 16
        %v1012 = vpop.permute.xlu0 %1011
        %1013 = vrot.lane.b32.xlu0 %v972, 16
        %v1014 = vpop.permute.xlu0 %1013
        %1015 = vrot.lane.b32.xlu0 %v973, 16
        %v1016 = vpop.permute.xlu0 %1015
        %1017 = vrot.lane.b32.xlu0 %v974, 16
        %v1018 = vpop.permute.xlu0 %1017
        %1019 = vrot.lane.b32.xlu0 %v975, 16
        %v1020 = vpop.permute.xlu0 %1019
        %1021 = vrot.lane.b32.xlu0 %v976, 16
        %v1022 = vpop.permute.xlu0 %1021
        %1023 = vrot.lane.b32.xlu0 %v977, 16
        %v1024 = vpop.permute.xlu0 %1023
        %1025 = vrot.lane.b32.xlu0 %v978, 16
        %v1026 = vpop.permute.xlu0 %1025
        %vm1043 = vcmask 162944
        %1044 = vst.msk [vmem:[#allocation3] sm:$0xff] %vm1043, %v996
        %1045 = vst.msk [vmem:[#allocation3 + $0x8] sm:$0xff] %vm1043, %v998
        %1046 = vst.msk [vmem:[#allocation3 + $0x10] sm:$0xff] %vm1043, %v1000
        %1047 = vst.msk [vmem:[#allocation3 + $0x18] sm:$0xff] %vm1043, %v1002
        %1048 = vst.msk [vmem:[#allocation3 + $0x20] sm:$0xff] %vm1043, %v1004
        %1049 = vst.msk [vmem:[#allocation3 + $0x28] sm:$0xff] %vm1043, %v1006
        %1050 = vst.msk [vmem:[#allocation3 + $0x30] sm:$0xff] %vm1043, %v1008
        %1051 = vst.msk [vmem:[#allocation3 + $0x38] sm:$0xff] %vm1043, %v1010
        %1052 = vst.msk [vmem:[#allocation3 + $0x40] sm:$0xff] %vm1043, %v1012
        %1053 = vst.msk [vmem:[#allocation3 + $0x48] sm:$0xff] %vm1043, %v1014
        %1054 = vst.msk [vmem:[#allocation3 + $0x50] sm:$0xff] %vm1043, %v1016
        %1055 = vst.msk [vmem:[#allocation3 + $0x58] sm:$0xff] %vm1043, %v1018
        %1056 = vst.msk [vmem:[#allocation3 + $0x60] sm:$0xff] %vm1043, %v1020
        %1057 = vst.msk [vmem:[#allocation3 + $0x68] sm:$0xff] %vm1043, %v1022
        %1058 = vst.msk [vmem:[#allocation3 + $0x70] sm:$0xff] %vm1043, %v1024
        %1059 = vst.msk [vmem:[#allocation3 + $0x78] sm:$0xff] %vm1043, %v1026
        %v1060 = vld [vmem:[%s362 + $0x2] sm:$0xff]
        %v1061 = vld [vmem:[%s362 + $0xa] sm:$0xff]
        %v1062 = vld [vmem:[%s362 + $0x1a] sm:$0xff]
        %v1063 = vld [vmem:[%s362 + $0x22] sm:$0xff]
        %v1064 = vld [vmem:[%s362 + $0x32] sm:$0xff]
        %v1065 = vld [vmem:[%s362 + $0x3a] sm:$0xff]
        %v1066 = vld [vmem:[%s362 + $0x4a] sm:$0xff]
        %v1067 = vld [vmem:[%s362 + $0x52] sm:$0xff]
        %v1068 = vld [vmem:[%s362 + $0x62] sm:$0xff]
        %v1069 = vld [vmem:[%s362 + $0x6a] sm:$0xff]
        %v1070 = vld [vmem:[%s362 + $0x7a] sm:$0xff]
        %v1071 = vld [vmem:[%s362 + $0x82] sm:$0xff]
        %v1072 = vld [vmem:[%s362 + $0x92] sm:$0xff]
        %v1073 = vld [vmem:[%s362 + $0x9a] sm:$0xff]
        %v1074 = vld [vmem:[%s362 + $0xaa] sm:$0xff]
        %v1075 = vld [vmem:[%s362 + $0xb2] sm:$0xff]
        %v1076 = vld [vmem:[%s362 + $0xc2] sm:$0xff]
        %v1077 = vld [vmem:[%s362 + $0xca] sm:$0xff]
        %v1078 = vld [vmem:[%s362 + $0xda] sm:$0xff]
        %v1079 = vld [vmem:[%s362 + $0xe2] sm:$0xff]
        %v1080 = vld [vmem:[%s362 + $0xf2] sm:$0xff]
        %v1081 = vld [vmem:[%s362 + $0xfa] sm:$0xff]
        %v1082 = vld [vmem:[%s362 + $0x10a] sm:$0xff]
        %v1083 = vld [vmem:[%s362 + $0x112] sm:$0xff]
        %v1084 = vld [vmem:[%s362 + $0x122] sm:$0xff]
        %v1085 = vld [vmem:[%s362 + $0x12a] sm:$0xff]
        %v1086 = vld [vmem:[%s362 + $0x13a] sm:$0xff]
        %v1087 = vld [vmem:[%s362 + $0x142] sm:$0xff]
        %v1088 = vld [vmem:[%s362 + $0x152] sm:$0xff]
        %v1089 = vld [vmem:[%s362 + $0x15a] sm:$0xff]
        %v1090 = vld [vmem:[%s362 + $0x16a] sm:$0xff]
        %v1091 = vld [vmem:[%s362 + $0x172] sm:$0xff]
        %v1092 = vpack.c.bf16 %v1061, %v1060
        %v1093 = vpack.c.bf16 %v1063, %v1062
        %v1094 = vpack.c.bf16 %v1065, %v1064
        %v1095 = vpack.c.bf16 %v1067, %v1066
        %v1096 = vpack.c.bf16 %v1069, %v1068
        %v1097 = vpack.c.bf16 %v1071, %v1070
        %v1098 = vpack.c.bf16 %v1073, %v1072
        %v1099 = vpack.c.bf16 %v1075, %v1074
        %v1100 = vpack.c.bf16 %v1077, %v1076
        %v1101 = vpack.c.bf16 %v1079, %v1078
        %v1102 = vpack.c.bf16 %v1081, %v1080
        %v1103 = vpack.c.bf16 %v1083, %v1082
        %v1104 = vpack.c.bf16 %v1085, %v1084
        %v1105 = vpack.c.bf16 %v1087, %v1086
        %v1106 = vpack.c.bf16 %v1089, %v1088
        %v1107 = vpack.c.bf16 %v1091, %v1090
        %1124 = vrot.lane.b32.xlu0 %v1092, 20
        %v1125 = vpop.permute.xlu0 %1124
        %1126 = vrot.lane.b32.xlu0 %v1093, 20
        %v1127 = vpop.permute.xlu0 %1126
        %1128 = vrot.lane.b32.xlu0 %v1094, 20
        %v1129 = vpop.permute.xlu0 %1128
        %1130 = vrot.lane.b32.xlu0 %v1095, 20
        %v1131 = vpop.permute.xlu0 %1130
        %1132 = vrot.lane.b32.xlu0 %v1096, 20
        %v1133 = vpop.permute.xlu0 %1132
        %1134 = vrot.lane.b32.xlu0 %v1097, 20
        %v1135 = vpop.permute.xlu0 %1134
        %1136 = vrot.lane.b32.xlu0 %v1098, 20
        %v1137 = vpop.permute.xlu0 %1136
        %1138 = vrot.lane.b32.xlu0 %v1099, 20
        %v1139 = vpop.permute.xlu0 %1138
        %1140 = vrot.lane.b32.xlu0 %v1100, 20
        %v1141 = vpop.permute.xlu0 %1140
        %1142 = vrot.lane.b32.xlu0 %v1101, 20
        %v1143 = vpop.permute.xlu0 %1142
        %1144 = vrot.lane.b32.xlu0 %v1102, 20
        %v1145 = vpop.permute.xlu0 %1144
        %1146 = vrot.lane.b32.xlu0 %v1103, 20
        %v1147 = vpop.permute.xlu0 %1146
        %1148 = vrot.lane.b32.xlu0 %v1104, 20
        %v1149 = vpop.permute.xlu0 %1148
        %1150 = vrot.lane.b32.xlu0 %v1105, 20
        %v1151 = vpop.permute.xlu0 %1150
        %1152 = vrot.lane.b32.xlu0 %v1106, 20
        %v1153 = vpop.permute.xlu0 %1152
        %1154 = vrot.lane.b32.xlu0 %v1107, 20
        %v1155 = vpop.permute.xlu0 %1154
        %vm1172 = vcmask 195744
        %1173 = vst.msk [vmem:[#allocation3] sm:$0xff] %vm1172, %v1125
        %1174 = vst.msk [vmem:[#allocation3 + $0x8] sm:$0xff] %vm1172, %v1127
        %1175 = vst.msk [vmem:[#allocation3 + $0x10] sm:$0xff] %vm1172, %v1129
        %1176 = vst.msk [vmem:[#allocation3 + $0x18] sm:$0xff] %vm1172, %v1131
        %1177 = vst.msk [vmem:[#allocation3 + $0x20] sm:$0xff] %vm1172, %v1133
        %1178 = vst.msk [vmem:[#allocation3 + $0x28] sm:$0xff] %vm1172, %v1135
        %1179 = vst.msk [vmem:[#allocation3 + $0x30] sm:$0xff] %vm1172, %v1137
        %1180 = vst.msk [vmem:[#allocation3 + $0x38] sm:$0xff] %vm1172, %v1139
        %1181 = vst.msk [vmem:[#allocation3 + $0x40] sm:$0xff] %vm1172, %v1141
        %1182 = vst.msk [vmem:[#allocation3 + $0x48] sm:$0xff] %vm1172, %v1143
        %1183 = vst.msk [vmem:[#allocation3 + $0x50] sm:$0xff] %vm1172, %v1145
        %1184 = vst.msk [vmem:[#allocation3 + $0x58] sm:$0xff] %vm1172, %v1147
        %1185 = vst.msk [vmem:[#allocation3 + $0x60] sm:$0xff] %vm1172, %v1149
        %1186 = vst.msk [vmem:[#allocation3 + $0x68] sm:$0xff] %vm1172, %v1151
        %1187 = vst.msk [vmem:[#allocation3 + $0x70] sm:$0xff] %vm1172, %v1153
        %1188 = vst.msk [vmem:[#allocation3 + $0x78] sm:$0xff] %vm1172, %v1155
        %v1189 = vld [vmem:[%s396] sm:$0xff]
        %v1190 = vld [vmem:[%s396 + $0x8] sm:$0xff]
        %v1191 = vld [vmem:[%s396 + $0x18] sm:$0xff]
        %v1192 = vld [vmem:[%s396 + $0x20] sm:$0xff]
        %v1193 = vld [vmem:[%s396 + $0x30] sm:$0xff]
        %v1194 = vld [vmem:[%s396 + $0x38] sm:$0xff]
        %v1195 = vld [vmem:[%s396 + $0x48] sm:$0xff]
        %v1196 = vld [vmem:[%s396 + $0x50] sm:$0xff]
        %v1197 = vld [vmem:[%s396 + $0x60] sm:$0xff]
        %v1198 = vld [vmem:[%s396 + $0x68] sm:$0xff]
        %v1199 = vld [vmem:[%s396 + $0x78] sm:$0xff]
        %v1200 = vld [vmem:[%s396 + $0x80] sm:$0xff]
        %v1201 = vld [vmem:[%s396 + $0x90] sm:$0xff]
        %v1202 = vld [vmem:[%s396 + $0x98] sm:$0xff]
        %v1203 = vld [vmem:[%s396 + $0xa8] sm:$0xff]
        %v1204 = vld [vmem:[%s396 + $0xb0] sm:$0xff]
        %v1205 = vld [vmem:[%s396 + $0xc0] sm:$0xff]
        %v1206 = vld [vmem:[%s396 + $0xc8] sm:$0xff]
        %v1207 = vld [vmem:[%s396 + $0xd8] sm:$0xff]
        %v1208 = vld [vmem:[%s396 + $0xe0] sm:$0xff]
        %v1209 = vld [vmem:[%s396 + $0xf0] sm:$0xff]
        %v1210 = vld [vmem:[%s396 + $0xf8] sm:$0xff]
        %v1211 = vld [vmem:[%s396 + $0x108] sm:$0xff]
        %v1212 = vld [vmem:[%s396 + $0x110] sm:$0xff]
        %v1213 = vld [vmem:[%s396 + $0x120] sm:$0xff]
        %v1214 = vld [vmem:[%s396 + $0x128] sm:$0xff]
        %v1215 = vld [vmem:[%s396 + $0x138] sm:$0xff]
        %v1216 = vld [vmem:[%s396 + $0x140] sm:$0xff]
        %v1217 = vld [vmem:[%s396 + $0x150] sm:$0xff]
        %v1218 = vld [vmem:[%s396 + $0x158] sm:$0xff]
        %v1219 = vld [vmem:[%s396 + $0x168] sm:$0xff]
        %v1220 = vld [vmem:[%s396 + $0x170] sm:$0xff]
        %v1221 = vpack.c.bf16 %v1190, %v1189
        %v1222 = vpack.c.bf16 %v1192, %v1191
        %v1223 = vpack.c.bf16 %v1194, %v1193
        %v1224 = vpack.c.bf16 %v1196, %v1195
        %v1225 = vpack.c.bf16 %v1198, %v1197
        %v1226 = vpack.c.bf16 %v1200, %v1199
        %v1227 = vpack.c.bf16 %v1202, %v1201
        %v1228 = vpack.c.bf16 %v1204, %v1203
        %v1229 = vpack.c.bf16 %v1206, %v1205
        %v1230 = vpack.c.bf16 %v1208, %v1207
        %v1231 = vpack.c.bf16 %v1210, %v1209
        %v1232 = vpack.c.bf16 %v1212, %v1211
        %v1233 = vpack.c.bf16 %v1214, %v1213
        %v1234 = vpack.c.bf16 %v1216, %v1215
        %v1235 = vpack.c.bf16 %v1218, %v1217
        %v1236 = vpack.c.bf16 %v1220, %v1219
        %1253 = vrot.lane.b32.xlu0 %v1221, 24
        %v1254 = vpop.permute.xlu0 %1253
        %1255 = vrot.lane.b32.xlu0 %v1222, 24
        %v1256 = vpop.permute.xlu0 %1255
        %1257 = vrot.lane.b32.xlu0 %v1223, 24
        %v1258 = vpop.permute.xlu0 %1257
        %1259 = vrot.lane.b32.xlu0 %v1224, 24
        %v1260 = vpop.permute.xlu0 %1259
        %1261 = vrot.lane.b32.xlu0 %v1225, 24
        %v1262 = vpop.permute.xlu0 %1261
        %1263 = vrot.lane.b32.xlu0 %v1226, 24
        %v1264 = vpop.permute.xlu0 %1263
        %1265 = vrot.lane.b32.xlu0 %v1227, 24
        %v1266 = vpop.permute.xlu0 %1265
        %1267 = vrot.lane.b32.xlu0 %v1228, 24
        %v1268 = vpop.permute.xlu0 %1267
        %1269 = vrot.lane.b32.xlu0 %v1229, 24
        %v1270 = vpop.permute.xlu0 %1269
        %1271 = vrot.lane.b32.xlu0 %v1230, 24
        %v1272 = vpop.permute.xlu0 %1271
        %1273 = vrot.lane.b32.xlu0 %v1231, 24
        %v1274 = vpop.permute.xlu0 %1273
        %1275 = vrot.lane.b32.xlu0 %v1232, 24
        %v1276 = vpop.permute.xlu0 %1275
        %1277 = vrot.lane.b32.xlu0 %v1233, 24
        %v1278 = vpop.permute.xlu0 %1277
        %1279 = vrot.lane.b32.xlu0 %v1234, 24
        %v1280 = vpop.permute.xlu0 %1279
        %1281 = vrot.lane.b32.xlu0 %v1235, 24
        %v1282 = vpop.permute.xlu0 %1281
        %1283 = vrot.lane.b32.xlu0 %v1236, 24
        %v1284 = vpop.permute.xlu0 %1283
        %vm1301 = vcmask 228544
        %1302 = vst.msk [vmem:[#allocation3] sm:$0xff] %vm1301, %v1254
        %1303 = vst.msk [vmem:[#allocation3 + $0x8] sm:$0xff] %vm1301, %v1256
        %1304 = vst.msk [vmem:[#allocation3 + $0x10] sm:$0xff] %vm1301, %v1258
        %1305 = vst.msk [vmem:[#allocation3 + $0x18] sm:$0xff] %vm1301, %v1260
        %1306 = vst.msk [vmem:[#allocation3 + $0x20] sm:$0xff] %vm1301, %v1262
        %1307 = vst.msk [vmem:[#allocation3 + $0x28] sm:$0xff] %vm1301, %v1264
        %1308 = vst.msk [vmem:[#allocation3 + $0x30] sm:$0xff] %vm1301, %v1266
        %1309 = vst.msk [vmem:[#allocation3 + $0x38] sm:$0xff] %vm1301, %v1268
        %1310 = vst.msk [vmem:[#allocation3 + $0x40] sm:$0xff] %vm1301, %v1270
        %1311 = vst.msk [vmem:[#allocation3 + $0x48] sm:$0xff] %vm1301, %v1272
        %1312 = vst.msk [vmem:[#allocation3 + $0x50] sm:$0xff] %vm1301, %v1274
        %1313 = vst.msk [vmem:[#allocation3 + $0x58] sm:$0xff] %vm1301, %v1276
        %1314 = vst.msk [vmem:[#allocation3 + $0x60] sm:$0xff] %vm1301, %v1278
        %1315 = vst.msk [vmem:[#allocation3 + $0x68] sm:$0xff] %vm1301, %v1280
        %1316 = vst.msk [vmem:[#allocation3 + $0x70] sm:$0xff] %vm1301, %v1282
        %1317 = vst.msk [vmem:[#allocation3 + $0x78] sm:$0xff] %vm1301, %v1284
        %v1318 = vld [vmem:[%s396 + $0x1] sm:$0xff]
        %v1319 = vld [vmem:[%s396 + $0x9] sm:$0xff]
        %v1320 = vld [vmem:[%s396 + $0x19] sm:$0xff]
        %v1321 = vld [vmem:[%s396 + $0x21] sm:$0xff]
        %v1322 = vld [vmem:[%s396 + $0x31] sm:$0xff]
        %v1323 = vld [vmem:[%s396 + $0x39] sm:$0xff]
        %v1324 = vld [vmem:[%s396 + $0x49] sm:$0xff]
        %v1325 = vld [vmem:[%s396 + $0x51] sm:$0xff]
        %v1326 = vld [vmem:[%s396 + $0x61] sm:$0xff]
        %v1327 = vld [vmem:[%s396 + $0x69] sm:$0xff]
        %v1328 = vld [vmem:[%s396 + $0x79] sm:$0xff]
        %v1329 = vld [vmem:[%s396 + $0x81] sm:$0xff]
        %v1330 = vld [vmem:[%s396 + $0x91] sm:$0xff]
        %v1331 = vld [vmem:[%s396 + $0x99] sm:$0xff]
        %v1332 = vld [vmem:[%s396 + $0xa9] sm:$0xff]
        %v1333 = vld [vmem:[%s396 + $0xb1] sm:$0xff]
        %v1334 = vld [vmem:[%s396 + $0xc1] sm:$0xff]
        %v1335 = vld [vmem:[%s396 + $0xc9] sm:$0xff]
        %v1336 = vld [vmem:[%s396 + $0xd9] sm:$0xff]
        %v1337 = vld [vmem:[%s396 + $0xe1] sm:$0xff]
        %v1338 = vld [vmem:[%s396 + $0xf1] sm:$0xff]
        %v1339 = vld [vmem:[%s396 + $0xf9] sm:$0xff]
        %v1340 = vld [vmem:[%s396 + $0x109] sm:$0xff]
        %v1341 = vld [vmem:[%s396 + $0x111] sm:$0xff]
        %v1342 = vld [vmem:[%s396 + $0x121] sm:$0xff]
        %v1343 = vld [vmem:[%s396 + $0x129] sm:$0xff]
        %v1344 = vld [vmem:[%s396 + $0x139] sm:$0xff]
        %v1345 = vld [vmem:[%s396 + $0x141] sm:$0xff]
        %v1346 = vld [vmem:[%s396 + $0x151] sm:$0xff]
        %v1347 = vld [vmem:[%s396 + $0x159] sm:$0xff]
        %v1348 = vld [vmem:[%s396 + $0x169] sm:$0xff]
        %v1349 = vld [vmem:[%s396 + $0x171] sm:$0xff]
        %v1350 = vpack.c.bf16 %v1319, %v1318
        %v1351 = vpack.c.bf16 %v1321, %v1320
        %v1352 = vpack.c.bf16 %v1323, %v1322
        %v1353 = vpack.c.bf16 %v1325, %v1324
        %v1354 = vpack.c.bf16 %v1327, %v1326
        %v1355 = vpack.c.bf16 %v1329, %v1328
        %v1356 = vpack.c.bf16 %v1331, %v1330
        %v1357 = vpack.c.bf16 %v1333, %v1332
        %v1358 = vpack.c.bf16 %v1335, %v1334
        %v1359 = vpack.c.bf16 %v1337, %v1336
        %v1360 = vpack.c.bf16 %v1339, %v1338
        %v1361 = vpack.c.bf16 %v1341, %v1340
        %v1362 = vpack.c.bf16 %v1343, %v1342
        %v1363 = vpack.c.bf16 %v1345, %v1344
        %v1364 = vpack.c.bf16 %v1347, %v1346
        %v1365 = vpack.c.bf16 %v1349, %v1348
        %1382 = vrot.lane.b32.xlu0 %v1350, 28
        %v1383 = vpop.permute.xlu0 %1382
        %1384 = vrot.lane.b32.xlu0 %v1351, 28
        %v1385 = vpop.permute.xlu0 %1384
        %1386 = vrot.lane.b32.xlu0 %v1352, 28
        %v1387 = vpop.permute.xlu0 %1386
        %1388 = vrot.lane.b32.xlu0 %v1353, 28
        %v1389 = vpop.permute.xlu0 %1388
        %1390 = vrot.lane.b32.xlu0 %v1354, 28
        %v1391 = vpop.permute.xlu0 %1390
        %1392 = vrot.lane.b32.xlu0 %v1355, 28
        %v1393 = vpop.permute.xlu0 %1392
        %1394 = vrot.lane.b32.xlu0 %v1356, 28
        %v1395 = vpop.permute.xlu0 %1394
        %1396 = vrot.lane.b32.xlu0 %v1357, 28
        %v1397 = vpop.permute.xlu0 %1396
        %1398 = vrot.lane.b32.xlu0 %v1358, 28
        %v1399 = vpop.permute.xlu0 %1398
        %1400 = vrot.lane.b32.xlu0 %v1359, 28
        %v1401 = vpop.permute.xlu0 %1400
        %1402 = vrot.lane.b32.xlu0 %v1360, 28
        %v1403 = vpop.permute.xlu0 %1402
        %1404 = vrot.lane.b32.xlu0 %v1361, 28
        %v1405 = vpop.permute.xlu0 %1404
        %1406 = vrot.lane.b32.xlu0 %v1362, 28
        %v1407 = vpop.permute.xlu0 %1406
        %1408 = vrot.lane.b32.xlu0 %v1363, 28
        %v1409 = vpop.permute.xlu0 %1408
        %1410 = vrot.lane.b32.xlu0 %v1364, 28
        %v1411 = vpop.permute.xlu0 %1410
        %1412 = vrot.lane.b32.xlu0 %v1365, 28
        %v1413 = vpop.permute.xlu0 %1412
        %vm1430 = vcmask 261344
        %1431 = vst.msk [vmem:[#allocation3] sm:$0xff] %vm1430, %v1383
        %1432 = vst.msk [vmem:[#allocation3 + $0x8] sm:$0xff] %vm1430, %v1385
        %1433 = vst.msk [vmem:[#allocation3 + $0x10] sm:$0xff] %vm1430, %v1387
        %1434 = vst.msk [vmem:[#allocation3 + $0x18] sm:$0xff] %vm1430, %v1389
        %1435 = vst.msk [vmem:[#allocation3 + $0x20] sm:$0xff] %vm1430, %v1391
        %1436 = vst.msk [vmem:[#allocation3 + $0x28] sm:$0xff] %vm1430, %v1393
        %1437 = vst.msk [vmem:[#allocation3 + $0x30] sm:$0xff] %vm1430, %v1395
        %1438 = vst.msk [vmem:[#allocation3 + $0x38] sm:$0xff] %vm1430, %v1397
        %1439 = vst.msk [vmem:[#allocation3 + $0x40] sm:$0xff] %vm1430, %v1399
        %1440 = vst.msk [vmem:[#allocation3 + $0x48] sm:$0xff] %vm1430, %v1401
        %1441 = vst.msk [vmem:[#allocation3 + $0x50] sm:$0xff] %vm1430, %v1403
        %1442 = vst.msk [vmem:[#allocation3 + $0x58] sm:$0xff] %vm1430, %v1405
        %1443 = vst.msk [vmem:[#allocation3 + $0x60] sm:$0xff] %vm1430, %v1407
        %1444 = vst.msk [vmem:[#allocation3 + $0x68] sm:$0xff] %vm1430, %v1409
        %1445 = vst.msk [vmem:[#allocation3 + $0x70] sm:$0xff] %vm1430, %v1411
        %1446 = vst.msk [vmem:[#allocation3 + $0x78] sm:$0xff] %vm1430, %v1413
        %v1447 = vld [vmem:[%s396 + $0x2] sm:$0xff]
        %v1448 = vld [vmem:[%s396 + $0xa] sm:$0xff]
        %v1449 = vld [vmem:[%s396 + $0x1a] sm:$0xff]
        %v1450 = vld [vmem:[%s396 + $0x22] sm:$0xff]
        %v1451 = vld [vmem:[%s396 + $0x32] sm:$0xff]
        %v1452 = vld [vmem:[%s396 + $0x3a] sm:$0xff]
        %v1453 = vld [vmem:[%s396 + $0x4a] sm:$0xff]
        %v1454 = vld [vmem:[%s396 + $0x52] sm:$0xff]
        %v1455 = vld [vmem:[%s396 + $0x62] sm:$0xff]
        %v1456 = vld [vmem:[%s396 + $0x6a] sm:$0xff]
        %v1457 = vld [vmem:[%s396 + $0x7a] sm:$0xff]
        %v1458 = vld [vmem:[%s396 + $0x82] sm:$0xff]
        %v1459 = vld [vmem:[%s396 + $0x92] sm:$0xff]
        %v1460 = vld [vmem:[%s396 + $0x9a] sm:$0xff]
        %v1461 = vld [vmem:[%s396 + $0xaa] sm:$0xff]
        %v1462 = vld [vmem:[%s396 + $0xb2] sm:$0xff]
        %v1463 = vld [vmem:[%s396 + $0xc2] sm:$0xff]
        %v1464 = vld [vmem:[%s396 + $0xca] sm:$0xff]
        %v1465 = vld [vmem:[%s396 + $0xda] sm:$0xff]
        %v1466 = vld [vmem:[%s396 + $0xe2] sm:$0xff]
        %v1467 = vld [vmem:[%s396 + $0xf2] sm:$0xff]
        %v1468 = vld [vmem:[%s396 + $0xfa] sm:$0xff]
        %v1469 = vld [vmem:[%s396 + $0x10a] sm:$0xff]
        %v1470 = vld [vmem:[%s396 + $0x112] sm:$0xff]
        %v1471 = vld [vmem:[%s396 + $0x122] sm:$0xff]
        %v1472 = vld [vmem:[%s396 + $0x12a] sm:$0xff]
        %v1473 = vld [vmem:[%s396 + $0x13a] sm:$0xff]
        %v1474 = vld [vmem:[%s396 + $0x142] sm:$0xff]
        %v1475 = vld [vmem:[%s396 + $0x152] sm:$0xff]
        %v1476 = vld [vmem:[%s396 + $0x15a] sm:$0xff]
        %v1477 = vld [vmem:[%s396 + $0x16a] sm:$0xff]
        %v1478 = vld [vmem:[%s396 + $0x172] sm:$0xff]
        %v1479 = vpack.c.bf16 %v1448, %v1447
        %v1480 = vpack.c.bf16 %v1450, %v1449
        %v1481 = vpack.c.bf16 %v1452, %v1451
        %v1482 = vpack.c.bf16 %v1454, %v1453
        %v1483 = vpack.c.bf16 %v1456, %v1455
        %v1484 = vpack.c.bf16 %v1458, %v1457
        %v1485 = vpack.c.bf16 %v1460, %v1459
        %v1486 = vpack.c.bf16 %v1462, %v1461
        %v1487 = vpack.c.bf16 %v1464, %v1463
        %v1488 = vpack.c.bf16 %v1466, %v1465
        %v1489 = vpack.c.bf16 %v1468, %v1467
        %v1490 = vpack.c.bf16 %v1470, %v1469
        %v1491 = vpack.c.bf16 %v1472, %v1471
        %v1492 = vpack.c.bf16 %v1474, %v1473
        %v1493 = vpack.c.bf16 %v1476, %v1475
        %v1494 = vpack.c.bf16 %v1478, %v1477
        %1511 = vrot.lane.b32.xlu0 %v1479, 32
        %v1512 = vpop.permute.xlu0 %1511
        %1513 = vrot.lane.b32.xlu0 %v1480, 32
        %v1514 = vpop.permute.xlu0 %1513
        %1515 = vrot.lane.b32.xlu0 %v1481, 32
        %v1516 = vpop.permute.xlu0 %1515
        %1517 = vrot.lane.b32.xlu0 %v1482, 32
        %v1518 = vpop.permute.xlu0 %1517
        %1519 = vrot.lane.b32.xlu0 %v1483, 32
        %v1520 = vpop.permute.xlu0 %1519
        %1521 = vrot.lane.b32.xlu0 %v1484, 32
        %v1522 = vpop.permute.xlu0 %1521
        %1523 = vrot.lane.b32.xlu0 %v1485, 32
        %v1524 = vpop.permute.xlu0 %1523
        %1525 = vrot.lane.b32.xlu0 %v1486, 32
        %v1526 = vpop.permute.xlu0 %1525
        %1527 = vrot.lane.b32.xlu0 %v1487, 32
        %v1528 = vpop.permute.xlu0 %1527
        %1529 = vrot.lane.b32.xlu0 %v1488, 32
        %v1530 = vpop.permute.xlu0 %1529
        %1531 = vrot.lane.b32.xlu0 %v1489, 32
        %v1532 = vpop.permute.xlu0 %1531
        %1533 = vrot.lane.b32.xlu0 %v1490, 32
        %v1534 = vpop.permute.xlu0 %1533
        %1535 = vrot.lane.b32.xlu0 %v1491, 32
        %v1536 = vpop.permute.xlu0 %1535
        %1537 = vrot.lane.b32.xlu0 %v1492, 32
        %v1538 = vpop.permute.xlu0 %1537
        %1539 = vrot.lane.b32.xlu0 %v1493, 32
        %v1540 = vpop.permute.xlu0 %1539
        %1541 = vrot.lane.b32.xlu0 %v1494, 32
        %v1542 = vpop.permute.xlu0 %1541
        %vm1559 = vcmask 294144
        %1560 = vst.msk [vmem:[#allocation3] sm:$0xff] %vm1559, %v1512
        %1561 = vst.msk [vmem:[#allocation3 + $0x8] sm:$0xff] %vm1559, %v1514
        %1562 = vst.msk [vmem:[#allocation3 + $0x10] sm:$0xff] %vm1559, %v1516
        %1563 = vst.msk [vmem:[#allocation3 + $0x18] sm:$0xff] %vm1559, %v1518
        %1564 = vst.msk [vmem:[#allocation3 + $0x20] sm:$0xff] %vm1559, %v1520
        %1565 = vst.msk [vmem:[#allocation3 + $0x28] sm:$0xff] %vm1559, %v1522
        %1566 = vst.msk [vmem:[#allocation3 + $0x30] sm:$0xff] %vm1559, %v1524
        %1567 = vst.msk [vmem:[#allocation3 + $0x38] sm:$0xff] %vm1559, %v1526
        %1568 = vst.msk [vmem:[#allocation3 + $0x40] sm:$0xff] %vm1559, %v1528
        %1569 = vst.msk [vmem:[#allocation3 + $0x48] sm:$0xff] %vm1559, %v1530
        %1570 = vst.msk [vmem:[#allocation3 + $0x50] sm:$0xff] %vm1559, %v1532
        %1571 = vst.msk [vmem:[#allocation3 + $0x58] sm:$0xff] %vm1559, %v1534
        %1572 = vst.msk [vmem:[#allocation3 + $0x60] sm:$0xff] %vm1559, %v1536
        %1573 = vst.msk [vmem:[#allocation3 + $0x68] sm:$0xff] %vm1559, %v1538
        %1574 = vst.msk [vmem:[#allocation3 + $0x70] sm:$0xff] %vm1559, %v1540
        %1575 = vst.msk [vmem:[#allocation3 + $0x78] sm:$0xff] %vm1559, %v1542
        %v1576 = vld [vmem:[#allocation3] sm:$0xff]
        %v1577 = vld [vmem:[#allocation3 + $0x8] sm:$0xff]
        %v1578 = vld [vmem:[#allocation3 + $0x10] sm:$0xff]
        %v1579 = vld [vmem:[#allocation3 + $0x18] sm:$0xff]
        %v1580 = vld [vmem:[#allocation3 + $0x20] sm:$0xff]
        %v1581 = vld [vmem:[#allocation3 + $0x28] sm:$0xff]
        %v1582 = vld [vmem:[#allocation3 + $0x30] sm:$0xff]
        %v1583 = vld [vmem:[#allocation3 + $0x38] sm:$0xff]
        %v1584 = vld [vmem:[#allocation3 + $0x40] sm:$0xff]
        %v1585 = vld [vmem:[#allocation3 + $0x48] sm:$0xff]
        %v1586 = vld [vmem:[#allocation3 + $0x50] sm:$0xff]
        %v1587 = vld [vmem:[#allocation3 + $0x58] sm:$0xff]
        %v1588 = vld [vmem:[#allocation3 + $0x60] sm:$0xff]
        %v1589 = vld [vmem:[#allocation3 + $0x68] sm:$0xff]
        %v1590 = vld [vmem:[#allocation3 + $0x70] sm:$0xff]
        %v1591 = vld [vmem:[#allocation3 + $0x78] sm:$0xff]
        %v1592 = vld [vmem:[#allocation8] sm:$0xf]
        %v1593 = vld [vmem:[#allocation8 + $0x4] sm:$0xf]
        %v1594 = vld [vmem:[#allocation8 + $0x8] sm:$0xf]
        %v1595 = vld [vmem:[#allocation8 + $0xc] sm:$0xf]
        %v1596 = vld [vmem:[#allocation8 + $0x10] sm:$0x3]
        %v1597 = vld [vmem:[#allocation13] sm:$0x1]
        %v1598 = vlaneseq
        %v1599 = vshrl.u32 %v1598, 7
        %v1600 = vsub.s32 0, %v1599
        %v1601 = vrot.slane %v1597, %v1600
        %v1607 = vunpack.c.l.b16 %v1592
        %v1608 = vunpack.c.l.b16 %v1593
        %v1609 = vunpack.c.l.b16 %v1594
        %v1610 = vunpack.c.l.b16 %v1595
        %v1611 = vunpack.c.l.b16 %v1596
        %v1612 = vpack.c.b16 %v1608, %v1607
        %v1613 = vpack.c.b16 %v1610, %v1609
        %v1614 = vpack.c.b16 %v1611, %v1611
        %vm1617 = vcmask 293888
        %v1619 = vsel %vm1617, %v1576, 0
        %v1622 = vsel %vm1617, %v1577, 0
        %v1625 = vsel %vm1617, %v1578, 0
        %v1628 = vsel %vm1617, %v1579, 0
        %v1631 = vsel %vm1617, %v1580, 0
        %v1634 = vsel %vm1617, %v1581, 0
        %v1637 = vsel %vm1617, %v1582, 0
        %v1640 = vsel %vm1617, %v1583, 0
        %v1643 = vsel %vm1617, %v1584, 0
        %v1646 = vsel %vm1617, %v1585, 0
        %v1649 = vsel %vm1617, %v1586, 0
        %v1652 = vsel %vm1617, %v1587, 0
        %v1655 = vsel %vm1617, %v1588, 0
        %v1658 = vsel %vm1617, %v1589, 0
        %v1661 = vsel %vm1617, %v1590, 0
        %v1664 = vsel %vm1617, %v1591, 0
        %vm1666 = vcmask 1041408
        %v1668 = vsel %vm1666, %v1614, 0
        %1670 = vmatprep.subr.bf16.mxu0 0
        %1671 = vmatpush1.bf16.msra.mxu0 %v1612
        %1672 = vmatprep.subr.bf16.mxu0 0
        %1673 = vmatpush1.bf16.msra.mxu0 %v1613
        %1674 = vmatprep.subr.bf16.mxu0 0
        %1675 = vmatpush1.bf16.msra.mxu0 %v1668
        %1676 = vmatprep.subr.bf16.mxu0 0
        %1677 = vmatpush1.bf16.msra.mxu0 0
        %1678 = vmatprep.subr.bf16.mxu0 0
        %1679 = vmatpush1.bf16.msra.mxu0 0
        %1680 = vmatprep.subr.bf16.mxu0 0
        %1681 = vmatpush1.bf16.msra.mxu0 0
        %1682 = vmatprep.subr.bf16.mxu0 0
        %1683 = vmatpush1.bf16.msra.mxu0 0
        %1684 = vmatprep.subr.bf16.mxu0 0
        %1685 = vmatpush1.bf16.msra.mxu0 0
        %1686 = vmatprep.subr.bf16.mxu0 0
        %1687 = vmatpush1.bf16.msra.mxu0 0
        %1688 = vmatprep.subr.bf16.mxu0 0
        %1689 = vmatpush1.bf16.msra.mxu0 0
        %1690 = vmatprep.subr.bf16.mxu0 0
        %1691 = vmatpush1.bf16.msra.mxu0 0
        %1692 = vmatprep.subr.bf16.mxu0 0
        %1693 = vmatpush1.bf16.msra.mxu0 0
        %1694 = vmatprep.subr.bf16.mxu0 0
        %1695 = vmatpush1.bf16.msra.mxu0 0
        %1696 = vmatprep.subr.bf16.mxu0 0
        %1697 = vmatpush1.bf16.msra.mxu0 0
        %1698 = vmatprep.subr.bf16.mxu0 0
        %1699 = vmatpush1.bf16.msra.mxu0 0
        %1700 = vmatprep.subr.bf16.mxu0 0
        %1701 = vmatpush1.bf16.msra.mxu0 0
        %1702 = vmatprep.mubr.bf16.mxu0 0
        %1703 = vmatmul.mubr.bf16.gmra.mrb[0].mxu0 %v1619
        %v1704 = vpop.f32.mrb[0].mxu0
        %v1705 = vadd.f32 %v1601, %v1704
        %v1706 = vpop.f32.mrb[0].mxu0
        %v1707 = vpop.f32.mrb[0].mxu0
        %v1708 = vadd.f32 %v1601, %v1707
        %v1709 = vpop.f32.mrb[0].mxu0
        %1710 = vmatprep.mubr.bf16.mxu0 0
        %1711 = vmatmul.mubr.bf16.gmra.mrb[0].mxu0 %v1622
        %v1712 = vpop.f32.mrb[0].mxu0
        %v1713 = vadd.f32 %v1601, %v1712
        %v1714 = vpop.f32.mrb[0].mxu0
        %v1715 = vpop.f32.mrb[0].mxu0
        %v1716 = vadd.f32 %v1601, %v1715
        %v1717 = vpop.f32.mrb[0].mxu0
        %1718 = vmatprep.mubr.bf16.mxu0 0
        %1719 = vmatmul.mubr.bf16.gmra.mrb[0].mxu0 %v1625
        %v1720 = vpop.f32.mrb[0].mxu0
        %v1721 = vadd.f32 %v1601, %v1720
        %v1722 = vpop.f32.mrb[0].mxu0
        %v1723 = vpop.f32.mrb[0].mxu0
        %v1724 = vadd.f32 %v1601, %v1723
        %v1725 = vpop.f32.mrb[0].mxu0
        %1726 = vmatprep.mubr.bf16.mxu0 0
        %1727 = vmatmul.mubr.bf16.gmra.mrb[0].mxu0 %v1628
        %v1728 = vpop.f32.mrb[0].mxu0
        %v1729 = vadd.f32 %v1601, %v1728
        %v1730 = vpop.f32.mrb[0].mxu0
        %v1731 = vpop.f32.mrb[0].mxu0
        %v1732 = vadd.f32 %v1601, %v1731
        %v1733 = vpop.f32.mrb[0].mxu0
        %1734 = vmatprep.mubr.bf16.mxu0 0
        %1735 = vmatmul.mubr.bf16.gmra.mrb[0].mxu0 %v1631
        %v1736 = vpop.f32.mrb[0].mxu0
        %v1737 = vadd.f32 %v1601, %v1736
        %v1738 = vpop.f32.mrb[0].mxu0
        %v1739 = vpop.f32.mrb[0].mxu0
        %v1740 = vadd.f32 %v1601, %v1739
        %v1741 = vpop.f32.mrb[0].mxu0
        %1742 = vmatprep.mubr.bf16.mxu0 0
        %1743 = vmatmul.mubr.bf16.gmra.mrb[0].mxu0 %v1634
        %v1744 = vpop.f32.mrb[0].mxu0
        %v1745 = vadd.f32 %v1601, %v1744
        %v1746 = vpop.f32.mrb[0].mxu0
        %v1747 = vpop.f32.mrb[0].mxu0
        %v1748 = vadd.f32 %v1601, %v1747
        %v1749 = vpop.f32.mrb[0].mxu0
        %1750 = vmatprep.mubr.bf16.mxu0 0
        %1751 = vmatmul.mubr.bf16.gmra.mrb[0].mxu0 %v1637
        %v1752 = vpop.f32.mrb[0].mxu0
        %v1753 = vadd.f32 %v1601, %v1752
        %v1754 = vpop.f32.mrb[0].mxu0
        %v1755 = vpop.f32.mrb[0].mxu0
        %v1756 = vadd.f32 %v1601, %v1755
        %v1757 = vpop.f32.mrb[0].mxu0
        %1758 = vmatprep.mubr.bf16.mxu0 0
        %1759 = vmatmul.mubr.bf16.gmra.mrb[0].mxu0 %v1640
        %v1760 = vpop.f32.mrb[0].mxu0
        %v1761 = vadd.f32 %v1601, %v1760
        %v1762 = vpop.f32.mrb[0].mxu0
        %v1763 = vpop.f32.mrb[0].mxu0
        %v1764 = vadd.f32 %v1601, %v1763
        %v1765 = vpop.f32.mrb[0].mxu0
        %1766 = vmatprep.mubr.bf16.mxu0 0
        %1767 = vmatmul.mubr.bf16.gmra.mrb[0].mxu0 %v1643
        %v1768 = vpop.f32.mrb[0].mxu0
        %v1769 = vadd.f32 %v1601, %v1768
        %v1770 = vpop.f32.mrb[0].mxu0
        %v1771 = vpop.f32.mrb[0].mxu0
        %v1772 = vadd.f32 %v1601, %v1771
        %v1773 = vpop.f32.mrb[0].mxu0
        %1774 = vmatprep.mubr.bf16.mxu0 0
        %1775 = vmatmul.mubr.bf16.gmra.mrb[0].mxu0 %v1646
        %v1776 = vpop.f32.mrb[0].mxu0
        %v1777 = vadd.f32 %v1601, %v1776
        %v1778 = vpop.f32.mrb[0].mxu0
        %v1779 = vpop.f32.mrb[0].mxu0
        %v1780 = vadd.f32 %v1601, %v1779
        %v1781 = vpop.f32.mrb[0].mxu0
        %1782 = vmatprep.mubr.bf16.mxu0 0
        %1783 = vmatmul.mubr.bf16.gmra.mrb[0].mxu0 %v1649
        %v1784 = vpop.f32.mrb[0].mxu0
        %v1785 = vadd.f32 %v1601, %v1784
        %v1786 = vpop.f32.mrb[0].mxu0
        %v1787 = vpop.f32.mrb[0].mxu0
        %v1788 = vadd.f32 %v1601, %v1787
        %v1789 = vpop.f32.mrb[0].mxu0
        %1790 = vmatprep.mubr.bf16.mxu0 0
        %1791 = vmatmul.mubr.bf16.gmra.mrb[0].mxu0 %v1652
        %v1792 = vpop.f32.mrb[0].mxu0
        %v1793 = vadd.f32 %v1601, %v1792
        %v1794 = vpop.f32.mrb[0].mxu0
        %v1795 = vpop.f32.mrb[0].mxu0
        %v1796 = vadd.f32 %v1601, %v1795
        %v1797 = vpop.f32.mrb[0].mxu0
        %1798 = vmatprep.mubr.bf16.mxu0 0
        %1799 = vmatmul.mubr.bf16.gmra.mrb[0].mxu0 %v1655
        %v1800 = vpop.f32.mrb[0].mxu0
        %v1801 = vadd.f32 %v1601, %v1800
        %v1802 = vpop.f32.mrb[0].mxu0
        %v1803 = vpop.f32.mrb[0].mxu0
        %v1804 = vadd.f32 %v1601, %v1803
        %v1805 = vpop.f32.mrb[0].mxu0
        %1806 = vmatprep.mubr.bf16.mxu0 0
        %1807 = vmatmul.mubr.bf16.gmra.mrb[0].mxu0 %v1658
        %v1808 = vpop.f32.mrb[0].mxu0
        %v1809 = vadd.f32 %v1601, %v1808
        %v1810 = vpop.f32.mrb[0].mxu0
        %v1811 = vpop.f32.mrb[0].mxu0
        %v1812 = vadd.f32 %v1601, %v1811
        %v1813 = vpop.f32.mrb[0].mxu0
        %1814 = vmatprep.mubr.bf16.mxu0 0
        %1815 = vmatmul.mubr.bf16.gmra.mrb[0].mxu0 %v1661
        %v1816 = vpop.f32.mrb[0].mxu0
        %v1817 = vadd.f32 %v1601, %v1816
        %v1818 = vpop.f32.mrb[0].mxu0
        %v1819 = vpop.f32.mrb[0].mxu0
        %v1820 = vadd.f32 %v1601, %v1819
        %v1821 = vpop.f32.mrb[0].mxu0
        %1822 = vmatprep.mubr.bf16.mxu0 0
        %1823 = vmatmul.mubr.bf16.gmra.mrb[0].mxu0 %v1664
        %v1824 = vpop.f32.mrb[0].mxu0
        %v1825 = vadd.f32 %v1601, %v1824
        %v1826 = vpop.f32.mrb[0].mxu0
        %v1827 = vpop.f32.mrb[0].mxu0
        %v1828 = vadd.f32 %v1601, %v1827
        %v1829 = vpop.f32.mrb[0].mxu0
        %1830 = vdwg.mxu0
        %v1831 = vmax.f32 %v1705, 0.0
        %v1832 = vmax.f32 %v1708, 0.0
        %v1833 = vmax.f32 %v1713, 0.0
        %v1834 = vmax.f32 %v1716, 0.0
        %v1835 = vmax.f32 %v1721, 0.0
        %v1836 = vmax.f32 %v1724, 0.0
        %v1837 = vmax.f32 %v1729, 0.0
        %v1838 = vmax.f32 %v1732, 0.0
        %v1839 = vmax.f32 %v1737, 0.0
        %v1840 = vmax.f32 %v1740, 0.0
        %v1841 = vmax.f32 %v1745, 0.0
        %v1842 = vmax.f32 %v1748, 0.0
        %v1843 = vmax.f32 %v1753, 0.0
        %v1844 = vmax.f32 %v1756, 0.0
        %v1845 = vmax.f32 %v1761, 0.0
        %v1846 = vmax.f32 %v1764, 0.0
        %v1847 = vmax.f32 %v1769, 0.0
        %v1848 = vmax.f32 %v1772, 0.0
        %v1849 = vmax.f32 %v1777, 0.0
        %v1850 = vmax.f32 %v1780, 0.0
        %v1851 = vmax.f32 %v1785, 0.0
        %v1852 = vmax.f32 %v1788, 0.0
        %v1853 = vmax.f32 %v1793, 0.0
        %v1854 = vmax.f32 %v1796, 0.0
        %v1855 = vmax.f32 %v1801, 0.0
        %v1856 = vmax.f32 %v1804, 0.0
        %v1857 = vmax.f32 %v1809, 0.0
        %v1858 = vmax.f32 %v1812, 0.0
        %v1859 = vmax.f32 %v1817, 0.0
        %v1860 = vmax.f32 %v1820, 0.0
        %v1861 = vmax.f32 %v1825, 0.0
        %v1862 = vmax.f32 %v1828, 0.0
        %s1863 = scalar_lea.vmem [#allocation4], 24
        %1864 = vst [vmem:[%s1863 + $0x1] sm:$0xff] %v1831
        %1865 = vst [vmem:[%s1863 + $0x9] sm:$0xff] %v1832
        %1866 = vst [vmem:[%s1863 + $0x19] sm:$0xff] %v1833
        %1867 = vst [vmem:[%s1863 + $0x21] sm:$0xff] %v1834
        %1868 = vst [vmem:[%s1863 + $0x31] sm:$0xff] %v1835
        %1869 = vst [vmem:[%s1863 + $0x39] sm:$0xff] %v1836
        %1870 = vst [vmem:[%s1863 + $0x49] sm:$0xff] %v1837
        %1871 = vst [vmem:[%s1863 + $0x51] sm:$0xff] %v1838
        %1872 = vst [vmem:[%s1863 + $0x61] sm:$0xff] %v1839
        %1873 = vst [vmem:[%s1863 + $0x69] sm:$0xff] %v1840
        %1874 = vst [vmem:[%s1863 + $0x79] sm:$0xff] %v1841
        %1875 = vst [vmem:[%s1863 + $0x81] sm:$0xff] %v1842
        %1876 = vst [vmem:[%s1863 + $0x91] sm:$0xff] %v1843
        %1877 = vst [vmem:[%s1863 + $0x99] sm:$0xff] %v1844
        %1878 = vst [vmem:[%s1863 + $0xa9] sm:$0xff] %v1845
        %1879 = vst [vmem:[%s1863 + $0xb1] sm:$0xff] %v1846
        %1880 = vst [vmem:[%s1863 + $0xc1] sm:$0xff] %v1847
        %1881 = vst [vmem:[%s1863 + $0xc9] sm:$0xff] %v1848
        %1882 = vst [vmem:[%s1863 + $0xd9] sm:$0xff] %v1849
        %1883 = vst [vmem:[%s1863 + $0xe1] sm:$0xff] %v1850
        %1884 = vst [vmem:[%s1863 + $0xf1] sm:$0xff] %v1851
        %1885 = vst [vmem:[%s1863 + $0xf9] sm:$0xff] %v1852
        %1886 = vst [vmem:[%s1863 + $0x109] sm:$0xff] %v1853
        %1887 = vst [vmem:[%s1863 + $0x111] sm:$0xff] %v1854
        %1888 = vst [vmem:[%s1863 + $0x121] sm:$0xff] %v1855
        %1889 = vst [vmem:[%s1863 + $0x129] sm:$0xff] %v1856
        %1890 = vst [vmem:[%s1863 + $0x139] sm:$0xff] %v1857
        %1891 = vst [vmem:[%s1863 + $0x141] sm:$0xff] %v1858
        %1892 = vst [vmem:[%s1863 + $0x151] sm:$0xff] %v1859
        %1893 = vst [vmem:[%s1863 + $0x159] sm:$0xff] %v1860
        %1894 = vst [vmem:[%s1863 + $0x169] sm:$0xff] %v1861
        %1895 = vst [vmem:[%s1863 + $0x171] sm:$0xff] %v1862
        %s1896 = scalar_lea.vmem [#allocation4], 48
        %v1897 = vld [vmem:[%s1896 + $0x1] sm:$0xff]
        %v1898 = vld [vmem:[%s1896 + $0x9] sm:$0xff]
        %1899 = vst [vmem:[#allocation4 + $0x1] sm:$0xff] %v1897
        %1900 = vst [vmem:[#allocation4 + $0x9] sm:$0xff] %v1898
        %s1901 = scalar_lea.vmem [#allocation4], 360
        %v1902 = vld [vmem:[%s1901 + $0x1] sm:$0xff]
        %v1903 = vld [vmem:[%s1901 + $0x9] sm:$0xff]
        %s1904 = scalar_lea.vmem [#allocation4], 408
        %1905 = vst [vmem:[%s1904 + $0x1] sm:$0xff] %v1902
        %1906 = vst [vmem:[%s1904 + $0x9] sm:$0xff] %v1903
        %v1907 = vld [vmem:[#allocation4 + $0x2] sm:$0x1]
        %v1908 = vld [vmem:[#allocation4 + $0x1a] sm:$0x1]
        %v1909 = vld [vmem:[#allocation4 + $0x32] sm:$0x1]
        %v1910 = vld [vmem:[#allocation4 + $0x4a] sm:$0x1]
        %v1911 = vld [vmem:[#allocation4 + $0x62] sm:$0x1]
        %v1912 = vld [vmem:[#allocation4 + $0x7a] sm:$0x1]
        %v1913 = vld [vmem:[#allocation4 + $0x92] sm:$0x1]
        %v1914 = vld [vmem:[#allocation4 + $0xaa] sm:$0x1]
        %v1915 = vld [vmem:[#allocation4 + $0xc2] sm:$0x1]
        %v1916 = vld [vmem:[#allocation4 + $0xda] sm:$0x1]
        %v1917 = vld [vmem:[#allocation4 + $0xf2] sm:$0x1]
        %v1918 = vld [vmem:[#allocation4 + $0x10a] sm:$0x1]
        %v1919 = vld [vmem:[#allocation4 + $0x122] sm:$0x1]
        %v1920 = vld [vmem:[#allocation4 + $0x13a] sm:$0x1]
        %v1921 = vld [vmem:[#allocation4 + $0x152] sm:$0x1]
        %v1922 = vld [vmem:[#allocation4 + $0x16a] sm:$0x1]
        %v1923 = vld [vmem:[#allocation4 + $0x182] sm:$0x1]
        %v1924 = vld [vmem:[#allocation4 + $0x19a] sm:$0x1]
        %1925 = vst [vmem:[#allocation4] sm:$0x1] %v1907
        %1926 = vst [vmem:[#allocation4 + $0x18] sm:$0x1] %v1908
        %1927 = vst [vmem:[#allocation4 + $0x30] sm:$0x1] %v1909
        %1928 = vst [vmem:[#allocation4 + $0x48] sm:$0x1] %v1910
        %1929 = vst [vmem:[#allocation4 + $0x60] sm:$0x1] %v1911
        %1930 = vst [vmem:[#allocation4 + $0x78] sm:$0x1] %v1912
        %1931 = vst [vmem:[#allocation4 + $0x90] sm:$0x1] %v1913
        %1932 = vst [vmem:[#allocation4 + $0xa8] sm:$0x1] %v1914
        %1933 = vst [vmem:[#allocation4 + $0xc0] sm:$0x1] %v1915
        %1934 = vst [vmem:[#allocation4 + $0xd8] sm:$0x1] %v1916
        %1935 = vst [vmem:[#allocation4 + $0xf0] sm:$0x1] %v1917
        %1936 = vst [vmem:[#allocation4 + $0x108] sm:$0x1] %v1918
        %1937 = vst [vmem:[#allocation4 + $0x120] sm:$0x1] %v1919
        %1938 = vst [vmem:[#allocation4 + $0x138] sm:$0x1] %v1920
        %1939 = vst [vmem:[#allocation4 + $0x150] sm:$0x1] %v1921
        %1940 = vst [vmem:[#allocation4 + $0x168] sm:$0x1] %v1922
        %1941 = vst [vmem:[#allocation4 + $0x180] sm:$0x1] %v1923
        %1942 = vst [vmem:[#allocation4 + $0x198] sm:$0x1] %v1924
        %v1943 = vld [vmem:[#allocation4 + $0xf] sm:$0x1]
        %v1944 = vld [vmem:[#allocation4 + $0x27] sm:$0x1]
        %v1945 = vld [vmem:[#allocation4 + $0x3f] sm:$0x1]
        %v1946 = vld [vmem:[#allocation4 + $0x57] sm:$0x1]
        %v1947 = vld [vmem:[#allocation4 + $0x6f] sm:$0x1]
        %v1948 = vld [vmem:[#allocation4 + $0x87] sm:$0x1]
        %v1949 = vld [vmem:[#allocation4 + $0x9f] sm:$0x1]
        %v1950 = vld [vmem:[#allocation4 + $0xb7] sm:$0x1]
        %v1951 = vld [vmem:[#allocation4 + $0xcf] sm:$0x1]
        %v1952 = vld [vmem:[#allocation4 + $0xe7] sm:$0x1]
        %v1953 = vld [vmem:[#allocation4 + $0xff] sm:$0x1]
        %v1954 = vld [vmem:[#allocation4 + $0x117] sm:$0x1]
        %v1955 = vld [vmem:[#allocation4 + $0x12f] sm:$0x1]
        %v1956 = vld [vmem:[#allocation4 + $0x147] sm:$0x1]
        %v1957 = vld [vmem:[#allocation4 + $0x15f] sm:$0x1]
        %v1958 = vld [vmem:[#allocation4 + $0x177] sm:$0x1]
        %v1959 = vld [vmem:[#allocation4 + $0x18f] sm:$0x1]
        %v1960 = vld [vmem:[#allocation4 + $0x1a7] sm:$0x1]
        %1961 = vst [vmem:[#allocation4 + $0x11] sm:$0x1] %v1943
        %1962 = vst [vmem:[#allocation4 + $0x29] sm:$0x1] %v1944
        %1963 = vst [vmem:[#allocation4 + $0x41] sm:$0x1] %v1945
        %1964 = vst [vmem:[#allocation4 + $0x59] sm:$0x1] %v1946
        %1965 = vst [vmem:[#allocation4 + $0x71] sm:$0x1] %v1947
        %1966 = vst [vmem:[#allocation4 + $0x89] sm:$0x1] %v1948
        %1967 = vst [vmem:[#allocation4 + $0xa1] sm:$0x1] %v1949
        %1968 = vst [vmem:[#allocation4 + $0xb9] sm:$0x1] %v1950
        %1969 = vst [vmem:[#allocation4 + $0xd1] sm:$0x1] %v1951
        %1970 = vst [vmem:[#allocation4 + $0xe9] sm:$0x1] %v1952
        %1971 = vst [vmem:[#allocation4 + $0x101] sm:$0x1] %v1953
        %1972 = vst [vmem:[#allocation4 + $0x119] sm:$0x1] %v1954
        %1973 = vst [vmem:[#allocation4 + $0x131] sm:$0x1] %v1955
        %1974 = vst [vmem:[#allocation4 + $0x149] sm:$0x1] %v1956
        %1975 = vst [vmem:[#allocation4 + $0x161] sm:$0x1] %v1957
        %1976 = vst [vmem:[#allocation4 + $0x179] sm:$0x1] %v1958
        %1977 = vst [vmem:[#allocation4 + $0x191] sm:$0x1] %v1959
        %1978 = vst [vmem:[#allocation4 + $0x1a9] sm:$0x1] %v1960
        %v1979 = vld [vmem:[#allocation13 + $0x1] sm:$0x1]
        %v1980 = vlaneseq
        %v1981 = vshrl.u32 %v1980, 7
        %v1982 = vsub.s32 0, %v1981
        %v1983 = vrot.slane %v1979, %v1982
        %v1984 = vld [vmem:[#allocation4] ss:$2 sm:$0xff]
        %s1985 = scalar_lea.vmem [#allocation4], 48
        %v1986 = vld [vmem:[%s1985] ss:$2 sm:$0xff]
        %s1987 = scalar_lea.vmem [#allocation4], 96
        %v1988 = vld [vmem:[%s1987] ss:$2 sm:$0xff]
        %s1989 = scalar_lea.vmem [#allocation4], 144
        %v1990 = vld [vmem:[%s1989] ss:$2 sm:$0xff]
        %s1991 = scalar_lea.vmem [#allocation4], 192
        %v1992 = vld [vmem:[%s1991] ss:$2 sm:$0xff]
        %s1993 = scalar_lea.vmem [#allocation4], 240
        %v1994 = vld [vmem:[%s1993] ss:$2 sm:$0xff]
        %s1995 = scalar_lea.vmem [#allocation4], 288
        %v1996 = vld [vmem:[%s1995] ss:$2 sm:$0xff]
        %s1997 = scalar_lea.vmem [#allocation4], 336
        %v1998 = vld [vmem:[%s1997] ss:$2 sm:$0xff]
        %v1999 = vpack.c.bf16 %v1986, %v1984
        %v2000 = vpack.c.bf16 %v1990, %v1988
        %v2001 = vpack.c.bf16 %v1994, %v1992
        %v2002 = vpack.c.bf16 %v1998, %v1996
        %v2003 = vld [vmem:[#allocation10] sm:$0xf]
        %v2004 = vld [vmem:[#allocation10 + $0x4] sm:$0xf]
        %v2005 = vld [vmem:[#allocation10 + $0x8] sm:$0xf]
        %v2006 = vld [vmem:[#allocation10 + $0xc] sm:$0xf]
        %v2007 = vld [vmem:[#allocation10 + $0x10] sm:$0xf]
        %v2008 = vld [vmem:[#allocation10 + $0x14] sm:$0xf]
        %v2009 = vld [vmem:[#allocation10 + $0x18] sm:$0xf]
        %v2010 = vld [vmem:[#allocation10 + $0x1c] sm:$0xf]
        %v2011 = vld [vmem:[#allocation10 + $0x20] sm:$0xf]
        %v2012 = vld [vmem:[#allocation10 + $0x24] sm:$0xf]
        %v2013 = vld [vmem:[#allocation10 + $0x28] sm:$0xf]
        %v2014 = vld [vmem:[#allocation10 + $0x2c] sm:$0xf]
        %v2015 = vld [vmem:[#allocation10 + $0x30] sm:$0xf]
        %v2016 = vld [vmem:[#allocation10 + $0x34] sm:$0xf]
        %v2017 = vld [vmem:[#allocation10 + $0x38] sm:$0xf]
        %v2018 = vld [vmem:[#allocation10 + $0x3c] sm:$0xf]
        %v2035 = vunpack.c.l.b16 %v2003
        %v2036 = vunpack.c.l.b16 %v2004
        %v2037 = vunpack.c.l.b16 %v2005
        %v2038 = vunpack.c.l.b16 %v2006
        %v2039 = vunpack.c.l.b16 %v2007
        %v2040 = vunpack.c.l.b16 %v2008
        %v2041 = vunpack.c.l.b16 %v2009
        %v2042 = vunpack.c.l.b16 %v2010
        %v2043 = vunpack.c.l.b16 %v2011
        %v2044 = vunpack.c.l.b16 %v2012
        %v2045 = vunpack.c.l.b16 %v2013
        %v2046 = vunpack.c.l.b16 %v2014
        %v2047 = vunpack.c.l.b16 %v2015
        %v2048 = vunpack.c.l.b16 %v2016
        %v2049 = vunpack.c.l.b16 %v2017
        %v2050 = vunpack.c.l.b16 %v2018
        %v2051 = vpack.c.b16 %v2036, %v2035
        %v2052 = vpack.c.b16 %v2038, %v2037
        %v2053 = vpack.c.b16 %v2040, %v2039
        %v2054 = vpack.c.b16 %v2042, %v2041
        %v2055 = vpack.c.b16 %v2044, %v2043
        %v2056 = vpack.c.b16 %v2046, %v2045
        %v2057 = vpack.c.b16 %v2048, %v2047
        %v2058 = vpack.c.b16 %v2050, %v2049
        %2067 = vmatprep.subr.bf16.mxu0 0
        %2068 = vmatpush1.bf16.msra.mxu0 %v2051
        %2069 = vmatprep.subr.bf16.mxu0 0
        %2070 = vmatpush1.bf16.msra.mxu0 %v2052
        %2071 = vmatprep.subr.bf16.mxu0 0
        %2072 = vmatpush1.bf16.msra.mxu0 %v2053
        %2073 = vmatprep.subr.bf16.mxu0 0
        %2074 = vmatpush1.bf16.msra.mxu0 %v2054
        %2075 = vmatprep.subr.bf16.mxu0 0
        %2076 = vmatpush1.bf16.msra.mxu0 %v2055
        %2077 = vmatprep.subr.bf16.mxu0 0
        %2078 = vmatpush1.bf16.msra.mxu0 %v2056
        %2079 = vmatprep.subr.bf16.mxu0 0
        %2080 = vmatpush1.bf16.msra.mxu0 %v2057
        %2081 = vmatprep.subr.bf16.mxu0 0
        %2082 = vmatpush1.bf16.msra.mxu0 %v2058
        %2083 = vmatprep.subr.bf16.mxu0 0
        %2084 = vmatpush1.bf16.msra.mxu0 0
        %2085 = vmatprep.subr.bf16.mxu0 0
        %2086 = vmatpush1.bf16.msra.mxu0 0
        %2087 = vmatprep.subr.bf16.mxu0 0
        %2088 = vmatpush1.bf16.msra.mxu0 0
        %2089 = vmatprep.subr.bf16.mxu0 0
        %2090 = vmatpush1.bf16.msra.mxu0 0
        %2091 = vmatprep.subr.bf16.mxu0 0
        %2092 = vmatpush1.bf16.msra.mxu0 0
        %2093 = vmatprep.subr.bf16.mxu0 0
        %2094 = vmatpush1.bf16.msra.mxu0 0
        %2095 = vmatprep.subr.bf16.mxu0 0
        %2096 = vmatpush1.bf16.msra.mxu0 0
        %2097 = vmatprep.subr.bf16.mxu0 0
        %2098 = vmatpush1.bf16.msra.mxu0 0
        %2099 = vmatprep.mubr.bf16.mxu0 0
        %2100 = vmatmul.mubr.bf16.gmra.mrb[0].mxu0 %v1999
        %v2101 = vpop.f32.mrb[0].mxu0
        %v2102 = vadd.f32 0.0, %v2101
        %v2103 = vpop.f32.mrb[0].mxu0
        %v2104 = vpop.f32.mrb[0].mxu0
        %v2105 = vadd.f32 0.0, %v2104
        %v2106 = vpop.f32.mrb[0].mxu0
        %2107 = vmatprep.mubr.bf16.mxu0 0
        %2108 = vmatmul.mubr.bf16.gmra.mrb[0].mxu0 %v2000
        %v2109 = vpop.f32.mrb[0].mxu0
        %v2110 = vadd.f32 0.0, %v2109
        %v2111 = vpop.f32.mrb[0].mxu0
        %v2112 = vpop.f32.mrb[0].mxu0
        %v2113 = vadd.f32 0.0, %v2112
        %v2114 = vpop.f32.mrb[0].mxu0
        %2115 = vmatprep.mubr.bf16.mxu0 0
        %2116 = vmatmul.mubr.bf16.gmra.mrb[0].mxu0 %v2001
        %v2117 = vpop.f32.mrb[0].mxu0
        %v2118 = vadd.f32 0.0, %v2117
        %v2119 = vpop.f32.mrb[0].mxu0
        %v2120 = vpop.f32.mrb[0].mxu0
        %v2121 = vadd.f32 0.0, %v2120
        %v2122 = vpop.f32.mrb[0].mxu0
        %2123 = vmatprep.mubr.bf16.mxu0 0
        %2124 = vmatmul.mubr.bf16.gmra.mrb[0].mxu0 %v2002
        %v2125 = vpop.f32.mrb[0].mxu0
        %v2126 = vadd.f32 0.0, %v2125
        %v2127 = vpop.f32.mrb[0].mxu0
        %v2128 = vpop.f32.mrb[0].mxu0
        %v2129 = vadd.f32 0.0, %v2128
        %v2130 = vpop.f32.mrb[0].mxu0
        %2131 = vdwg.mxu0
        %v2132 = vadd.f32 %v1983, %v2102
        %v2133 = vadd.f32 %v1983, %v2105
        %v2134 = vadd.f32 %v1983, %v2110
        %v2135 = vadd.f32 %v1983, %v2113
        %v2136 = vadd.f32 %v1983, %v2118
        %v2137 = vadd.f32 %v1983, %v2121
        %v2138 = vadd.f32 %v1983, %v2126
        %v2139 = vadd.f32 %v1983, %v2129
        %s2140 = scalar_lea.vmem [#allocation4], 1
        %v2141 = vld [vmem:[%s2140] ss:$2 sm:$0xff]
        %s2142 = scalar_lea.vmem [#allocation4], 49
        %v2143 = vld [vmem:[%s2142] ss:$2 sm:$0xff]
        %s2144 = scalar_lea.vmem [#allocation4], 97
        %v2145 = vld [vmem:[%s2144] ss:$2 sm:$0xff]
        %s2146 = scalar_lea.vmem [#allocation4], 145
        %v2147 = vld [vmem:[%s2146] ss:$2 sm:$0xff]
        %s2148 = scalar_lea.vmem [#allocation4], 193
        %v2149 = vld [vmem:[%s2148] ss:$2 sm:$0xff]
        %s2150 = scalar_lea.vmem [#allocation4], 241
        %v2151 = vld [vmem:[%s2150] ss:$2 sm:$0xff]
        %s2152 = scalar_lea.vmem [#allocation4], 289
        %v2153 = vld [vmem:[%s2152] ss:$2 sm:$0xff]
        %s2154 = scalar_lea.vmem [#allocation4], 337
        %v2155 = vld [vmem:[%s2154] ss:$2 sm:$0xff]
        %v2156 = vpack.c.bf16 %v2143, %v2141
        %v2157 = vpack.c.bf16 %v2147, %v2145
        %v2158 = vpack.c.bf16 %v2151, %v2149
        %v2159 = vpack.c.bf16 %v2155, %v2153
        %v2160 = vld [vmem:[#allocation10 + $0x40] sm:$0xf]
        %v2161 = vld [vmem:[#allocation10 + $0x44] sm:$0xf]
        %v2162 = vld [vmem:[#allocation10 + $0x48] sm:$0xf]
        %v2163 = vld [vmem:[#allocation10 + $0x4c] sm:$0xf]
        %v2164 = vld [vmem:[#allocation10 + $0x50] sm:$0xf]
        %v2165 = vld [vmem:[#allocation10 + $0x54] sm:$0xf]
        %v2166 = vld [vmem:[#allocation10 + $0x58] sm:$0xf]
        %v2167 = vld [vmem:[#allocation10 + $0x5c] sm:$0xf]
        %v2168 = vld [vmem:[#allocation10 + $0x60] sm:$0xf]
        %v2169 = vld [vmem:[#allocation10 + $0x64] sm:$0xf]
        %v2170 = vld [vmem:[#allocation10 + $0x68] sm:$0xf]
        %v2171 = vld [vmem:[#allocation10 + $0x6c] sm:$0xf]
        %v2172 = vld [vmem:[#allocation10 + $0x70] sm:$0xf]
        %v2173 = vld [vmem:[#allocation10 + $0x74] sm:$0xf]
        %v2174 = vld [vmem:[#allocation10 + $0x78] sm:$0xf]
        %v2175 = vld [vmem:[#allocation10 + $0x7c] sm:$0xf]
        %v2192 = vunpack.c.l.b16 %v2160
        %v2193 = vunpack.c.l.b16 %v2161
        %v2194 = vunpack.c.l.b16 %v2162
        %v2195 = vunpack.c.l.b16 %v2163
        %v2196 = vunpack.c.l.b16 %v2164
        %v2197 = vunpack.c.l.b16 %v2165
        %v2198 = vunpack.c.l.b16 %v2166
        %v2199 = vunpack.c.l.b16 %v2167
        %v2200 = vunpack.c.l.b16 %v2168
        %v2201 = vunpack.c.l.b16 %v2169
        %v2202 = vunpack.c.l.b16 %v2170
        %v2203 = vunpack.c.l.b16 %v2171
        %v2204 = vunpack.c.l.b16 %v2172
        %v2205 = vunpack.c.l.b16 %v2173
        %v2206 = vunpack.c.l.b16 %v2174
        %v2207 = vunpack.c.l.b16 %v2175
        %v2208 = vpack.c.b16 %v2193, %v2192
        %v2209 = vpack.c.b16 %v2195, %v2194
        %v2210 = vpack.c.b16 %v2197, %v2196
        %v2211 = vpack.c.b16 %v2199, %v2198
        %v2212 = vpack.c.b16 %v2201, %v2200
        %v2213 = vpack.c.b16 %v2203, %v2202
        %v2214 = vpack.c.b16 %v2205, %v2204
        %v2215 = vpack.c.b16 %v2207, %v2206
        %2224 = vmatprep.subr.bf16.mxu0 0
        %2225 = vmatpush1.bf16.msra.mxu0 %v2208
        %2226 = vmatprep.subr.bf16.mxu0 0
        %2227 = vmatpush1.bf16.msra.mxu0 %v2209
        %2228 = vmatprep.subr.bf16.mxu0 0
        %2229 = vmatpush1.bf16.msra.mxu0 %v2210
        %2230 = vmatprep.subr.bf16.mxu0 0
        %2231 = vmatpush1.bf16.msra.mxu0 %v2211
        %2232 = vmatprep.subr.bf16.mxu0 0
        %2233 = vmatpush1.bf16.msra.mxu0 %v2212
        %2234 = vmatprep.subr.bf16.mxu0 0
        %2235 = vmatpush1.bf16.msra.mxu0 %v2213
        %2236 = vmatprep.subr.bf16.mxu0 0
        %2237 = vmatpush1.bf16.msra.mxu0 %v2214
        %2238 = vmatprep.subr.bf16.mxu0 0
        %2239 = vmatpush1.bf16.msra.mxu0 %v2215
        %2240 = vmatprep.subr.bf16.mxu0 0
        %2241 = vmatpush1.bf16.msra.mxu0 0
        %2242 = vmatprep.subr.bf16.mxu0 0
        %2243 = vmatpush1.bf16.msra.mxu0 0
        %2244 = vmatprep.subr.bf16.mxu0 0
        %2245 = vmatpush1.bf16.msra.mxu0 0
        %2246 = vmatprep.subr.bf16.mxu0 0
        %2247 = vmatpush1.bf16.msra.mxu0 0
        %2248 = vmatprep.subr.bf16.mxu0 0
        %2249 = vmatpush1.bf16.msra.mxu0 0
        %2250 = vmatprep.subr.bf16.mxu0 0
        %2251 = vmatpush1.bf16.msra.mxu0 0
        %2252 = vmatprep.subr.bf16.mxu0 0
        %2253 = vmatpush1.bf16.msra.mxu0 0
        %2254 = vmatprep.subr.bf16.mxu0 0
        %2255 = vmatpush1.bf16.msra.mxu0 0
        %2256 = vmatprep.mubr.bf16.mxu0 0
        %2257 = vmatmul.mubr.bf16.gmra.mrb[0].mxu0 %v2156
        %v2258 = vpop.f32.mrb[0].mxu0
        %v2259 = vadd.f32 0.0, %v2258
        %v2260 = vpop.f32.mrb[0].mxu0
        %v2261 = vpop.f32.mrb[0].mxu0
        %v2262 = vadd.f32 0.0, %v2261
        %v2263 = vpop.f32.mrb[0].mxu0
        %2264 = vmatprep.mubr.bf16.mxu0 0
        %2265 = vmatmul.mubr.bf16.gmra.mrb[0].mxu0 %v2157
        %v2266 = vpop.f32.mrb[0].mxu0
        %v2267 = vadd.f32 0.0, %v2266
        %v2268 = vpop.f32.mrb[0].mxu0
        %v2269 = vpop.f32.mrb[0].mxu0
        %v2270 = vadd.f32 0.0, %v2269
        %v2271 = vpop.f32.mrb[0].mxu0
        %2272 = vmatprep.mubr.bf16.mxu0 0
        %2273 = vmatmul.mubr.bf16.gmra.mrb[0].mxu0 %v2158
        %v2274 = vpop.f32.mrb[0].mxu0
        %v2275 = vadd.f32 0.0, %v2274
        %v2276 = vpop.f32.mrb[0].mxu0
        %v2277 = vpop.f32.mrb[0].mxu0
        %v2278 = vadd.f32 0.0, %v2277
        %v2279 = vpop.f32.mrb[0].mxu0
        %2280 = vmatprep.mubr.bf16.mxu0 0
        %2281 = vmatmul.mubr.bf16.gmra.mrb[0].mxu0 %v2159
        %v2282 = vpop.f32.mrb[0].mxu0
        %v2283 = vadd.f32 0.0, %v2282
        %v2284 = vpop.f32.mrb[0].mxu0
        %v2285 = vpop.f32.mrb[0].mxu0
        %v2286 = vadd.f32 0.0, %v2285
        %v2287 = vpop.f32.mrb[0].mxu0
        %2288 = vdwg.mxu0
        %v2289 = vadd.f32 %v2132, %v2259
        %v2290 = vadd.f32 %v2133, %v2262
        %v2291 = vadd.f32 %v2134, %v2267
        %v2292 = vadd.f32 %v2135, %v2270
        %v2293 = vadd.f32 %v2136, %v2275
        %v2294 = vadd.f32 %v2137, %v2278
        %v2295 = vadd.f32 %v2138, %v2283
        %v2296 = vadd.f32 %v2139, %v2286
        %s2297 = scalar_lea.vmem [#allocation4], 2
        %v2298 = vld [vmem:[%s2297] ss:$2 sm:$0xff]
        %s2299 = scalar_lea.vmem [#allocation4], 50
        %v2300 = vld [vmem:[%s2299] ss:$2 sm:$0xff]
        %s2301 = scalar_lea.vmem [#allocation4], 98
        %v2302 = vld [vmem:[%s2301] ss:$2 sm:$0xff]
        %s2303 = scalar_lea.vmem [#allocation4], 146
        %v2304 = vld [vmem:[%s2303] ss:$2 sm:$0xff]
        %s2305 = scalar_lea.vmem [#allocation4], 194
        %v2306 = vld [vmem:[%s2305] ss:$2 sm:$0xff]
        %s2307 = scalar_lea.vmem [#allocation4], 242
        %v2308 = vld [vmem:[%s2307] ss:$2 sm:$0xff]
        %s2309 = scalar_lea.vmem [#allocation4], 290
        %v2310 = vld [vmem:[%s2309] ss:$2 sm:$0xff]
        %s2311 = scalar_lea.vmem [#allocation4], 338
        %v2312 = vld [vmem:[%s2311] ss:$2 sm:$0xff]
        %v2313 = vpack.c.bf16 %v2300, %v2298
        %v2314 = vpack.c.bf16 %v2304, %v2302
        %v2315 = vpack.c.bf16 %v2308, %v2306
        %v2316 = vpack.c.bf16 %v2312, %v2310
        %v2317 = vld [vmem:[#allocation10 + $0x80] sm:$0xf]
        %v2318 = vld [vmem:[#allocation10 + $0x84] sm:$0xf]
        %v2319 = vld [vmem:[#allocation10 + $0x88] sm:$0xf]
        %v2320 = vld [vmem:[#allocation10 + $0x8c] sm:$0xf]
        %v2321 = vld [vmem:[#allocation10 + $0x90] sm:$0xf]
        %v2322 = vld [vmem:[#allocation10 + $0x94] sm:$0xf]
        %v2323 = vld [vmem:[#allocation10 + $0x98] sm:$0xf]
        %v2324 = vld [vmem:[#allocation10 + $0x9c] sm:$0xf]
        %v2325 = vld [vmem:[#allocation10 + $0xa0] sm:$0xf]
        %v2326 = vld [vmem:[#allocation10 + $0xa4] sm:$0xf]
        %v2327 = vld [vmem:[#allocation10 + $0xa8] sm:$0xf]
        %v2328 = vld [vmem:[#allocation10 + $0xac] sm:$0xf]
        %v2329 = vld [vmem:[#allocation10 + $0xb0] sm:$0xf]
        %v2330 = vld [vmem:[#allocation10 + $0xb4] sm:$0xf]
        %v2331 = vld [vmem:[#allocation10 + $0xb8] sm:$0xf]
        %v2332 = vld [vmem:[#allocation10 + $0xbc] sm:$0xf]
        %v2349 = vunpack.c.l.b16 %v2317
        %v2350 = vunpack.c.l.b16 %v2318
        %v2351 = vunpack.c.l.b16 %v2319
        %v2352 = vunpack.c.l.b16 %v2320
        %v2353 = vunpack.c.l.b16 %v2321
        %v2354 = vunpack.c.l.b16 %v2322
        %v2355 = vunpack.c.l.b16 %v2323
        %v2356 = vunpack.c.l.b16 %v2324
        %v2357 = vunpack.c.l.b16 %v2325
        %v2358 = vunpack.c.l.b16 %v2326
        %v2359 = vunpack.c.l.b16 %v2327
        %v2360 = vunpack.c.l.b16 %v2328
        %v2361 = vunpack.c.l.b16 %v2329
        %v2362 = vunpack.c.l.b16 %v2330
        %v2363 = vunpack.c.l.b16 %v2331
        %v2364 = vunpack.c.l.b16 %v2332
        %v2365 = vpack.c.b16 %v2350, %v2349
        %v2366 = vpack.c.b16 %v2352, %v2351
        %v2367 = vpack.c.b16 %v2354, %v2353
        %v2368 = vpack.c.b16 %v2356, %v2355
        %v2369 = vpack.c.b16 %v2358, %v2357
        %v2370 = vpack.c.b16 %v2360, %v2359
        %v2371 = vpack.c.b16 %v2362, %v2361
        %v2372 = vpack.c.b16 %v2364, %v2363
        %2381 = vmatprep.subr.bf16.mxu0 0
        %2382 = vmatpush1.bf16.msra.mxu0 %v2365
        %2383 = vmatprep.subr.bf16.mxu0 0
        %2384 = vmatpush1.bf16.msra.mxu0 %v2366
        %2385 = vmatprep.subr.bf16.mxu0 0
        %2386 = vmatpush1.bf16.msra.mxu0 %v2367
        %2387 = vmatprep.subr.bf16.mxu0 0
        %2388 = vmatpush1.bf16.msra.mxu0 %v2368
        %2389 = vmatprep.subr.bf16.mxu0 0
        %2390 = vmatpush1.bf16.msra.mxu0 %v2369
        %2391 = vmatprep.subr.bf16.mxu0 0
        %2392 = vmatpush1.bf16.msra.mxu0 %v2370
        %2393 = vmatprep.subr.bf16.mxu0 0
        %2394 = vmatpush1.bf16.msra.mxu0 %v2371
        %2395 = vmatprep.subr.bf16.mxu0 0
        %2396 = vmatpush1.bf16.msra.mxu0 %v2372
        %2397 = vmatprep.subr.bf16.mxu0 0
        %2398 = vmatpush1.bf16.msra.mxu0 0
        %2399 = vmatprep.subr.bf16.mxu0 0
        %2400 = vmatpush1.bf16.msra.mxu0 0
        %2401 = vmatprep.subr.bf16.mxu0 0
        %2402 = vmatpush1.bf16.msra.mxu0 0
        %2403 = vmatprep.subr.bf16.mxu0 0
        %2404 = vmatpush1.bf16.msra.mxu0 0
        %2405 = vmatprep.subr.bf16.mxu0 0
        %2406 = vmatpush1.bf16.msra.mxu0 0
        %2407 = vmatprep.subr.bf16.mxu0 0
        %2408 = vmatpush1.bf16.msra.mxu0 0
        %2409 = vmatprep.subr.bf16.mxu0 0
        %2410 = vmatpush1.bf16.msra.mxu0 0
        %2411 = vmatprep.subr.bf16.mxu0 0
        %2412 = vmatpush1.bf16.msra.mxu0 0
        %2413 = vmatprep.mubr.bf16.mxu0 0
        %2414 = vmatmul.mubr.bf16.gmra.mrb[0].mxu0 %v2313
        %v2415 = vpop.f32.mrb[0].mxu0
        %v2416 = vadd.f32 0.0, %v2415
        %v2417 = vpop.f32.mrb[0].mxu0
        %v2418 = vpop.f32.mrb[0].mxu0
        %v2419 = vadd.f32 0.0, %v2418
        %v2420 = vpop.f32.mrb[0].mxu0
        %2421 = vmatprep.mubr.bf16.mxu0 0
        %2422 = vmatmul.mubr.bf16.gmra.mrb[0].mxu0 %v2314
        %v2423 = vpop.f32.mrb[0].mxu0
        %v2424 = vadd.f32 0.0, %v2423
        %v2425 = vpop.f32.mrb[0].mxu0
        %v2426 = vpop.f32.mrb[0].mxu0
        %v2427 = vadd.f32 0.0, %v2426
        %v2428 = vpop.f32.mrb[0].mxu0
        %2429 = vmatprep.mubr.bf16.mxu0 0
        %2430 = vmatmul.mubr.bf16.gmra.mrb[0].mxu0 %v2315
        %v2431 = vpop.f32.mrb[0].mxu0
        %v2432 = vadd.f32 0.0, %v2431
        %v2433 = vpop.f32.mrb[0].mxu0
        %v2434 = vpop.f32.mrb[0].mxu0
        %v2435 = vadd.f32 0.0, %v2434
        %v2436 = vpop.f32.mrb[0].mxu0
        %2437 = vmatprep.mubr.bf16.mxu0 0
        %2438 = vmatmul.mubr.bf16.gmra.mrb[0].mxu0 %v2316
        %v2439 = vpop.f32.mrb[0].mxu0
        %v2440 = vadd.f32 0.0, %v2439
        %v2441 = vpop.f32.mrb[0].mxu0
        %v2442 = vpop.f32.mrb[0].mxu0
        %v2443 = vadd.f32 0.0, %v2442
        %v2444 = vpop.f32.mrb[0].mxu0
        %2445 = vdwg.mxu0
        %v2446 = vadd.f32 %v2289, %v2416
        %v2447 = vadd.f32 %v2290, %v2419
        %v2448 = vadd.f32 %v2291, %v2424
        %v2449 = vadd.f32 %v2292, %v2427
        %v2450 = vadd.f32 %v2293, %v2432
        %v2451 = vadd.f32 %v2294, %v2435
        %v2452 = vadd.f32 %v2295, %v2440
        %v2453 = vadd.f32 %v2296, %v2443
        %s2454 = scalar_lea.vmem [#allocation4], 3
        %v2455 = vld [vmem:[%s2454] ss:$2 sm:$0xff]
        %s2456 = scalar_lea.vmem [#allocation4], 51
        %v2457 = vld [vmem:[%s2456] ss:$2 sm:$0xff]
        %s2458 = scalar_lea.vmem [#allocation4], 99
        %v2459 = vld [vmem:[%s2458] ss:$2 sm:$0xff]
        %s2460 = scalar_lea.vmem [#allocation4], 147
        %v2461 = vld [vmem:[%s2460] ss:$2 sm:$0xff]
        %s2462 = scalar_lea.vmem [#allocation4], 195
        %v2463 = vld [vmem:[%s2462] ss:$2 sm:$0xff]
        %s2464 = scalar_lea.vmem [#allocation4], 243
        %v2465 = vld [vmem:[%s2464] ss:$2 sm:$0xff]
        %s2466 = scalar_lea.vmem [#allocation4], 291
        %v2467 = vld [vmem:[%s2466] ss:$2 sm:$0xff]
        %s2468 = scalar_lea.vmem [#allocation4], 339
        %v2469 = vld [vmem:[%s2468] ss:$2 sm:$0xff]
        %v2470 = vpack.c.bf16 %v2457, %v2455
        %v2471 = vpack.c.bf16 %v2461, %v2459
        %v2472 = vpack.c.bf16 %v2465, %v2463
        %v2473 = vpack.c.bf16 %v2469, %v2467
        %v2474 = vld [vmem:[#allocation10 + $0xc0] sm:$0xf]
        %v2475 = vld [vmem:[#allocation10 + $0xc4] sm:$0xf]
        %v2476 = vld [vmem:[#allocation10 + $0xc8] sm:$0xf]
        %v2477 = vld [vmem:[#allocation10 + $0xcc] sm:$0xf]
        %v2478 = vld [vmem:[#allocation10 + $0xd0] sm:$0xf]
        %v2479 = vld [vmem:[#allocation10 + $0xd4] sm:$0xf]
        %v2480 = vld [vmem:[#allocation10 + $0xd8] sm:$0xf]
        %v2481 = vld [vmem:[#allocation10 + $0xdc] sm:$0xf]
        %v2482 = vld [vmem:[#allocation10 + $0xe0] sm:$0xf]
        %v2483 = vld [vmem:[#allocation10 + $0xe4] sm:$0xf]
        %v2484 = vld [vmem:[#allocation10 + $0xe8] sm:$0xf]
        %v2485 = vld [vmem:[#allocation10 + $0xec] sm:$0xf]
        %v2486 = vld [vmem:[#allocation10 + $0xf0] sm:$0xf]
        %v2487 = vld [vmem:[#allocation10 + $0xf4] sm:$0xf]
        %v2488 = vld [vmem:[#allocation10 + $0xf8] sm:$0xf]
        %v2489 = vld [vmem:[#allocation10 + $0xfc] sm:$0xf]
        %v2506 = vunpack.c.l.b16 %v2474
        %v2507 = vunpack.c.l.b16 %v2475
        %v2508 = vunpack.c.l.b16 %v2476
        %v2509 = vunpack.c.l.b16 %v2477
        %v2510 = vunpack.c.l.b16 %v2478
        %v2511 = vunpack.c.l.b16 %v2479
        %v2512 = vunpack.c.l.b16 %v2480
        %v2513 = vunpack.c.l.b16 %v2481
        %v2514 = vunpack.c.l.b16 %v2482
        %v2515 = vunpack.c.l.b16 %v2483
        %v2516 = vunpack.c.l.b16 %v2484
        %v2517 = vunpack.c.l.b16 %v2485
        %v2518 = vunpack.c.l.b16 %v2486
        %v2519 = vunpack.c.l.b16 %v2487
        %v2520 = vunpack.c.l.b16 %v2488
        %v2521 = vunpack.c.l.b16 %v2489
        %v2522 = vpack.c.b16 %v2507, %v2506
        %v2523 = vpack.c.b16 %v2509, %v2508
        %v2524 = vpack.c.b16 %v2511, %v2510
        %v2525 = vpack.c.b16 %v2513, %v2512
        %v2526 = vpack.c.b16 %v2515, %v2514
        %v2527 = vpack.c.b16 %v2517, %v2516
        %v2528 = vpack.c.b16 %v2519, %v2518
        %v2529 = vpack.c.b16 %v2521, %v2520
        %2538 = vmatprep.subr.bf16.mxu0 0
        %2539 = vmatpush1.bf16.msra.mxu0 %v2522
        %2540 = vmatprep.subr.bf16.mxu0 0
        %2541 = vmatpush1.bf16.msra.mxu0 %v2523
        %2542 = vmatprep.subr.bf16.mxu0 0
        %2543 = vmatpush1.bf16.msra.mxu0 %v2524
        %2544 = vmatprep.subr.bf16.mxu0 0
        %2545 = vmatpush1.bf16.msra.mxu0 %v2525
        %2546 = vmatprep.subr.bf16.mxu0 0
        %2547 = vmatpush1.bf16.msra.mxu0 %v2526
        %2548 = vmatprep.subr.bf16.mxu0 0
        %2549 = vmatpush1.bf16.msra.mxu0 %v2527
        %2550 = vmatprep.subr.bf16.mxu0 0
        %2551 = vmatpush1.bf16.msra.mxu0 %v2528
        %2552 = vmatprep.subr.bf16.mxu0 0
        %2553 = vmatpush1.bf16.msra.mxu0 %v2529
        %2554 = vmatprep.subr.bf16.mxu0 0
        %2555 = vmatpush1.bf16.msra.mxu0 0
        %2556 = vmatprep.subr.bf16.mxu0 0
        %2557 = vmatpush1.bf16.msra.mxu0 0
        %2558 = vmatprep.subr.bf16.mxu0 0
        %2559 = vmatpush1.bf16.msra.mxu0 0
        %2560 = vmatprep.subr.bf16.mxu0 0
        %2561 = vmatpush1.bf16.msra.mxu0 0
        %2562 = vmatprep.subr.bf16.mxu0 0
        %2563 = vmatpush1.bf16.msra.mxu0 0
        %2564 = vmatprep.subr.bf16.mxu0 0
        %2565 = vmatpush1.bf16.msra.mxu0 0
        %2566 = vmatprep.subr.bf16.mxu0 0
        %2567 = vmatpush1.bf16.msra.mxu0 0
        %2568 = vmatprep.subr.bf16.mxu0 0
        %2569 = vmatpush1.bf16.msra.mxu0 0
        %2570 = vmatprep.mubr.bf16.mxu0 0
        %2571 = vmatmul.mubr.bf16.gmra.mrb[0].mxu0 %v2470
        %v2572 = vpop.f32.mrb[0].mxu0
        %v2573 = vadd.f32 0.0, %v2572
        %v2574 = vpop.f32.mrb[0].mxu0
        %v2575 = vpop.f32.mrb[0].mxu0
        %v2576 = vadd.f32 0.0, %v2575
        %v2577 = vpop.f32.mrb[0].mxu0
        %2578 = vmatprep.mubr.bf16.mxu0 0
        %2579 = vmatmul.mubr.bf16.gmra.mrb[0].mxu0 %v2471
        %v2580 = vpop.f32.mrb[0].mxu0
        %v2581 = vadd.f32 0.0, %v2580
        %v2582 = vpop.f32.mrb[0].mxu0
        %v2583 = vpop.f32.mrb[0].mxu0
        %v2584 = vadd.f32 0.0, %v2583
        %v2585 = vpop.f32.mrb[0].mxu0
        %2586 = vmatprep.mubr.bf16.mxu0 0
        %2587 = vmatmul.mubr.bf16.gmra.mrb[0].mxu0 %v2472
        %v2588 = vpop.f32.mrb[0].mxu0
        %v2589 = vadd.f32 0.0, %v2588
        %v2590 = vpop.f32.mrb[0].mxu0
        %v2591 = vpop.f32.mrb[0].mxu0
        %v2592 = vadd.f32 0.0, %v2591
        %v2593 = vpop.f32.mrb[0].mxu0
        %2594 = vmatprep.mubr.bf16.mxu0 0
        %2595 = vmatmul.mubr.bf16.gmra.mrb[0].mxu0 %v2473
        %v2596 = vpop.f32.mrb[0].mxu0
        %v2597 = vadd.f32 0.0, %v2596
        %v2598 = vpop.f32.mrb[0].mxu0
        %v2599 = vpop.f32.mrb[0].mxu0
        %v2600 = vadd.f32 0.0, %v2599
        %v2601 = vpop.f32.mrb[0].mxu0
        %2602 = vdwg.mxu0
        %v2603 = vadd.f32 %v2446, %v2573
        %v2604 = vadd.f32 %v2447, %v2576
        %v2605 = vadd.f32 %v2448, %v2581
        %v2606 = vadd.f32 %v2449, %v2584
        %v2607 = vadd.f32 %v2450, %v2589
        %v2608 = vadd.f32 %v2451, %v2592
        %v2609 = vadd.f32 %v2452, %v2597
        %v2610 = vadd.f32 %v2453, %v2600
        %v2611 = vld [vmem:[%s1863] ss:$2 sm:$0xff]
        %s2612 = scalar_lea.vmem %s1863, 48 [#allocation4]
        %v2613 = vld [vmem:[%s2612] ss:$2 sm:$0xff]
        %s2614 = scalar_lea.vmem %s1863, 96 [#allocation4]
        %v2615 = vld [vmem:[%s2614] ss:$2 sm:$0xff]
        %s2616 = scalar_lea.vmem %s1863, 144 [#allocation4]
        %v2617 = vld [vmem:[%s2616] ss:$2 sm:$0xff]
        %s2618 = scalar_lea.vmem %s1863, 192 [#allocation4]
        %v2619 = vld [vmem:[%s2618] ss:$2 sm:$0xff]
        %s2620 = scalar_lea.vmem %s1863, 240 [#allocation4]
        %v2621 = vld [vmem:[%s2620] ss:$2 sm:$0xff]
        %s2622 = scalar_lea.vmem %s1863, 288 [#allocation4]
        %v2623 = vld [vmem:[%s2622] ss:$2 sm:$0xff]
        %s2624 = scalar_lea.vmem %s1863, 336 [#allocation4]
        %v2625 = vld [vmem:[%s2624] ss:$2 sm:$0xff]
        %v2626 = vpack.c.bf16 %v2613, %v2611
        %v2627 = vpack.c.bf16 %v2617, %v2615
        %v2628 = vpack.c.bf16 %v2621, %v2619
        %v2629 = vpack.c.bf16 %v2625, %v2623
        %v2630 = vld [vmem:[#allocation10 + $0x100] sm:$0xf]
        %v2631 = vld [vmem:[#allocation10 + $0x104] sm:$0xf]
        %v2632 = vld [vmem:[#allocation10 + $0x108] sm:$0xf]
        %v2633 = vld [vmem:[#allocation10 + $0x10c] sm:$0xf]
        %v2634 = vld [vmem:[#allocation10 + $0x110] sm:$0xf]
        %v2635 = vld [vmem:[#allocation10 + $0x114] sm:$0xf]
        %v2636 = vld [vmem:[#allocation10 + $0x118] sm:$0xf]
        %v2637 = vld [vmem:[#allocation10 + $0x11c] sm:$0xf]
        %v2638 = vld [vmem:[#allocation10 + $0x120] sm:$0xf]
        %v2639 = vld [vmem:[#allocation10 + $0x124] sm:$0xf]
        %v2640 = vld [vmem:[#allocation10 + $0x128] sm:$0xf]
        %v2641 = vld [vmem:[#allocation10 + $0x12c] sm:$0xf]
        %v2642 = vld [vmem:[#allocation10 + $0x130] sm:$0xf]
        %v2643 = vld [vmem:[#allocation10 + $0x134] sm:$0xf]
        %v2644 = vld [vmem:[#allocation10 + $0x138] sm:$0xf]
        %v2645 = vld [vmem:[#allocation10 + $0x13c] sm:$0xf]
        %v2662 = vunpack.c.l.b16 %v2630
        %v2663 = vunpack.c.l.b16 %v2631
        %v2664 = vunpack.c.l.b16 %v2632
        %v2665 = vunpack.c.l.b16 %v2633
        %v2666 = vunpack.c.l.b16 %v2634
        %v2667 = vunpack.c.l.b16 %v2635
        %v2668 = vunpack.c.l.b16 %v2636
        %v2669 = vunpack.c.l.b16 %v2637
        %v2670 = vunpack.c.l.b16 %v2638
        %v2671 = vunpack.c.l.b16 %v2639
        %v2672 = vunpack.c.l.b16 %v2640
        %v2673 = vunpack.c.l.b16 %v2641
        %v2674 = vunpack.c.l.b16 %v2642
        %v2675 = vunpack.c.l.b16 %v2643
        %v2676 = vunpack.c.l.b16 %v2644
        %v2677 = vunpack.c.l.b16 %v2645
        %v2678 = vpack.c.b16 %v2663, %v2662
        %v2679 = vpack.c.b16 %v2665, %v2664
        %v2680 = vpack.c.b16 %v2667, %v2666
        %v2681 = vpack.c.b16 %v2669, %v2668
        %v2682 = vpack.c.b16 %v2671, %v2670
        %v2683 = vpack.c.b16 %v2673, %v2672
        %v2684 = vpack.c.b16 %v2675, %v2674
        %v2685 = vpack.c.b16 %v2677, %v2676
        %2694 = vmatprep.subr.bf16.mxu0 0
        %2695 = vmatpush1.bf16.msra.mxu0 %v2678
        %2696 = vmatprep.subr.bf16.mxu0 0
        %2697 = vmatpush1.bf16.msra.mxu0 %v2679
        %2698 = vmatprep.subr.bf16.mxu0 0
        %2699 = vmatpush1.bf16.msra.mxu0 %v2680
        %2700 = vmatprep.subr.bf16.mxu0 0
        %2701 = vmatpush1.bf16.msra.mxu0 %v2681
        %2702 = vmatprep.subr.bf16.mxu0 0
        %2703 = vmatpush1.bf16.msra.mxu0 %v2682
        %2704 = vmatprep.subr.bf16.mxu0 0
        %2705 = vmatpush1.bf16.msra.mxu0 %v2683
        %2706 = vmatprep.subr.bf16.mxu0 0
        %2707 = vmatpush1.bf16.msra.mxu0 %v2684
        %2708 = vmatprep.subr.bf16.mxu0 0
        %2709 = vmatpush1.bf16.msra.mxu0 %v2685
        %2710 = vmatprep.subr.bf16.mxu0 0
        %2711 = vmatpush1.bf16.msra.mxu0 0
        %2712 = vmatprep.subr.bf16.mxu0 0
        %2713 = vmatpush1.bf16.msra.mxu0 0
        %2714 = vmatprep.subr.bf16.mxu0 0
        %2715 = vmatpush1.bf16.msra.mxu0 0
        %2716 = vmatprep.subr.bf16.mxu0 0
        %2717 = vmatpush1.bf16.msra.mxu0 0
        %2718 = vmatprep.subr.bf16.mxu0 0
        %2719 = vmatpush1.bf16.msra.mxu0 0
        %2720 = vmatprep.subr.bf16.mxu0 0
        %2721 = vmatpush1.bf16.msra.mxu0 0
        %2722 = vmatprep.subr.bf16.mxu0 0
        %2723 = vmatpush1.bf16.msra.mxu0 0
        %2724 = vmatprep.subr.bf16.mxu0 0
        %2725 = vmatpush1.bf16.msra.mxu0 0
        %2726 = vmatprep.mubr.bf16.mxu0 0
        %2727 = vmatmul.mubr.bf16.gmra.mrb[0].mxu0 %v2626
        %v2728 = vpop.f32.mrb[0].mxu0
        %v2729 = vadd.f32 0.0, %v2728
        %v2730 = vpop.f32.mrb[0].mxu0
        %v2731 = vpop.f32.mrb[0].mxu0
        %v2732 = vadd.f32 0.0, %v2731
        %v2733 = vpop.f32.mrb[0].mxu0
        %2734 = vmatprep.mubr.bf16.mxu0 0
        %2735 = vmatmul.mubr.bf16.gmra.mrb[0].mxu0 %v2627
        %v2736 = vpop.f32.mrb[0].mxu0
        %v2737 = vadd.f32 0.0, %v2736
        %v2738 = vpop.f32.mrb[0].mxu0
        %v2739 = vpop.f32.mrb[0].mxu0
        %v2740 = vadd.f32 0.0, %v2739
        %v2741 = vpop.f32.mrb[0].mxu0
        %2742 = vmatprep.mubr.bf16.mxu0 0
        %2743 = vmatmul.mubr.bf16.gmra.mrb[0].mxu0 %v2628
        %v2744 = vpop.f32.mrb[0].mxu0
        %v2745 = vadd.f32 0.0, %v2744
        %v2746 = vpop.f32.mrb[0].mxu0
        %v2747 = vpop.f32.mrb[0].mxu0
        %v2748 = vadd.f32 0.0, %v2747
        %v2749 = vpop.f32.mrb[0].mxu0
        %2750 = vmatprep.mubr.bf16.mxu0 0
        %2751 = vmatmul.mubr.bf16.gmra.mrb[0].mxu0 %v2629
        %v2752 = vpop.f32.mrb[0].mxu0
        %v2753 = vadd.f32 0.0, %v2752
        %v2754 = vpop.f32.mrb[0].mxu0
        %v2755 = vpop.f32.mrb[0].mxu0
        %v2756 = vadd.f32 0.0, %v2755
        %v2757 = vpop.f32.mrb[0].mxu0
        %2758 = vdwg.mxu0
        %v2759 = vadd.f32 %v2603, %v2729
        %v2760 = vadd.f32 %v2604, %v2732
        %v2761 = vadd.f32 %v2605, %v2737
        %v2762 = vadd.f32 %v2606, %v2740
        %v2763 = vadd.f32 %v2607, %v2745
        %v2764 = vadd.f32 %v2608, %v2748
        %v2765 = vadd.f32 %v2609, %v2753
        %v2766 = vadd.f32 %v2610, %v2756
        %s2767 = scalar_lea.vmem %s1863, 1 [#allocation4]
        %v2768 = vld [vmem:[%s2767] ss:$2 sm:$0xff]
        %s2769 = scalar_lea.vmem %s1863, 49 [#allocation4]
        %v2770 = vld [vmem:[%s2769] ss:$2 sm:$0xff]
        %s2771 = scalar_lea.vmem %s1863, 97 [#allocation4]
        %v2772 = vld [vmem:[%s2771] ss:$2 sm:$0xff]
        %s2773 = scalar_lea.vmem %s1863, 145 [#allocation4]
        %v2774 = vld [vmem:[%s2773] ss:$2 sm:$0xff]
        %s2775 = scalar_lea.vmem %s1863, 193 [#allocation4]
        %v2776 = vld [vmem:[%s2775] ss:$2 sm:$0xff]
        %s2777 = scalar_lea.vmem %s1863, 241 [#allocation4]
        %v2778 = vld [vmem:[%s2777] ss:$2 sm:$0xff]
        %s2779 = scalar_lea.vmem %s1863, 289 [#allocation4]
        %v2780 = vld [vmem:[%s2779] ss:$2 sm:$0xff]
        %s2781 = scalar_lea.vmem %s1863, 337 [#allocation4]
        %v2782 = vld [vmem:[%s2781] ss:$2 sm:$0xff]
        %v2783 = vpack.c.bf16 %v2770, %v2768
        %v2784 = vpack.c.bf16 %v2774, %v2772
        %v2785 = vpack.c.bf16 %v2778, %v2776
        %v2786 = vpack.c.bf16 %v2782, %v2780
        %v2787 = vld [vmem:[#allocation10 + $0x140] sm:$0xf]
        %v2788 = vld [vmem:[#allocation10 + $0x144] sm:$0xf]
        %v2789 = vld [vmem:[#allocation10 + $0x148] sm:$0xf]
        %v2790 = vld [vmem:[#allocation10 + $0x14c] sm:$0xf]
        %v2791 = vld [vmem:[#allocation10 + $0x150] sm:$0xf]
        %v2792 = vld [vmem:[#allocation10 + $0x154] sm:$0xf]
        %v2793 = vld [vmem:[#allocation10 + $0x158] sm:$0xf]
        %v2794 = vld [vmem:[#allocation10 + $0x15c] sm:$0xf]
        %v2795 = vld [vmem:[#allocation10 + $0x160] sm:$0xf]
        %v2796 = vld [vmem:[#allocation10 + $0x164] sm:$0xf]
        %v2797 = vld [vmem:[#allocation10 + $0x168] sm:$0xf]
        %v2798 = vld [vmem:[#allocation10 + $0x16c] sm:$0xf]
        %v2799 = vld [vmem:[#allocation10 + $0x170] sm:$0xf]
        %v2800 = vld [vmem:[#allocation10 + $0x174] sm:$0xf]
        %v2801 = vld [vmem:[#allocation10 + $0x178] sm:$0xf]
        %v2802 = vld [vmem:[#allocation10 + $0x17c] sm:$0xf]
        %v2819 = vunpack.c.l.b16 %v2787
        %v2820 = vunpack.c.l.b16 %v2788
        %v2821 = vunpack.c.l.b16 %v2789
        %v2822 = vunpack.c.l.b16 %v2790
        %v2823 = vunpack.c.l.b16 %v2791
        %v2824 = vunpack.c.l.b16 %v2792
        %v2825 = vunpack.c.l.b16 %v2793
        %v2826 = vunpack.c.l.b16 %v2794
        %v2827 = vunpack.c.l.b16 %v2795
        %v2828 = vunpack.c.l.b16 %v2796
        %v2829 = vunpack.c.l.b16 %v2797
        %v2830 = vunpack.c.l.b16 %v2798
        %v2831 = vunpack.c.l.b16 %v2799
        %v2832 = vunpack.c.l.b16 %v2800
        %v2833 = vunpack.c.l.b16 %v2801
        %v2834 = vunpack.c.l.b16 %v2802
        %v2835 = vpack.c.b16 %v2820, %v2819
        %v2836 = vpack.c.b16 %v2822, %v2821
        %v2837 = vpack.c.b16 %v2824, %v2823
        %v2838 = vpack.c.b16 %v2826, %v2825
        %v2839 = vpack.c.b16 %v2828, %v2827
        %v2840 = vpack.c.b16 %v2830, %v2829
        %v2841 = vpack.c.b16 %v2832, %v2831
        %v2842 = vpack.c.b16 %v2834, %v2833
        %2851 = vmatprep.subr.bf16.mxu0 0
        %2852 = vmatpush1.bf16.msra.mxu0 %v2835
        %2853 = vmatprep.subr.bf16.mxu0 0
        %2854 = vmatpush1.bf16.msra.mxu0 %v2836
        %2855 = vmatprep.subr.bf16.mxu0 0
        %2856 = vmatpush1.bf16.msra.mxu0 %v2837
        %2857 = vmatprep.subr.bf16.mxu0 0
        %2858 = vmatpush1.bf16.msra.mxu0 %v2838
        %2859 = vmatprep.subr.bf16.mxu0 0
        %2860 = vmatpush1.bf16.msra.mxu0 %v2839
        %2861 = vmatprep.subr.bf16.mxu0 0
        %2862 = vmatpush1.bf16.msra.mxu0 %v2840
        %2863 = vmatprep.subr.bf16.mxu0 0
        %2864 = vmatpush1.bf16.msra.mxu0 %v2841
        %2865 = vmatprep.subr.bf16.mxu0 0
        %2866 = vmatpush1.bf16.msra.mxu0 %v2842
        %2867 = vmatprep.subr.bf16.mxu0 0
        %2868 = vmatpush1.bf16.msra.mxu0 0
        %2869 = vmatprep.subr.bf16.mxu0 0
        %2870 = vmatpush1.bf16.msra.mxu0 0
        %2871 = vmatprep.subr.bf16.mxu0 0
        %2872 = vmatpush1.bf16.msra.mxu0 0
        %2873 = vmatprep.subr.bf16.mxu0 0
        %2874 = vmatpush1.bf16.msra.mxu0 0
        %2875 = vmatprep.subr.bf16.mxu0 0
        %2876 = vmatpush1.bf16.msra.mxu0 0
        %2877 = vmatprep.subr.bf16.mxu0 0
        %2878 = vmatpush1.bf16.msra.mxu0 0
        %2879 = vmatprep.subr.bf16.mxu0 0
        %2880 = vmatpush1.bf16.msra.mxu0 0
        %2881 = vmatprep.subr.bf16.mxu0 0
        %2882 = vmatpush1.bf16.msra.mxu0 0
        %2883 = vmatprep.mubr.bf16.mxu0 0
        %2884 = vmatmul.mubr.bf16.gmra.mrb[0].mxu0 %v2783
        %v2885 = vpop.f32.mrb[0].mxu0
        %v2886 = vadd.f32 0.0, %v2885
        %v2887 = vpop.f32.mrb[0].mxu0
        %v2888 = vpop.f32.mrb[0].mxu0
        %v2889 = vadd.f32 0.0, %v2888
        %v2890 = vpop.f32.mrb[0].mxu0
        %2891 = vmatprep.mubr.bf16.mxu0 0
        %2892 = vmatmul.mubr.bf16.gmra.mrb[0].mxu0 %v2784
        %v2893 = vpop.f32.mrb[0].mxu0
        %v2894 = vadd.f32 0.0, %v2893
        %v2895 = vpop.f32.mrb[0].mxu0
        %v2896 = vpop.f32.mrb[0].mxu0
        %v2897 = vadd.f32 0.0, %v2896
        %v2898 = vpop.f32.mrb[0].mxu0
        %2899 = vmatprep.mubr.bf16.mxu0 0
        %2900 = vmatmul.mubr.bf16.gmra.mrb[0].mxu0 %v2785
        %v2901 = vpop.f32.mrb[0].mxu0
        %v2902 = vadd.f32 0.0, %v2901
        %v2903 = vpop.f32.mrb[0].mxu0
        %v2904 = vpop.f32.mrb[0].mxu0
        %v2905 = vadd.f32 0.0, %v2904
        %v2906 = vpop.f32.mrb[0].mxu0
        %2907 = vmatprep.mubr.bf16.mxu0 0
        %2908 = vmatmul.mubr.bf16.gmra.mrb[0].mxu0 %v2786
        %v2909 = vpop.f32.mrb[0].mxu0
        %v2910 = vadd.f32 0.0, %v2909
        %v2911 = vpop.f32.mrb[0].mxu0
        %v2912 = vpop.f32.mrb[0].mxu0
        %v2913 = vadd.f32 0.0, %v2912
        %v2914 = vpop.f32.mrb[0].mxu0
        %2915 = vdwg.mxu0
        %v2916 = vadd.f32 %v2759, %v2886
        %v2917 = vadd.f32 %v2760, %v2889
        %v2918 = vadd.f32 %v2761, %v2894
        %v2919 = vadd.f32 %v2762, %v2897
        %v2920 = vadd.f32 %v2763, %v2902
        %v2921 = vadd.f32 %v2764, %v2905
        %v2922 = vadd.f32 %v2765, %v2910
        %v2923 = vadd.f32 %v2766, %v2913
        %s2924 = scalar_lea.vmem %s1863, 2 [#allocation4]
        %v2925 = vld [vmem:[%s2924] ss:$2 sm:$0xff]
        %s2926 = scalar_lea.vmem %s1863, 50 [#allocation4]
        %v2927 = vld [vmem:[%s2926] ss:$2 sm:$0xff]
        %s2928 = scalar_lea.vmem %s1863, 98 [#allocation4]
        %v2929 = vld [vmem:[%s2928] ss:$2 sm:$0xff]
        %s2930 = scalar_lea.vmem %s1863, 146 [#allocation4]
        %v2931 = vld [vmem:[%s2930] ss:$2 sm:$0xff]
        %s2932 = scalar_lea.vmem %s1863, 194 [#allocation4]
        %v2933 = vld [vmem:[%s2932] ss:$2 sm:$0xff]
        %s2934 = scalar_lea.vmem %s1863, 242 [#allocation4]
        %v2935 = vld [vmem:[%s2934] ss:$2 sm:$0xff]
        %s2936 = scalar_lea.vmem %s1863, 290 [#allocation4]
        %v2937 = vld [vmem:[%s2936] ss:$2 sm:$0xff]
        %s2938 = scalar_lea.vmem %s1863, 338 [#allocation4]
        %v2939 = vld [vmem:[%s2938] ss:$2 sm:$0xff]
        %v2940 = vpack.c.bf16 %v2927, %v2925
        %v2941 = vpack.c.bf16 %v2931, %v2929
        %v2942 = vpack.c.bf16 %v2935, %v2933
        %v2943 = vpack.c.bf16 %v2939, %v2937
        %v2944 = vld [vmem:[#allocation10 + $0x180] sm:$0xf]
        %v2945 = vld [vmem:[#allocation10 + $0x184] sm:$0xf]
        %v2946 = vld [vmem:[#allocation10 + $0x188] sm:$0xf]
        %v2947 = vld [vmem:[#allocation10 + $0x18c] sm:$0xf]
        %v2948 = vld [vmem:[#allocation10 + $0x190] sm:$0xf]
        %v2949 = vld [vmem:[#allocation10 + $0x194] sm:$0xf]
        %v2950 = vld [vmem:[#allocation10 + $0x198] sm:$0xf]
        %v2951 = vld [vmem:[#allocation10 + $0x19c] sm:$0xf]
        %v2952 = vld [vmem:[#allocation10 + $0x1a0] sm:$0xf]
        %v2953 = vld [vmem:[#allocation10 + $0x1a4] sm:$0xf]
        %v2954 = vld [vmem:[#allocation10 + $0x1a8] sm:$0xf]
        %v2955 = vld [vmem:[#allocation10 + $0x1ac] sm:$0xf]
        %v2956 = vld [vmem:[#allocation10 + $0x1b0] sm:$0xf]
        %v2957 = vld [vmem:[#allocation10 + $0x1b4] sm:$0xf]
        %v2958 = vld [vmem:[#allocation10 + $0x1b8] sm:$0xf]
        %v2959 = vld [vmem:[#allocation10 + $0x1bc] sm:$0xf]
        %v2976 = vunpack.c.l.b16 %v2944
        %v2977 = vunpack.c.l.b16 %v2945
        %v2978 = vunpack.c.l.b16 %v2946
        %v2979 = vunpack.c.l.b16 %v2947
        %v2980 = vunpack.c.l.b16 %v2948
        %v2981 = vunpack.c.l.b16 %v2949
        %v2982 = vunpack.c.l.b16 %v2950
        %v2983 = vunpack.c.l.b16 %v2951
        %v2984 = vunpack.c.l.b16 %v2952
        %v2985 = vunpack.c.l.b16 %v2953
        %v2986 = vunpack.c.l.b16 %v2954
        %v2987 = vunpack.c.l.b16 %v2955
        %v2988 = vunpack.c.l.b16 %v2956
        %v2989 = vunpack.c.l.b16 %v2957
        %v2990 = vunpack.c.l.b16 %v2958
        %v2991 = vunpack.c.l.b16 %v2959
        %v2992 = vpack.c.b16 %v2977, %v2976
        %v2993 = vpack.c.b16 %v2979, %v2978
        %v2994 = vpack.c.b16 %v2981, %v2980
        %v2995 = vpack.c.b16 %v2983, %v2982
        %v2996 = vpack.c.b16 %v2985, %v2984
        %v2997 = vpack.c.b16 %v2987, %v2986
        %v2998 = vpack.c.b16 %v2989, %v2988
        %v2999 = vpack.c.b16 %v2991, %v2990
        %3008 = vmatprep.subr.bf16.mxu0 0
        %3009 = vmatpush1.bf16.msra.mxu0 %v2992
        %3010 = vmatprep.subr.bf16.mxu0 0
        %3011 = vmatpush1.bf16.msra.mxu0 %v2993
        %3012 = vmatprep.subr.bf16.mxu0 0
        %3013 = vmatpush1.bf16.msra.mxu0 %v2994
        %3014 = vmatprep.subr.bf16.mxu0 0
        %3015 = vmatpush1.bf16.msra.mxu0 %v2995
        %3016 = vmatprep.subr.bf16.mxu0 0
        %3017 = vmatpush1.bf16.msra.mxu0 %v2996
        %3018 = vmatprep.subr.bf16.mxu0 0
        %3019 = vmatpush1.bf16.msra.mxu0 %v2997
        %3020 = vmatprep.subr.bf16.mxu0 0
        %3021 = vmatpush1.bf16.msra.mxu0 %v2998
        %3022 = vmatprep.subr.bf16.mxu0 0
        %3023 = vmatpush1.bf16.msra.mxu0 %v2999
        %3024 = vmatprep.subr.bf16.mxu0 0
        %3025 = vmatpush1.bf16.msra.mxu0 0
        %3026 = vmatprep.subr.bf16.mxu0 0
        %3027 = vmatpush1.bf16.msra.mxu0 0
        %3028 = vmatprep.subr.bf16.mxu0 0
        %3029 = vmatpush1.bf16.msra.mxu0 0
        %3030 = vmatprep.subr.bf16.mxu0 0
        %3031 = vmatpush1.bf16.msra.mxu0 0
        %3032 = vmatprep.subr.bf16.mxu0 0
        %3033 = vmatpush1.bf16.msra.mxu0 0
        %3034 = vmatprep.subr.bf16.mxu0 0
        %3035 = vmatpush1.bf16.msra.mxu0 0
        %3036 = vmatprep.subr.bf16.mxu0 0
        %3037 = vmatpush1.bf16.msra.mxu0 0
        %3038 = vmatprep.subr.bf16.mxu0 0
        %3039 = vmatpush1.bf16.msra.mxu0 0
        %3040 = vmatprep.mubr.bf16.mxu0 0
        %3041 = vmatmul.mubr.bf16.gmra.mrb[0].mxu0 %v2940
        %v3042 = vpop.f32.mrb[0].mxu0
        %v3043 = vadd.f32 0.0, %v3042
        %v3044 = vpop.f32.mrb[0].mxu0
        %v3045 = vpop.f32.mrb[0].mxu0
        %v3046 = vadd.f32 0.0, %v3045
        %v3047 = vpop.f32.mrb[0].mxu0
        %3048 = vmatprep.mubr.bf16.mxu0 0
        %3049 = vmatmul.mubr.bf16.gmra.mrb[0].mxu0 %v2941
        %v3050 = vpop.f32.mrb[0].mxu0
        %v3051 = vadd.f32 0.0, %v3050
        %v3052 = vpop.f32.mrb[0].mxu0
        %v3053 = vpop.f32.mrb[0].mxu0
        %v3054 = vadd.f32 0.0, %v3053
        %v3055 = vpop.f32.mrb[0].mxu0
        %3056 = vmatprep.mubr.bf16.mxu0 0
        %3057 = vmatmul.mubr.bf16.gmra.mrb[0].mxu0 %v2942
        %v3058 = vpop.f32.mrb[0].mxu0
        %v3059 = vadd.f32 0.0, %v3058
        %v3060 = vpop.f32.mrb[0].mxu0
        %v3061 = vpop.f32.mrb[0].mxu0
        %v3062 = vadd.f32 0.0, %v3061
        %v3063 = vpop.f32.mrb[0].mxu0
        %3064 = vmatprep.mubr.bf16.mxu0 0
        %3065 = vmatmul.mubr.bf16.gmra.mrb[0].mxu0 %v2943
        %v3066 = vpop.f32.mrb[0].mxu0
        %v3067 = vadd.f32 0.0, %v3066
        %v3068 = vpop.f32.mrb[0].mxu0
        %v3069 = vpop.f32.mrb[0].mxu0
        %v3070 = vadd.f32 0.0, %v3069
        %v3071 = vpop.f32.mrb[0].mxu0
        %3072 = vdwg.mxu0
        %v3073 = vadd.f32 %v2916, %v3043
        %v3074 = vadd.f32 %v2917, %v3046
        %v3075 = vadd.f32 %v2918, %v3051
        %v3076 = vadd.f32 %v2919, %v3054
        %v3077 = vadd.f32 %v2920, %v3059
        %v3078 = vadd.f32 %v2921, %v3062
        %v3079 = vadd.f32 %v2922, %v3067
        %v3080 = vadd.f32 %v2923, %v3070
        %s3081 = scalar_lea.vmem %s1863, 3 [#allocation4]
        %v3082 = vld [vmem:[%s3081] ss:$2 sm:$0xff]
        %s3083 = scalar_lea.vmem %s1863, 51 [#allocation4]
        %v3084 = vld [vmem:[%s3083] ss:$2 sm:$0xff]
        %s3085 = scalar_lea.vmem %s1863, 99 [#allocation4]
        %v3086 = vld [vmem:[%s3085] ss:$2 sm:$0xff]
        %s3087 = scalar_lea.vmem %s1863, 147 [#allocation4]
        %v3088 = vld [vmem:[%s3087] ss:$2 sm:$0xff]
        %s3089 = scalar_lea.vmem %s1863, 195 [#allocation4]
        %v3090 = vld [vmem:[%s3089] ss:$2 sm:$0xff]
        %s3091 = scalar_lea.vmem %s1863, 243 [#allocation4]
        %v3092 = vld [vmem:[%s3091] ss:$2 sm:$0xff]
        %s3093 = scalar_lea.vmem %s1863, 291 [#allocation4]
        %v3094 = vld [vmem:[%s3093] ss:$2 sm:$0xff]
        %s3095 = scalar_lea.vmem %s1863, 339 [#allocation4]
        %v3096 = vld [vmem:[%s3095] ss:$2 sm:$0xff]
        %v3097 = vpack.c.bf16 %v3084, %v3082
        %v3098 = vpack.c.bf16 %v3088, %v3086
        %v3099 = vpack.c.bf16 %v3092, %v3090
        %v3100 = vpack.c.bf16 %v3096, %v3094
        %v3101 = vld [vmem:[#allocation10 + $0x1c0] sm:$0xf]
        %v3102 = vld [vmem:[#allocation10 + $0x1c4] sm:$0xf]
        %v3103 = vld [vmem:[#allocation10 + $0x1c8] sm:$0xf]
        %v3104 = vld [vmem:[#allocation10 + $0x1cc] sm:$0xf]
        %v3105 = vld [vmem:[#allocation10 + $0x1d0] sm:$0xf]
        %v3106 = vld [vmem:[#allocation10 + $0x1d4] sm:$0xf]
        %v3107 = vld [vmem:[#allocation10 + $0x1d8] sm:$0xf]
        %v3108 = vld [vmem:[#allocation10 + $0x1dc] sm:$0xf]
        %v3109 = vld [vmem:[#allocation10 + $0x1e0] sm:$0xf]
        %v3110 = vld [vmem:[#allocation10 + $0x1e4] sm:$0xf]
        %v3111 = vld [vmem:[#allocation10 + $0x1e8] sm:$0xf]
        %v3112 = vld [vmem:[#allocation10 + $0x1ec] sm:$0xf]
        %v3113 = vld [vmem:[#allocation10 + $0x1f0] sm:$0xf]
        %v3114 = vld [vmem:[#allocation10 + $0x1f4] sm:$0xf]
        %v3115 = vld [vmem:[#allocation10 + $0x1f8] sm:$0xf]
        %v3116 = vld [vmem:[#allocation10 + $0x1fc] sm:$0xf]
        %v3133 = vunpack.c.l.b16 %v3101
        %v3134 = vunpack.c.l.b16 %v3102
        %v3135 = vunpack.c.l.b16 %v3103
        %v3136 = vunpack.c.l.b16 %v3104
        %v3137 = vunpack.c.l.b16 %v3105
        %v3138 = vunpack.c.l.b16 %v3106
        %v3139 = vunpack.c.l.b16 %v3107
        %v3140 = vunpack.c.l.b16 %v3108
        %v3141 = vunpack.c.l.b16 %v3109
        %v3142 = vunpack.c.l.b16 %v3110
        %v3143 = vunpack.c.l.b16 %v3111
        %v3144 = vunpack.c.l.b16 %v3112
        %v3145 = vunpack.c.l.b16 %v3113
        %v3146 = vunpack.c.l.b16 %v3114
        %v3147 = vunpack.c.l.b16 %v3115
        %v3148 = vunpack.c.l.b16 %v3116
        %v3149 = vpack.c.b16 %v3134, %v3133
        %v3150 = vpack.c.b16 %v3136, %v3135
        %v3151 = vpack.c.b16 %v3138, %v3137
        %v3152 = vpack.c.b16 %v3140, %v3139
        %v3153 = vpack.c.b16 %v3142, %v3141
        %v3154 = vpack.c.b16 %v3144, %v3143
        %v3155 = vpack.c.b16 %v3146, %v3145
        %v3156 = vpack.c.b16 %v3148, %v3147
        %3165 = vmatprep.subr.bf16.mxu0 0
        %3166 = vmatpush1.bf16.msra.mxu0 %v3149
        %3167 = vmatprep.subr.bf16.mxu0 0
        %3168 = vmatpush1.bf16.msra.mxu0 %v3150
        %3169 = vmatprep.subr.bf16.mxu0 0
        %3170 = vmatpush1.bf16.msra.mxu0 %v3151
        %3171 = vmatprep.subr.bf16.mxu0 0
        %3172 = vmatpush1.bf16.msra.mxu0 %v3152
        %3173 = vmatprep.subr.bf16.mxu0 0
        %3174 = vmatpush1.bf16.msra.mxu0 %v3153
        %3175 = vmatprep.subr.bf16.mxu0 0
        %3176 = vmatpush1.bf16.msra.mxu0 %v3154
        %3177 = vmatprep.subr.bf16.mxu0 0
        %3178 = vmatpush1.bf16.msra.mxu0 %v3155
        %3179 = vmatprep.subr.bf16.mxu0 0
        %3180 = vmatpush1.bf16.msra.mxu0 %v3156
        %3181 = vmatprep.subr.bf16.mxu0 0
        %3182 = vmatpush1.bf16.msra.mxu0 0
        %3183 = vmatprep.subr.bf16.mxu0 0
        %3184 = vmatpush1.bf16.msra.mxu0 0
        %3185 = vmatprep.subr.bf16.mxu0 0
        %3186 = vmatpush1.bf16.msra.mxu0 0
        %3187 = vmatprep.subr.bf16.mxu0 0
        %3188 = vmatpush1.bf16.msra.mxu0 0
        %3189 = vmatprep.subr.bf16.mxu0 0
        %3190 = vmatpush1.bf16.msra.mxu0 0
        %3191 = vmatprep.subr.bf16.mxu0 0
        %3192 = vmatpush1.bf16.msra.mxu0 0
        %3193 = vmatprep.subr.bf16.mxu0 0
        %3194 = vmatpush1.bf16.msra.mxu0 0
        %3195 = vmatprep.subr.bf16.mxu0 0
        %3196 = vmatpush1.bf16.msra.mxu0 0
        %3197 = vmatprep.mubr.bf16.mxu0 0
        %3198 = vmatmul.mubr.bf16.gmra.mrb[0].mxu0 %v3097
        %v3199 = vpop.f32.mrb[0].mxu0
        %v3200 = vadd.f32 0.0, %v3199
        %v3201 = vpop.f32.mrb[0].mxu0
        %v3202 = vpop.f32.mrb[0].mxu0
        %v3203 = vadd.f32 0.0, %v3202
        %v3204 = vpop.f32.mrb[0].mxu0
        %3205 = vmatprep.mubr.bf16.mxu0 0
        %3206 = vmatmul.mubr.bf16.gmra.mrb[0].mxu0 %v3098
        %v3207 = vpop.f32.mrb[0].mxu0
        %v3208 = vadd.f32 0.0, %v3207
        %v3209 = vpop.f32.mrb[0].mxu0
        %v3210 = vpop.f32.mrb[0].mxu0
        %v3211 = vadd.f32 0.0, %v3210
        %v3212 = vpop.f32.mrb[0].mxu0
        %3213 = vmatprep.mubr.bf16.mxu0 0
        %3214 = vmatmul.mubr.bf16.gmra.mrb[0].mxu0 %v3099
        %v3215 = vpop.f32.mrb[0].mxu0
        %v3216 = vadd.f32 0.0, %v3215
        %v3217 = vpop.f32.mrb[0].mxu0
        %v3218 = vpop.f32.mrb[0].mxu0
        %v3219 = vadd.f32 0.0, %v3218
        %v3220 = vpop.f32.mrb[0].mxu0
        %3221 = vmatprep.mubr.bf16.mxu0 0
        %3222 = vmatmul.mubr.bf16.gmra.mrb[0].mxu0 %v3100
        %v3223 = vpop.f32.mrb[0].mxu0
        %v3224 = vadd.f32 0.0, %v3223
        %v3225 = vpop.f32.mrb[0].mxu0
        %v3226 = vpop.f32.mrb[0].mxu0
        %v3227 = vadd.f32 0.0, %v3226
        %v3228 = vpop.f32.mrb[0].mxu0
        %3229 = vdwg.mxu0
        %v3230 = vadd.f32 %v3073, %v3200
        %v3231 = vadd.f32 %v3074, %v3203
        %v3232 = vadd.f32 %v3075, %v3208
        %v3233 = vadd.f32 %v3076, %v3211
        %v3234 = vadd.f32 %v3077, %v3216
        %v3235 = vadd.f32 %v3078, %v3219
        %v3236 = vadd.f32 %v3079, %v3224
        %v3237 = vadd.f32 %v3080, %v3227
        %v3238 = vld [vmem:[%s1896] ss:$2 sm:$0xff]
        %s3239 = scalar_lea.vmem %s1896, 48 [#allocation4]
        %v3240 = vld [vmem:[%s3239] ss:$2 sm:$0xff]
        %s3241 = scalar_lea.vmem %s1896, 96 [#allocation4]
        %v3242 = vld [vmem:[%s3241] ss:$2 sm:$0xff]
        %s3243 = scalar_lea.vmem %s1896, 144 [#allocation4]
        %v3244 = vld [vmem:[%s3243] ss:$2 sm:$0xff]
        %s3245 = scalar_lea.vmem %s1896, 192 [#allocation4]
        %v3246 = vld [vmem:[%s3245] ss:$2 sm:$0xff]
        %s3247 = scalar_lea.vmem %s1896, 240 [#allocation4]
        %v3248 = vld [vmem:[%s3247] ss:$2 sm:$0xff]
        %s3249 = scalar_lea.vmem %s1896, 288 [#allocation4]
        %v3250 = vld [vmem:[%s3249] ss:$2 sm:$0xff]
        %s3251 = scalar_lea.vmem %s1896, 336 [#allocation4]
        %v3252 = vld [vmem:[%s3251] ss:$2 sm:$0xff]
        %v3253 = vpack.c.bf16 %v3240, %v3238
        %v3254 = vpack.c.bf16 %v3244, %v3242
        %v3255 = vpack.c.bf16 %v3248, %v3246
        %v3256 = vpack.c.bf16 %v3252, %v3250
        %v3257 = vld [vmem:[#allocation10 + $0x200] sm:$0xf]
        %v3258 = vld [vmem:[#allocation10 + $0x204] sm:$0xf]
        %v3259 = vld [vmem:[#allocation10 + $0x208] sm:$0xf]
        %v3260 = vld [vmem:[#allocation10 + $0x20c] sm:$0xf]
        %v3261 = vld [vmem:[#allocation10 + $0x210] sm:$0xf]
        %v3262 = vld [vmem:[#allocation10 + $0x214] sm:$0xf]
        %v3263 = vld [vmem:[#allocation10 + $0x218] sm:$0xf]
        %v3264 = vld [vmem:[#allocation10 + $0x21c] sm:$0xf]
        %v3265 = vld [vmem:[#allocation10 + $0x220] sm:$0xf]
        %v3266 = vld [vmem:[#allocation10 + $0x224] sm:$0xf]
        %v3267 = vld [vmem:[#allocation10 + $0x228] sm:$0xf]
        %v3268 = vld [vmem:[#allocation10 + $0x22c] sm:$0xf]
        %v3269 = vld [vmem:[#allocation10 + $0x230] sm:$0xf]
        %v3270 = vld [vmem:[#allocation10 + $0x234] sm:$0xf]
        %v3271 = vld [vmem:[#allocation10 + $0x238] sm:$0xf]
        %v3272 = vld [vmem:[#allocation10 + $0x23c] sm:$0xf]
        %v3289 = vunpack.c.l.b16 %v3257
        %v3290 = vunpack.c.l.b16 %v3258
        %v3291 = vunpack.c.l.b16 %v3259
        %v3292 = vunpack.c.l.b16 %v3260
        %v3293 = vunpack.c.l.b16 %v3261
        %v3294 = vunpack.c.l.b16 %v3262
        %v3295 = vunpack.c.l.b16 %v3263
        %v3296 = vunpack.c.l.b16 %v3264
        %v3297 = vunpack.c.l.b16 %v3265
        %v3298 = vunpack.c.l.b16 %v3266
        %v3299 = vunpack.c.l.b16 %v3267
        %v3300 = vunpack.c.l.b16 %v3268
        %v3301 = vunpack.c.l.b16 %v3269
        %v3302 = vunpack.c.l.b16 %v3270
        %v3303 = vunpack.c.l.b16 %v3271
        %v3304 = vunpack.c.l.b16 %v3272
        %v3305 = vpack.c.b16 %v3290, %v3289
        %v3306 = vpack.c.b16 %v3292, %v3291
        %v3307 = vpack.c.b16 %v3294, %v3293
        %v3308 = vpack.c.b16 %v3296, %v3295
        %v3309 = vpack.c.b16 %v3298, %v3297
        %v3310 = vpack.c.b16 %v3300, %v3299
        %v3311 = vpack.c.b16 %v3302, %v3301
        %v3312 = vpack.c.b16 %v3304, %v3303
        %3321 = vmatprep.subr.bf16.mxu0 0
        %3322 = vmatpush1.bf16.msra.mxu0 %v3305
        %3323 = vmatprep.subr.bf16.mxu0 0
        %3324 = vmatpush1.bf16.msra.mxu0 %v3306
        %3325 = vmatprep.subr.bf16.mxu0 0
        %3326 = vmatpush1.bf16.msra.mxu0 %v3307
        %3327 = vmatprep.subr.bf16.mxu0 0
        %3328 = vmatpush1.bf16.msra.mxu0 %v3308
        %3329 = vmatprep.subr.bf16.mxu0 0
        %3330 = vmatpush1.bf16.msra.mxu0 %v3309
        %3331 = vmatprep.subr.bf16.mxu0 0
        %3332 = vmatpush1.bf16.msra.mxu0 %v3310
        %3333 = vmatprep.subr.bf16.mxu0 0
        %3334 = vmatpush1.bf16.msra.mxu0 %v3311
        %3335 = vmatprep.subr.bf16.mxu0 0
        %3336 = vmatpush1.bf16.msra.mxu0 %v3312
        %3337 = vmatprep.subr.bf16.mxu0 0
        %3338 = vmatpush1.bf16.msra.mxu0 0
        %3339 = vmatprep.subr.bf16.mxu0 0
        %3340 = vmatpush1.bf16.msra.mxu0 0
        %3341 = vmatprep.subr.bf16.mxu0 0
        %3342 = vmatpush1.bf16.msra.mxu0 0
        %3343 = vmatprep.subr.bf16.mxu0 0
        %3344 = vmatpush1.bf16.msra.mxu0 0
        %3345 = vmatprep.subr.bf16.mxu0 0
        %3346 = vmatpush1.bf16.msra.mxu0 0
        %3347 = vmatprep.subr.bf16.mxu0 0
        %3348 = vmatpush1.bf16.msra.mxu0 0
        %3349 = vmatprep.subr.bf16.mxu0 0
        %3350 = vmatpush1.bf16.msra.mxu0 0
        %3351 = vmatprep.subr.bf16.mxu0 0
        %3352 = vmatpush1.bf16.msra.mxu0 0
        %3353 = vmatprep.mubr.bf16.mxu0 0
        %3354 = vmatmul.mubr.bf16.gmra.mrb[0].mxu0 %v3253
        %v3355 = vpop.f32.mrb[0].mxu0
        %v3356 = vadd.f32 0.0, %v3355
        %v3357 = vpop.f32.mrb[0].mxu0
        %v3358 = vpop.f32.mrb[0].mxu0
        %v3359 = vadd.f32 0.0, %v3358
        %v3360 = vpop.f32.mrb[0].mxu0
        %3361 = vmatprep.mubr.bf16.mxu0 0
        %3362 = vmatmul.mubr.bf16.gmra.mrb[0].mxu0 %v3254
        %v3363 = vpop.f32.mrb[0].mxu0
        %v3364 = vadd.f32 0.0, %v3363
        %v3365 = vpop.f32.mrb[0].mxu0
        %v3366 = vpop.f32.mrb[0].mxu0
        %v3367 = vadd.f32 0.0, %v3366
        %v3368 = vpop.f32.mrb[0].mxu0
        %3369 = vmatprep.mubr.bf16.mxu0 0
        %3370 = vmatmul.mubr.bf16.gmra.mrb[0].mxu0 %v3255
        %v3371 = vpop.f32.mrb[0].mxu0
        %v3372 = vadd.f32 0.0, %v3371
        %v3373 = vpop.f32.mrb[0].mxu0
        %v3374 = vpop.f32.mrb[0].mxu0
        %v3375 = vadd.f32 0.0, %v3374
        %v3376 = vpop.f32.mrb[0].mxu0
        %3377 = vmatprep.mubr.bf16.mxu0 0
        %3378 = vmatmul.mubr.bf16.gmra.mrb[0].mxu0 %v3256
        %v3379 = vpop.f32.mrb[0].mxu0
        %v3380 = vadd.f32 0.0, %v3379
        %v3381 = vpop.f32.mrb[0].mxu0
        %v3382 = vpop.f32.mrb[0].mxu0
        %v3383 = vadd.f32 0.0, %v3382
        %v3384 = vpop.f32.mrb[0].mxu0
        %3385 = vdwg.mxu0
        %v3386 = vadd.f32 %v3230, %v3356
        %v3387 = vadd.f32 %v3231, %v3359
        %v3388 = vadd.f32 %v3232, %v3364
        %v3389 = vadd.f32 %v3233, %v3367
        %v3390 = vadd.f32 %v3234, %v3372
        %v3391 = vadd.f32 %v3235, %v3375
        %v3392 = vadd.f32 %v3236, %v3380
        %v3393 = vadd.f32 %v3237, %v3383
        %s3394 = scalar_lea.vmem %s1896, 1 [#allocation4]
        %v3395 = vld [vmem:[%s3394] ss:$2 sm:$0xff]
        %s3396 = scalar_lea.vmem %s1896, 49 [#allocation4]
        %v3397 = vld [vmem:[%s3396] ss:$2 sm:$0xff]
        %s3398 = scalar_lea.vmem %s1896, 97 [#allocation4]
        %v3399 = vld [vmem:[%s3398] ss:$2 sm:$0xff]
        %s3400 = scalar_lea.vmem %s1896, 145 [#allocation4]
        %v3401 = vld [vmem:[%s3400] ss:$2 sm:$0xff]
        %s3402 = scalar_lea.vmem %s1896, 193 [#allocation4]
        %v3403 = vld [vmem:[%s3402] ss:$2 sm:$0xff]
        %s3404 = scalar_lea.vmem %s1896, 241 [#allocation4]
        %v3405 = vld [vmem:[%s3404] ss:$2 sm:$0xff]
        %s3406 = scalar_lea.vmem %s1896, 289 [#allocation4]
        %v3407 = vld [vmem:[%s3406] ss:$2 sm:$0xff]
        %s3408 = scalar_lea.vmem %s1896, 337 [#allocation4]
        %v3409 = vld [vmem:[%s3408] ss:$2 sm:$0xff]
        %v3410 = vpack.c.bf16 %v3397, %v3395
        %v3411 = vpack.c.bf16 %v3401, %v3399
        %v3412 = vpack.c.bf16 %v3405, %v3403
        %v3413 = vpack.c.bf16 %v3409, %v3407
        %v3414 = vld [vmem:[#allocation10 + $0x240] sm:$0xf]
        %v3415 = vld [vmem:[#allocation10 + $0x244] sm:$0xf]
        %v3416 = vld [vmem:[#allocation10 + $0x248] sm:$0xf]
        %v3417 = vld [vmem:[#allocation10 + $0x24c] sm:$0xf]
        %v3418 = vld [vmem:[#allocation10 + $0x250] sm:$0xf]
        %v3419 = vld [vmem:[#allocation10 + $0x254] sm:$0xf]
        %v3420 = vld [vmem:[#allocation10 + $0x258] sm:$0xf]
        %v3421 = vld [vmem:[#allocation10 + $0x25c] sm:$0xf]
        %v3422 = vld [vmem:[#allocation10 + $0x260] sm:$0xf]
        %v3423 = vld [vmem:[#allocation10 + $0x264] sm:$0xf]
        %v3424 = vld [vmem:[#allocation10 + $0x268] sm:$0xf]
        %v3425 = vld [vmem:[#allocation10 + $0x26c] sm:$0xf]
        %v3426 = vld [vmem:[#allocation10 + $0x270] sm:$0xf]
        %v3427 = vld [vmem:[#allocation10 + $0x274] sm:$0xf]
        %v3428 = vld [vmem:[#allocation10 + $0x278] sm:$0xf]
        %v3429 = vld [vmem:[#allocation10 + $0x27c] sm:$0xf]
        %v3446 = vunpack.c.l.b16 %v3414
        %v3447 = vunpack.c.l.b16 %v3415
        %v3448 = vunpack.c.l.b16 %v3416
        %v3449 = vunpack.c.l.b16 %v3417
        %v3450 = vunpack.c.l.b16 %v3418
        %v3451 = vunpack.c.l.b16 %v3419
        %v3452 = vunpack.c.l.b16 %v3420
        %v3453 = vunpack.c.l.b16 %v3421
        %v3454 = vunpack.c.l.b16 %v3422
        %v3455 = vunpack.c.l.b16 %v3423
        %v3456 = vunpack.c.l.b16 %v3424
        %v3457 = vunpack.c.l.b16 %v3425
        %v3458 = vunpack.c.l.b16 %v3426
        %v3459 = vunpack.c.l.b16 %v3427
        %v3460 = vunpack.c.l.b16 %v3428
        %v3461 = vunpack.c.l.b16 %v3429
        %v3462 = vpack.c.b16 %v3447, %v3446
        %v3463 = vpack.c.b16 %v3449, %v3448
        %v3464 = vpack.c.b16 %v3451, %v3450
        %v3465 = vpack.c.b16 %v3453, %v3452
        %v3466 = vpack.c.b16 %v3455, %v3454
        %v3467 = vpack.c.b16 %v3457, %v3456
        %v3468 = vpack.c.b16 %v3459, %v3458
        %v3469 = vpack.c.b16 %v3461, %v3460
        %3478 = vmatprep.subr.bf16.mxu0 0
        %3479 = vmatpush1.bf16.msra.mxu0 %v3462
        %3480 = vmatprep.subr.bf16.mxu0 0
        %3481 = vmatpush1.bf16.msra.mxu0 %v3463
        %3482 = vmatprep.subr.bf16.mxu0 0
        %3483 = vmatpush1.bf16.msra.mxu0 %v3464
        %3484 = vmatprep.subr.bf16.mxu0 0
        %3485 = vmatpush1.bf16.msra.mxu0 %v3465
        %3486 = vmatprep.subr.bf16.mxu0 0
        %3487 = vmatpush1.bf16.msra.mxu0 %v3466
        %3488 = vmatprep.subr.bf16.mxu0 0
        %3489 = vmatpush1.bf16.msra.mxu0 %v3467
        %3490 = vmatprep.subr.bf16.mxu0 0
        %3491 = vmatpush1.bf16.msra.mxu0 %v3468
        %3492 = vmatprep.subr.bf16.mxu0 0
        %3493 = vmatpush1.bf16.msra.mxu0 %v3469
        %3494 = vmatprep.subr.bf16.mxu0 0
        %3495 = vmatpush1.bf16.msra.mxu0 0
        %3496 = vmatprep.subr.bf16.mxu0 0
        %3497 = vmatpush1.bf16.msra.mxu0 0
        %3498 = vmatprep.subr.bf16.mxu0 0
        %3499 = vmatpush1.bf16.msra.mxu0 0
        %3500 = vmatprep.subr.bf16.mxu0 0
        %3501 = vmatpush1.bf16.msra.mxu0 0
        %3502 = vmatprep.subr.bf16.mxu0 0
        %3503 = vmatpush1.bf16.msra.mxu0 0
        %3504 = vmatprep.subr.bf16.mxu0 0
        %3505 = vmatpush1.bf16.msra.mxu0 0
        %3506 = vmatprep.subr.bf16.mxu0 0
        %3507 = vmatpush1.bf16.msra.mxu0 0
        %3508 = vmatprep.subr.bf16.mxu0 0
        %3509 = vmatpush1.bf16.msra.mxu0 0
        %3510 = vmatprep.mubr.bf16.mxu0 0
        %3511 = vmatmul.mubr.bf16.gmra.mrb[0].mxu0 %v3410
        %v3512 = vpop.f32.mrb[0].mxu0
        %v3513 = vadd.f32 0.0, %v3512
        %v3514 = vpop.f32.mrb[0].mxu0
        %v3515 = vpop.f32.mrb[0].mxu0
        %v3516 = vadd.f32 0.0, %v3515
        %v3517 = vpop.f32.mrb[0].mxu0
        %3518 = vmatprep.mubr.bf16.mxu0 0
        %3519 = vmatmul.mubr.bf16.gmra.mrb[0].mxu0 %v3411
        %v3520 = vpop.f32.mrb[0].mxu0
        %v3521 = vadd.f32 0.0, %v3520
        %v3522 = vpop.f32.mrb[0].mxu0
        %v3523 = vpop.f32.mrb[0].mxu0
        %v3524 = vadd.f32 0.0, %v3523
        %v3525 = vpop.f32.mrb[0].mxu0
        %3526 = vmatprep.mubr.bf16.mxu0 0
        %3527 = vmatmul.mubr.bf16.gmra.mrb[0].mxu0 %v3412
        %v3528 = vpop.f32.mrb[0].mxu0
        %v3529 = vadd.f32 0.0, %v3528
        %v3530 = vpop.f32.mrb[0].mxu0
        %v3531 = vpop.f32.mrb[0].mxu0
        %v3532 = vadd.f32 0.0, %v3531
        %v3533 = vpop.f32.mrb[0].mxu0
        %3534 = vmatprep.mubr.bf16.mxu0 0
        %3535 = vmatmul.mubr.bf16.gmra.mrb[0].mxu0 %v3413
        %v3536 = vpop.f32.mrb[0].mxu0
        %v3537 = vadd.f32 0.0, %v3536
        %v3538 = vpop.f32.mrb[0].mxu0
        %v3539 = vpop.f32.mrb[0].mxu0
        %v3540 = vadd.f32 0.0, %v3539
        %v3541 = vpop.f32.mrb[0].mxu0
        %3542 = vdwg.mxu0
        %v3543 = vadd.f32 %v3386, %v3513
        %v3544 = vadd.f32 %v3387, %v3516
        %v3545 = vadd.f32 %v3388, %v3521
        %v3546 = vadd.f32 %v3389, %v3524
        %v3547 = vadd.f32 %v3390, %v3529
        %v3548 = vadd.f32 %v3391, %v3532
        %v3549 = vadd.f32 %v3392, %v3537
        %v3550 = vadd.f32 %v3393, %v3540
        %s3551 = scalar_lea.vmem %s1896, 2 [#allocation4]
        %v3552 = vld [vmem:[%s3551] ss:$2 sm:$0xff]
        %s3553 = scalar_lea.vmem %s1896, 50 [#allocation4]
        %v3554 = vld [vmem:[%s3553] ss:$2 sm:$0xff]
        %s3555 = scalar_lea.vmem %s1896, 98 [#allocation4]
        %v3556 = vld [vmem:[%s3555] ss:$2 sm:$0xff]
        %s3557 = scalar_lea.vmem %s1896, 146 [#allocation4]
        %v3558 = vld [vmem:[%s3557] ss:$2 sm:$0xff]
        %s3559 = scalar_lea.vmem %s1896, 194 [#allocation4]
        %v3560 = vld [vmem:[%s3559] ss:$2 sm:$0xff]
        %s3561 = scalar_lea.vmem %s1896, 242 [#allocation4]
        %v3562 = vld [vmem:[%s3561] ss:$2 sm:$0xff]
        %s3563 = scalar_lea.vmem %s1896, 290 [#allocation4]
        %v3564 = vld [vmem:[%s3563] ss:$2 sm:$0xff]
        %s3565 = scalar_lea.vmem %s1896, 338 [#allocation4]
        %v3566 = vld [vmem:[%s3565] ss:$2 sm:$0xff]
        %v3567 = vpack.c.bf16 %v3554, %v3552
        %v3568 = vpack.c.bf16 %v3558, %v3556
        %v3569 = vpack.c.bf16 %v3562, %v3560
        %v3570 = vpack.c.bf16 %v3566, %v3564
        %v3571 = vld [vmem:[#allocation10 + $0x280] sm:$0xf]
        %v3572 = vld [vmem:[#allocation10 + $0x284] sm:$0xf]
        %v3573 = vld [vmem:[#allocation10 + $0x288] sm:$0xf]
        %v3574 = vld [vmem:[#allocation10 + $0x28c] sm:$0xf]
        %v3575 = vld [vmem:[#allocation10 + $0x290] sm:$0xf]
        %v3576 = vld [vmem:[#allocation10 + $0x294] sm:$0xf]
        %v3577 = vld [vmem:[#allocation10 + $0x298] sm:$0xf]
        %v3578 = vld [vmem:[#allocation10 + $0x29c] sm:$0xf]
        %v3579 = vld [vmem:[#allocation10 + $0x2a0] sm:$0xf]
        %v3580 = vld [vmem:[#allocation10 + $0x2a4] sm:$0xf]
        %v3581 = vld [vmem:[#allocation10 + $0x2a8] sm:$0xf]
        %v3582 = vld [vmem:[#allocation10 + $0x2ac] sm:$0xf]
        %v3583 = vld [vmem:[#allocation10 + $0x2b0] sm:$0xf]
        %v3584 = vld [vmem:[#allocation10 + $0x2b4] sm:$0xf]
        %v3585 = vld [vmem:[#allocation10 + $0x2b8] sm:$0xf]
        %v3586 = vld [vmem:[#allocation10 + $0x2bc] sm:$0xf]
        %v3603 = vunpack.c.l.b16 %v3571
        %v3604 = vunpack.c.l.b16 %v3572
        %v3605 = vunpack.c.l.b16 %v3573
        %v3606 = vunpack.c.l.b16 %v3574
        %v3607 = vunpack.c.l.b16 %v3575
        %v3608 = vunpack.c.l.b16 %v3576
        %v3609 = vunpack.c.l.b16 %v3577
        %v3610 = vunpack.c.l.b16 %v3578
        %v3611 = vunpack.c.l.b16 %v3579
        %v3612 = vunpack.c.l.b16 %v3580
        %v3613 = vunpack.c.l.b16 %v3581
        %v3614 = vunpack.c.l.b16 %v3582
        %v3615 = vunpack.c.l.b16 %v3583
        %v3616 = vunpack.c.l.b16 %v3584
        %v3617 = vunpack.c.l.b16 %v3585
        %v3618 = vunpack.c.l.b16 %v3586
        %v3619 = vpack.c.b16 %v3604, %v3603
        %v3620 = vpack.c.b16 %v3606, %v3605
        %v3621 = vpack.c.b16 %v3608, %v3607
        %v3622 = vpack.c.b16 %v3610, %v3609
        %v3623 = vpack.c.b16 %v3612, %v3611
        %v3624 = vpack.c.b16 %v3614, %v3613
        %v3625 = vpack.c.b16 %v3616, %v3615
        %v3626 = vpack.c.b16 %v3618, %v3617
        %3635 = vmatprep.subr.bf16.mxu0 0
        %3636 = vmatpush1.bf16.msra.mxu0 %v3619
        %3637 = vmatprep.subr.bf16.mxu0 0
        %3638 = vmatpush1.bf16.msra.mxu0 %v3620
        %3639 = vmatprep.subr.bf16.mxu0 0
        %3640 = vmatpush1.bf16.msra.mxu0 %v3621
        %3641 = vmatprep.subr.bf16.mxu0 0
        %3642 = vmatpush1.bf16.msra.mxu0 %v3622
        %3643 = vmatprep.subr.bf16.mxu0 0
        %3644 = vmatpush1.bf16.msra.mxu0 %v3623
        %3645 = vmatprep.subr.bf16.mxu0 0
        %3646 = vmatpush1.bf16.msra.mxu0 %v3624
        %3647 = vmatprep.subr.bf16.mxu0 0
        %3648 = vmatpush1.bf16.msra.mxu0 %v3625
        %3649 = vmatprep.subr.bf16.mxu0 0
        %3650 = vmatpush1.bf16.msra.mxu0 %v3626
        %3651 = vmatprep.subr.bf16.mxu0 0
        %3652 = vmatpush1.bf16.msra.mxu0 0
        %3653 = vmatprep.subr.bf16.mxu0 0
        %3654 = vmatpush1.bf16.msra.mxu0 0
        %3655 = vmatprep.subr.bf16.mxu0 0
        %3656 = vmatpush1.bf16.msra.mxu0 0
        %3657 = vmatprep.subr.bf16.mxu0 0
        %3658 = vmatpush1.bf16.msra.mxu0 0
        %3659 = vmatprep.subr.bf16.mxu0 0
        %3660 = vmatpush1.bf16.msra.mxu0 0
        %3661 = vmatprep.subr.bf16.mxu0 0
        %3662 = vmatpush1.bf16.msra.mxu0 0
        %3663 = vmatprep.subr.bf16.mxu0 0
        %3664 = vmatpush1.bf16.msra.mxu0 0
        %3665 = vmatprep.subr.bf16.mxu0 0
        %3666 = vmatpush1.bf16.msra.mxu0 0
        %3667 = vmatprep.mubr.bf16.mxu0 0
        %3668 = vmatmul.mubr.bf16.gmra.mrb[0].mxu0 %v3567
        %v3669 = vpop.f32.mrb[0].mxu0
        %v3670 = vadd.f32 0.0, %v3669
        %v3671 = vpop.f32.mrb[0].mxu0
        %v3672 = vpop.f32.mrb[0].mxu0
        %v3673 = vadd.f32 0.0, %v3672
        %v3674 = vpop.f32.mrb[0].mxu0
        %3675 = vmatprep.mubr.bf16.mxu0 0
        %3676 = vmatmul.mubr.bf16.gmra.mrb[0].mxu0 %v3568
        %v3677 = vpop.f32.mrb[0].mxu0
        %v3678 = vadd.f32 0.0, %v3677
        %v3679 = vpop.f32.mrb[0].mxu0
        %v3680 = vpop.f32.mrb[0].mxu0
        %v3681 = vadd.f32 0.0, %v3680
        %v3682 = vpop.f32.mrb[0].mxu0
        %3683 = vmatprep.mubr.bf16.mxu0 0
        %3684 = vmatmul.mubr.bf16.gmra.mrb[0].mxu0 %v3569
        %v3685 = vpop.f32.mrb[0].mxu0
        %v3686 = vadd.f32 0.0, %v3685
        %v3687 = vpop.f32.mrb[0].mxu0
        %v3688 = vpop.f32.mrb[0].mxu0
        %v3689 = vadd.f32 0.0, %v3688
        %v3690 = vpop.f32.mrb[0].mxu0
        %3691 = vmatprep.mubr.bf16.mxu0 0
        %3692 = vmatmul.mubr.bf16.gmra.mrb[0].mxu0 %v3570
        %v3693 = vpop.f32.mrb[0].mxu0
        %v3694 = vadd.f32 0.0, %v3693
        %v3695 = vpop.f32.mrb[0].mxu0
        %v3696 = vpop.f32.mrb[0].mxu0
        %v3697 = vadd.f32 0.0, %v3696
        %v3698 = vpop.f32.mrb[0].mxu0
        %3699 = vdwg.mxu0
        %v3700 = vadd.f32 %v3543, %v3670
        %v3701 = vadd.f32 %v3544, %v3673
        %v3702 = vadd.f32 %v3545, %v3678
        %v3703 = vadd.f32 %v3546, %v3681
        %v3704 = vadd.f32 %v3547, %v3686
        %v3705 = vadd.f32 %v3548, %v3689
        %v3706 = vadd.f32 %v3549, %v3694
        %v3707 = vadd.f32 %v3550, %v3697
        %s3708 = scalar_lea.vmem %s1896, 3 [#allocation4]
        %v3709 = vld [vmem:[%s3708] ss:$2 sm:$0xff]
        %s3710 = scalar_lea.vmem %s1896, 51 [#allocation4]
        %v3711 = vld [vmem:[%s3710] ss:$2 sm:$0xff]
        %s3712 = scalar_lea.vmem %s1896, 99 [#allocation4]
        %v3713 = vld [vmem:[%s3712] ss:$2 sm:$0xff]
        %s3714 = scalar_lea.vmem %s1896, 147 [#allocation4]
        %v3715 = vld [vmem:[%s3714] ss:$2 sm:$0xff]
        %s3716 = scalar_lea.vmem %s1896, 195 [#allocation4]
        %v3717 = vld [vmem:[%s3716] ss:$2 sm:$0xff]
        %s3718 = scalar_lea.vmem %s1896, 243 [#allocation4]
        %v3719 = vld [vmem:[%s3718] ss:$2 sm:$0xff]
        %s3720 = scalar_lea.vmem %s1896, 291 [#allocation4]
        %v3721 = vld [vmem:[%s3720] ss:$2 sm:$0xff]
        %s3722 = scalar_lea.vmem %s1896, 339 [#allocation4]
        %v3723 = vld [vmem:[%s3722] ss:$2 sm:$0xff]
        %v3724 = vpack.c.bf16 %v3711, %v3709
        %v3725 = vpack.c.bf16 %v3715, %v3713
        %v3726 = vpack.c.bf16 %v3719, %v3717
        %v3727 = vpack.c.bf16 %v3723, %v3721
        %v3728 = vld [vmem:[#allocation10 + $0x2c0] sm:$0xf]
        %v3729 = vld [vmem:[#allocation10 + $0x2c4] sm:$0xf]
        %v3730 = vld [vmem:[#allocation10 + $0x2c8] sm:$0xf]
        %v3731 = vld [vmem:[#allocation10 + $0x2cc] sm:$0xf]
        %v3732 = vld [vmem:[#allocation10 + $0x2d0] sm:$0xf]
        %v3733 = vld [vmem:[#allocation10 + $0x2d4] sm:$0xf]
        %v3734 = vld [vmem:[#allocation10 + $0x2d8] sm:$0xf]
        %v3735 = vld [vmem:[#allocation10 + $0x2dc] sm:$0xf]
        %v3736 = vld [vmem:[#allocation10 + $0x2e0] sm:$0xf]
        %v3737 = vld [vmem:[#allocation10 + $0x2e4] sm:$0xf]
        %v3738 = vld [vmem:[#allocation10 + $0x2e8] sm:$0xf]
        %v3739 = vld [vmem:[#allocation10 + $0x2ec] sm:$0xf]
        %v3740 = vld [vmem:[#allocation10 + $0x2f0] sm:$0xf]
        %v3741 = vld [vmem:[#allocation10 + $0x2f4] sm:$0xf]
        %v3742 = vld [vmem:[#allocation10 + $0x2f8] sm:$0xf]
        %v3743 = vld [vmem:[#allocation10 + $0x2fc] sm:$0xf]
        %v3760 = vunpack.c.l.b16 %v3728
        %v3761 = vunpack.c.l.b16 %v3729
        %v3762 = vunpack.c.l.b16 %v3730
        %v3763 = vunpack.c.l.b16 %v3731
        %v3764 = vunpack.c.l.b16 %v3732
        %v3765 = vunpack.c.l.b16 %v3733
        %v3766 = vunpack.c.l.b16 %v3734
        %v3767 = vunpack.c.l.b16 %v3735
        %v3768 = vunpack.c.l.b16 %v3736
        %v3769 = vunpack.c.l.b16 %v3737
        %v3770 = vunpack.c.l.b16 %v3738
        %v3771 = vunpack.c.l.b16 %v3739
        %v3772 = vunpack.c.l.b16 %v3740
        %v3773 = vunpack.c.l.b16 %v3741
        %v3774 = vunpack.c.l.b16 %v3742
        %v3775 = vunpack.c.l.b16 %v3743
        %v3776 = vpack.c.b16 %v3761, %v3760
        %v3777 = vpack.c.b16 %v3763, %v3762
        %v3778 = vpack.c.b16 %v3765, %v3764
        %v3779 = vpack.c.b16 %v3767, %v3766
        %v3780 = vpack.c.b16 %v3769, %v3768
        %v3781 = vpack.c.b16 %v3771, %v3770
        %v3782 = vpack.c.b16 %v3773, %v3772
        %v3783 = vpack.c.b16 %v3775, %v3774
        %3792 = vmatprep.subr.bf16.mxu0 0
        %3793 = vmatpush1.bf16.msra.mxu0 %v3776
        %3794 = vmatprep.subr.bf16.mxu0 0
        %3795 = vmatpush1.bf16.msra.mxu0 %v3777
        %3796 = vmatprep.subr.bf16.mxu0 0
        %3797 = vmatpush1.bf16.msra.mxu0 %v3778
        %3798 = vmatprep.subr.bf16.mxu0 0
        %3799 = vmatpush1.bf16.msra.mxu0 %v3779
        %3800 = vmatprep.subr.bf16.mxu0 0
        %3801 = vmatpush1.bf16.msra.mxu0 %v3780
        %3802 = vmatprep.subr.bf16.mxu0 0
        %3803 = vmatpush1.bf16.msra.mxu0 %v3781
        %3804 = vmatprep.subr.bf16.mxu0 0
        %3805 = vmatpush1.bf16.msra.mxu0 %v3782
        %3806 = vmatprep.subr.bf16.mxu0 0
        %3807 = vmatpush1.bf16.msra.mxu0 %v3783
        %3808 = vmatprep.subr.bf16.mxu0 0
        %3809 = vmatpush1.bf16.msra.mxu0 0
        %3810 = vmatprep.subr.bf16.mxu0 0
        %3811 = vmatpush1.bf16.msra.mxu0 0
        %3812 = vmatprep.subr.bf16.mxu0 0
        %3813 = vmatpush1.bf16.msra.mxu0 0
        %3814 = vmatprep.subr.bf16.mxu0 0
        %3815 = vmatpush1.bf16.msra.mxu0 0
        %3816 = vmatprep.subr.bf16.mxu0 0
        %3817 = vmatpush1.bf16.msra.mxu0 0
        %3818 = vmatprep.subr.bf16.mxu0 0
        %3819 = vmatpush1.bf16.msra.mxu0 0
        %3820 = vmatprep.subr.bf16.mxu0 0
        %3821 = vmatpush1.bf16.msra.mxu0 0
        %3822 = vmatprep.subr.bf16.mxu0 0
        %3823 = vmatpush1.bf16.msra.mxu0 0
        %3824 = vmatprep.mubr.bf16.mxu0 0
        %3825 = vmatmul.mubr.bf16.gmra.mrb[0].mxu0 %v3724
        %v3826 = vpop.f32.mrb[0].mxu0
        %v3827 = vadd.f32 0.0, %v3826
        %v3828 = vpop.f32.mrb[0].mxu0
        %v3829 = vpop.f32.mrb[0].mxu0
        %v3830 = vadd.f32 0.0, %v3829
        %v3831 = vpop.f32.mrb[0].mxu0
        %3832 = vmatprep.mubr.bf16.mxu0 0
        %3833 = vmatmul.mubr.bf16.gmra.mrb[0].mxu0 %v3725
        %v3834 = vpop.f32.mrb[0].mxu0
        %v3835 = vadd.f32 0.0, %v3834
        %v3836 = vpop.f32.mrb[0].mxu0
        %v3837 = vpop.f32.mrb[0].mxu0
        %v3838 = vadd.f32 0.0, %v3837
        %v3839 = vpop.f32.mrb[0].mxu0
        %3840 = vmatprep.mubr.bf16.mxu0 0
        %3841 = vmatmul.mubr.bf16.gmra.mrb[0].mxu0 %v3726
        %v3842 = vpop.f32.mrb[0].mxu0
        %v3843 = vadd.f32 0.0, %v3842
        %v3844 = vpop.f32.mrb[0].mxu0
        %v3845 = vpop.f32.mrb[0].mxu0
        %v3846 = vadd.f32 0.0, %v3845
        %v3847 = vpop.f32.mrb[0].mxu0
        %3848 = vmatprep.mubr.bf16.mxu0 0
        %3849 = vmatmul.mubr.bf16.gmra.mrb[0].mxu0 %v3727
        %v3850 = vpop.f32.mrb[0].mxu0
        %v3851 = vadd.f32 0.0, %v3850
        %v3852 = vpop.f32.mrb[0].mxu0
        %v3853 = vpop.f32.mrb[0].mxu0
        %v3854 = vadd.f32 0.0, %v3853
        %v3855 = vpop.f32.mrb[0].mxu0
        %3856 = vdwg.mxu0
        %v3857 = vadd.f32 %v3700, %v3827
        %v3858 = vadd.f32 %v3701, %v3830
        %v3859 = vadd.f32 %v3702, %v3835
        %v3860 = vadd.f32 %v3703, %v3838
        %v3861 = vadd.f32 %v3704, %v3843
        %v3862 = vadd.f32 %v3705, %v3846
        %v3863 = vadd.f32 %v3706, %v3851
        %v3864 = vadd.f32 %v3707, %v3854
        %s3865 = scalar_lea.vmem [#allocation4], 72
        %v3866 = vld [vmem:[%s3865] ss:$2 sm:$0xff]
        %s3867 = scalar_lea.vmem %s3865, 48 [#allocation4]
        %v3868 = vld [vmem:[%s3867] ss:$2 sm:$0xff]
        %s3869 = scalar_lea.vmem %s3865, 96 [#allocation4]
        %v3870 = vld [vmem:[%s3869] ss:$2 sm:$0xff]
        %s3871 = scalar_lea.vmem %s3865, 144 [#allocation4]
        %v3872 = vld [vmem:[%s3871] ss:$2 sm:$0xff]
        %s3873 = scalar_lea.vmem %s3865, 192 [#allocation4]
        %v3874 = vld [vmem:[%s3873] ss:$2 sm:$0xff]
        %s3875 = scalar_lea.vmem %s3865, 240 [#allocation4]
        %v3876 = vld [vmem:[%s3875] ss:$2 sm:$0xff]
        %s3877 = scalar_lea.vmem %s3865, 288 [#allocation4]
        %v3878 = vld [vmem:[%s3877] ss:$2 sm:$0xff]
        %s3879 = scalar_lea.vmem %s3865, 336 [#allocation4]
        %v3880 = vld [vmem:[%s3879] ss:$2 sm:$0xff]
        %v3881 = vpack.c.bf16 %v3868, %v3866
        %v3882 = vpack.c.bf16 %v3872, %v3870
        %v3883 = vpack.c.bf16 %v3876, %v3874
        %v3884 = vpack.c.bf16 %v3880, %v3878
        %v3885 = vld [vmem:[#allocation10 + $0x300] sm:$0xf]
        %v3886 = vld [vmem:[#allocation10 + $0x304] sm:$0xf]
        %v3887 = vld [vmem:[#allocation10 + $0x308] sm:$0xf]
        %v3888 = vld [vmem:[#allocation10 + $0x30c] sm:$0xf]
        %v3889 = vld [vmem:[#allocation10 + $0x310] sm:$0xf]
        %v3890 = vld [vmem:[#allocation10 + $0x314] sm:$0xf]
        %v3891 = vld [vmem:[#allocation10 + $0x318] sm:$0xf]
        %v3892 = vld [vmem:[#allocation10 + $0x31c] sm:$0xf]
        %v3893 = vld [vmem:[#allocation10 + $0x320] sm:$0xf]
        %v3894 = vld [vmem:[#allocation10 + $0x324] sm:$0xf]
        %v3895 = vld [vmem:[#allocation10 + $0x328] sm:$0xf]
        %v3896 = vld [vmem:[#allocation10 + $0x32c] sm:$0xf]
        %v3897 = vld [vmem:[#allocation10 + $0x330] sm:$0xf]
        %v3898 = vld [vmem:[#allocation10 + $0x334] sm:$0xf]
        %v3899 = vld [vmem:[#allocation10 + $0x338] sm:$0xf]
        %v3900 = vld [vmem:[#allocation10 + $0x33c] sm:$0xf]
        %v3917 = vunpack.c.l.b16 %v3885
        %v3918 = vunpack.c.l.b16 %v3886
        %v3919 = vunpack.c.l.b16 %v3887
        %v3920 = vunpack.c.l.b16 %v3888
        %v3921 = vunpack.c.l.b16 %v3889
        %v3922 = vunpack.c.l.b16 %v3890
        %v3923 = vunpack.c.l.b16 %v3891
        %v3924 = vunpack.c.l.b16 %v3892
        %v3925 = vunpack.c.l.b16 %v3893
        %v3926 = vunpack.c.l.b16 %v3894
        %v3927 = vunpack.c.l.b16 %v3895
        %v3928 = vunpack.c.l.b16 %v3896
        %v3929 = vunpack.c.l.b16 %v3897
        %v3930 = vunpack.c.l.b16 %v3898
        %v3931 = vunpack.c.l.b16 %v3899
        %v3932 = vunpack.c.l.b16 %v3900
        %v3933 = vpack.c.b16 %v3918, %v3917
        %v3934 = vpack.c.b16 %v3920, %v3919
        %v3935 = vpack.c.b16 %v3922, %v3921
        %v3936 = vpack.c.b16 %v3924, %v3923
        %v3937 = vpack.c.b16 %v3926, %v3925
        %v3938 = vpack.c.b16 %v3928, %v3927
        %v3939 = vpack.c.b16 %v3930, %v3929
        %v3940 = vpack.c.b16 %v3932, %v3931
        %3949 = vmatprep.subr.bf16.mxu0 0
        %3950 = vmatpush1.bf16.msra.mxu0 %v3933
        %3951 = vmatprep.subr.bf16.mxu0 0
        %3952 = vmatpush1.bf16.msra.mxu0 %v3934
        %3953 = vmatprep.subr.bf16.mxu0 0
        %3954 = vmatpush1.bf16.msra.mxu0 %v3935
        %3955 = vmatprep.subr.bf16.mxu0 0
        %3956 = vmatpush1.bf16.msra.mxu0 %v3936
        %3957 = vmatprep.subr.bf16.mxu0 0
        %3958 = vmatpush1.bf16.msra.mxu0 %v3937
        %3959 = vmatprep.subr.bf16.mxu0 0
        %3960 = vmatpush1.bf16.msra.mxu0 %v3938
        %3961 = vmatprep.subr.bf16.mxu0 0
        %3962 = vmatpush1.bf16.msra.mxu0 %v3939
        %3963 = vmatprep.subr.bf16.mxu0 0
        %3964 = vmatpush1.bf16.msra.mxu0 %v3940
        %3965 = vmatprep.subr.bf16.mxu0 0
        %3966 = vmatpush1.bf16.msra.mxu0 0
        %3967 = vmatprep.subr.bf16.mxu0 0
        %3968 = vmatpush1.bf16.msra.mxu0 0
        %3969 = vmatprep.subr.bf16.mxu0 0
        %3970 = vmatpush1.bf16.msra.mxu0 0
        %3971 = vmatprep.subr.bf16.mxu0 0
        %3972 = vmatpush1.bf16.msra.mxu0 0
        %3973 = vmatprep.subr.bf16.mxu0 0
        %3974 = vmatpush1.bf16.msra.mxu0 0
        %3975 = vmatprep.subr.bf16.mxu0 0
        %3976 = vmatpush1.bf16.msra.mxu0 0
        %3977 = vmatprep.subr.bf16.mxu0 0
        %3978 = vmatpush1.bf16.msra.mxu0 0
        %3979 = vmatprep.subr.bf16.mxu0 0
        %3980 = vmatpush1.bf16.msra.mxu0 0
        %3981 = vmatprep.mubr.bf16.mxu0 0
        %3982 = vmatmul.mubr.bf16.gmra.mrb[0].mxu0 %v3881
        %v3983 = vpop.f32.mrb[0].mxu0
        %v3984 = vadd.f32 0.0, %v3983
        %v3985 = vpop.f32.mrb[0].mxu0
        %v3986 = vpop.f32.mrb[0].mxu0
        %v3987 = vadd.f32 0.0, %v3986
        %v3988 = vpop.f32.mrb[0].mxu0
        %3989 = vmatprep.mubr.bf16.mxu0 0
        %3990 = vmatmul.mubr.bf16.gmra.mrb[0].mxu0 %v3882
        %v3991 = vpop.f32.mrb[0].mxu0
        %v3992 = vadd.f32 0.0, %v3991
        %v3993 = vpop.f32.mrb[0].mxu0
        %v3994 = vpop.f32.mrb[0].mxu0
        %v3995 = vadd.f32 0.0, %v3994
        %v3996 = vpop.f32.mrb[0].mxu0
        %3997 = vmatprep.mubr.bf16.mxu0 0
        %3998 = vmatmul.mubr.bf16.gmra.mrb[0].mxu0 %v3883
        %v3999 = vpop.f32.mrb[0].mxu0
        %v4000 = vadd.f32 0.0, %v3999
        %v4001 = vpop.f32.mrb[0].mxu0
        %v4002 = vpop.f32.mrb[0].mxu0
        %v4003 = vadd.f32 0.0, %v4002
        %v4004 = vpop.f32.mrb[0].mxu0
        %4005 = vmatprep.mubr.bf16.mxu0 0
        %4006 = vmatmul.mubr.bf16.gmra.mrb[0].mxu0 %v3884
        %v4007 = vpop.f32.mrb[0].mxu0
        %v4008 = vadd.f32 0.0, %v4007
        %v4009 = vpop.f32.mrb[0].mxu0
        %v4010 = vpop.f32.mrb[0].mxu0
        %v4011 = vadd.f32 0.0, %v4010
        %v4012 = vpop.f32.mrb[0].mxu0
        %4013 = vdwg.mxu0
        %v4014 = vadd.f32 %v3857, %v3984
        %v4015 = vadd.f32 %v3858, %v3987
        %v4016 = vadd.f32 %v3859, %v3992
        %v4017 = vadd.f32 %v3860, %v3995
        %v4018 = vadd.f32 %v3861, %v4000
        %v4019 = vadd.f32 %v3862, %v4003
        %v4020 = vadd.f32 %v3863, %v4008
        %v4021 = vadd.f32 %v3864, %v4011
        %s4022 = scalar_lea.vmem %s3865, 1 [#allocation4]
        %v4023 = vld [vmem:[%s4022] ss:$2 sm:$0xff]
        %s4024 = scalar_lea.vmem %s3865, 49 [#allocation4]
        %v4025 = vld [vmem:[%s4024] ss:$2 sm:$0xff]
        %s4026 = scalar_lea.vmem %s3865, 97 [#allocation4]
        %v4027 = vld [vmem:[%s4026] ss:$2 sm:$0xff]
        %s4028 = scalar_lea.vmem %s3865, 145 [#allocation4]
        %v4029 = vld [vmem:[%s4028] ss:$2 sm:$0xff]
        %s4030 = scalar_lea.vmem %s3865, 193 [#allocation4]
        %v4031 = vld [vmem:[%s4030] ss:$2 sm:$0xff]
        %s4032 = scalar_lea.vmem %s3865, 241 [#allocation4]
        %v4033 = vld [vmem:[%s4032] ss:$2 sm:$0xff]
        %s4034 = scalar_lea.vmem %s3865, 289 [#allocation4]
        %v4035 = vld [vmem:[%s4034] ss:$2 sm:$0xff]
        %s4036 = scalar_lea.vmem %s3865, 337 [#allocation4]
        %v4037 = vld [vmem:[%s4036] ss:$2 sm:$0xff]
        %v4038 = vpack.c.bf16 %v4025, %v4023
        %v4039 = vpack.c.bf16 %v4029, %v4027
        %v4040 = vpack.c.bf16 %v4033, %v4031
        %v4041 = vpack.c.bf16 %v4037, %v4035
        %v4042 = vld [vmem:[#allocation10 + $0x340] sm:$0xf]
        %v4043 = vld [vmem:[#allocation10 + $0x344] sm:$0xf]
        %v4044 = vld [vmem:[#allocation10 + $0x348] sm:$0xf]
        %v4045 = vld [vmem:[#allocation10 + $0x34c] sm:$0xf]
        %v4046 = vld [vmem:[#allocation10 + $0x350] sm:$0xf]
        %v4047 = vld [vmem:[#allocation10 + $0x354] sm:$0xf]
        %v4048 = vld [vmem:[#allocation10 + $0x358] sm:$0xf]
        %v4049 = vld [vmem:[#allocation10 + $0x35c] sm:$0xf]
        %v4050 = vld [vmem:[#allocation10 + $0x360] sm:$0xf]
        %v4051 = vld [vmem:[#allocation10 + $0x364] sm:$0xf]
        %v4052 = vld [vmem:[#allocation10 + $0x368] sm:$0xf]
        %v4053 = vld [vmem:[#allocation10 + $0x36c] sm:$0xf]
        %v4054 = vld [vmem:[#allocation10 + $0x370] sm:$0xf]
        %v4055 = vld [vmem:[#allocation10 + $0x374] sm:$0xf]
        %v4056 = vld [vmem:[#allocation10 + $0x378] sm:$0xf]
        %v4057 = vld [vmem:[#allocation10 + $0x37c] sm:$0xf]
        %v4074 = vunpack.c.l.b16 %v4042
        %v4075 = vunpack.c.l.b16 %v4043
        %v4076 = vunpack.c.l.b16 %v4044
        %v4077 = vunpack.c.l.b16 %v4045
        %v4078 = vunpack.c.l.b16 %v4046
        %v4079 = vunpack.c.l.b16 %v4047
        %v4080 = vunpack.c.l.b16 %v4048
        %v4081 = vunpack.c.l.b16 %v4049
        %v4082 = vunpack.c.l.b16 %v4050
        %v4083 = vunpack.c.l.b16 %v4051
        %v4084 = vunpack.c.l.b16 %v4052
        %v4085 = vunpack.c.l.b16 %v4053
        %v4086 = vunpack.c.l.b16 %v4054
        %v4087 = vunpack.c.l.b16 %v4055
        %v4088 = vunpack.c.l.b16 %v4056
        %v4089 = vunpack.c.l.b16 %v4057
        %v4090 = vpack.c.b16 %v4075, %v4074
        %v4091 = vpack.c.b16 %v4077, %v4076
        %v4092 = vpack.c.b16 %v4079, %v4078
        %v4093 = vpack.c.b16 %v4081, %v4080
        %v4094 = vpack.c.b16 %v4083, %v4082
        %v4095 = vpack.c.b16 %v4085, %v4084
        %v4096 = vpack.c.b16 %v4087, %v4086
        %v4097 = vpack.c.b16 %v4089, %v4088
        %4106 = vmatprep.subr.bf16.mxu0 0
        %4107 = vmatpush1.bf16.msra.mxu0 %v4090
        %4108 = vmatprep.subr.bf16.mxu0 0
        %4109 = vmatpush1.bf16.msra.mxu0 %v4091
        %4110 = vmatprep.subr.bf16.mxu0 0
        %4111 = vmatpush1.bf16.msra.mxu0 %v4092
        %4112 = vmatprep.subr.bf16.mxu0 0
        %4113 = vmatpush1.bf16.msra.mxu0 %v4093
        %4114 = vmatprep.subr.bf16.mxu0 0
        %4115 = vmatpush1.bf16.msra.mxu0 %v4094
        %4116 = vmatprep.subr.bf16.mxu0 0
        %4117 = vmatpush1.bf16.msra.mxu0 %v4095
        %4118 = vmatprep.subr.bf16.mxu0 0
        %4119 = vmatpush1.bf16.msra.mxu0 %v4096
        %4120 = vmatprep.subr.bf16.mxu0 0
        %4121 = vmatpush1.bf16.msra.mxu0 %v4097
        %4122 = vmatprep.subr.bf16.mxu0 0
        %4123 = vmatpush1.bf16.msra.mxu0 0
        %4124 = vmatprep.subr.bf16.mxu0 0
        %4125 = vmatpush1.bf16.msra.mxu0 0
        %4126 = vmatprep.subr.bf16.mxu0 0
        %4127 = vmatpush1.bf16.msra.mxu0 0
        %4128 = vmatprep.subr.bf16.mxu0 0
        %4129 = vmatpush1.bf16.msra.mxu0 0
        %4130 = vmatprep.subr.bf16.mxu0 0
        %4131 = vmatpush1.bf16.msra.mxu0 0
        %4132 = vmatprep.subr.bf16.mxu0 0
        %4133 = vmatpush1.bf16.msra.mxu0 0
        %4134 = vmatprep.subr.bf16.mxu0 0
        %4135 = vmatpush1.bf16.msra.mxu0 0
        %4136 = vmatprep.subr.bf16.mxu0 0
        %4137 = vmatpush1.bf16.msra.mxu0 0
        %4138 = vmatprep.mubr.bf16.mxu0 0
        %4139 = vmatmul.mubr.bf16.gmra.mrb[0].mxu0 %v4038
        %v4140 = vpop.f32.mrb[0].mxu0
        %v4141 = vadd.f32 0.0, %v4140
        %v4142 = vpop.f32.mrb[0].mxu0
        %v4143 = vpop.f32.mrb[0].mxu0
        %v4144 = vadd.f32 0.0, %v4143
        %v4145 = vpop.f32.mrb[0].mxu0
        %4146 = vmatprep.mubr.bf16.mxu0 0
        %4147 = vmatmul.mubr.bf16.gmra.mrb[0].mxu0 %v4039
        %v4148 = vpop.f32.mrb[0].mxu0
        %v4149 = vadd.f32 0.0, %v4148
        %v4150 = vpop.f32.mrb[0].mxu0
        %v4151 = vpop.f32.mrb[0].mxu0
        %v4152 = vadd.f32 0.0, %v4151
        %v4153 = vpop.f32.mrb[0].mxu0
        %4154 = vmatprep.mubr.bf16.mxu0 0
        %4155 = vmatmul.mubr.bf16.gmra.mrb[0].mxu0 %v4040
        %v4156 = vpop.f32.mrb[0].mxu0
        %v4157 = vadd.f32 0.0, %v4156
        %v4158 = vpop.f32.mrb[0].mxu0
        %v4159 = vpop.f32.mrb[0].mxu0
        %v4160 = vadd.f32 0.0, %v4159
        %v4161 = vpop.f32.mrb[0].mxu0
        %4162 = vmatprep.mubr.bf16.mxu0 0
        %4163 = vmatmul.mubr.bf16.gmra.mrb[0].mxu0 %v4041
        %v4164 = vpop.f32.mrb[0].mxu0
        %v4165 = vadd.f32 0.0, %v4164
        %v4166 = vpop.f32.mrb[0].mxu0
        %v4167 = vpop.f32.mrb[0].mxu0
        %v4168 = vadd.f32 0.0, %v4167
        %v4169 = vpop.f32.mrb[0].mxu0
        %4170 = vdwg.mxu0
        %v4171 = vadd.f32 %v4014, %v4141
        %v4172 = vadd.f32 %v4015, %v4144
        %v4173 = vadd.f32 %v4016, %v4149
        %v4174 = vadd.f32 %v4017, %v4152
        %v4175 = vadd.f32 %v4018, %v4157
        %v4176 = vadd.f32 %v4019, %v4160
        %v4177 = vadd.f32 %v4020, %v4165
        %v4178 = vadd.f32 %v4021, %v4168
        %s4179 = scalar_lea.vmem %s3865, 2 [#allocation4]
        %v4180 = vld [vmem:[%s4179] ss:$2 sm:$0xff]
        %s4181 = scalar_lea.vmem %s3865, 50 [#allocation4]
        %v4182 = vld [vmem:[%s4181] ss:$2 sm:$0xff]
        %s4183 = scalar_lea.vmem %s3865, 98 [#allocation4]
        %v4184 = vld [vmem:[%s4183] ss:$2 sm:$0xff]
        %s4185 = scalar_lea.vmem %s3865, 146 [#allocation4]
        %v4186 = vld [vmem:[%s4185] ss:$2 sm:$0xff]
        %s4187 = scalar_lea.vmem %s3865, 194 [#allocation4]
        %v4188 = vld [vmem:[%s4187] ss:$2 sm:$0xff]
        %s4189 = scalar_lea.vmem %s3865, 242 [#allocation4]
        %v4190 = vld [vmem:[%s4189] ss:$2 sm:$0xff]
        %s4191 = scalar_lea.vmem %s3865, 290 [#allocation4]
        %v4192 = vld [vmem:[%s4191] ss:$2 sm:$0xff]
        %s4193 = scalar_lea.vmem %s3865, 338 [#allocation4]
        %v4194 = vld [vmem:[%s4193] ss:$2 sm:$0xff]
        %v4195 = vpack.c.bf16 %v4182, %v4180
        %v4196 = vpack.c.bf16 %v4186, %v4184
        %v4197 = vpack.c.bf16 %v4190, %v4188
        %v4198 = vpack.c.bf16 %v4194, %v4192
        %v4199 = vld [vmem:[#allocation10 + $0x380] sm:$0xf]
        %v4200 = vld [vmem:[#allocation10 + $0x384] sm:$0xf]
        %v4201 = vld [vmem:[#allocation10 + $0x388] sm:$0xf]
        %v4202 = vld [vmem:[#allocation10 + $0x38c] sm:$0xf]
        %v4203 = vld [vmem:[#allocation10 + $0x390] sm:$0xf]
        %v4204 = vld [vmem:[#allocation10 + $0x394] sm:$0xf]
        %v4205 = vld [vmem:[#allocation10 + $0x398] sm:$0xf]
        %v4206 = vld [vmem:[#allocation10 + $0x39c] sm:$0xf]
        %v4207 = vld [vmem:[#allocation10 + $0x3a0] sm:$0xf]
        %v4208 = vld [vmem:[#allocation10 + $0x3a4] sm:$0xf]
        %v4209 = vld [vmem:[#allocation10 + $0x3a8] sm:$0xf]
        %v4210 = vld [vmem:[#allocation10 + $0x3ac] sm:$0xf]
        %v4211 = vld [vmem:[#allocation10 + $0x3b0] sm:$0xf]
        %v4212 = vld [vmem:[#allocation10 + $0x3b4] sm:$0xf]
        %v4213 = vld [vmem:[#allocation10 + $0x3b8] sm:$0xf]
        %v4214 = vld [vmem:[#allocation10 + $0x3bc] sm:$0xf]
        %v4231 = vunpack.c.l.b16 %v4199
        %v4232 = vunpack.c.l.b16 %v4200
        %v4233 = vunpack.c.l.b16 %v4201
        %v4234 = vunpack.c.l.b16 %v4202
        %v4235 = vunpack.c.l.b16 %v4203
        %v4236 = vunpack.c.l.b16 %v4204
        %v4237 = vunpack.c.l.b16 %v4205
        %v4238 = vunpack.c.l.b16 %v4206
        %v4239 = vunpack.c.l.b16 %v4207
        %v4240 = vunpack.c.l.b16 %v4208
        %v4241 = vunpack.c.l.b16 %v4209
        %v4242 = vunpack.c.l.b16 %v4210
        %v4243 = vunpack.c.l.b16 %v4211
        %v4244 = vunpack.c.l.b16 %v4212
        %v4245 = vunpack.c.l.b16 %v4213
        %v4246 = vunpack.c.l.b16 %v4214
        %v4247 = vpack.c.b16 %v4232, %v4231
        %v4248 = vpack.c.b16 %v4234, %v4233
        %v4249 = vpack.c.b16 %v4236, %v4235
        %v4250 = vpack.c.b16 %v4238, %v4237
        %v4251 = vpack.c.b16 %v4240, %v4239
        %v4252 = vpack.c.b16 %v4242, %v4241
        %v4253 = vpack.c.b16 %v4244, %v4243
        %v4254 = vpack.c.b16 %v4246, %v4245
        %4263 = vmatprep.subr.bf16.mxu0 0
        %4264 = vmatpush1.bf16.msra.mxu0 %v4247
        %4265 = vmatprep.subr.bf16.mxu0 0
        %4266 = vmatpush1.bf16.msra.mxu0 %v4248
        %4267 = vmatprep.subr.bf16.mxu0 0
        %4268 = vmatpush1.bf16.msra.mxu0 %v4249
        %4269 = vmatprep.subr.bf16.mxu0 0
        %4270 = vmatpush1.bf16.msra.mxu0 %v4250
        %4271 = vmatprep.subr.bf16.mxu0 0
        %4272 = vmatpush1.bf16.msra.mxu0 %v4251
        %4273 = vmatprep.subr.bf16.mxu0 0
        %4274 = vmatpush1.bf16.msra.mxu0 %v4252
        %4275 = vmatprep.subr.bf16.mxu0 0
        %4276 = vmatpush1.bf16.msra.mxu0 %v4253
        %4277 = vmatprep.subr.bf16.mxu0 0
        %4278 = vmatpush1.bf16.msra.mxu0 %v4254
        %4279 = vmatprep.subr.bf16.mxu0 0
        %4280 = vmatpush1.bf16.msra.mxu0 0
        %4281 = vmatprep.subr.bf16.mxu0 0
        %4282 = vmatpush1.bf16.msra.mxu0 0
        %4283 = vmatprep.subr.bf16.mxu0 0
        %4284 = vmatpush1.bf16.msra.mxu0 0
        %4285 = vmatprep.subr.bf16.mxu0 0
        %4286 = vmatpush1.bf16.msra.mxu0 0
        %4287 = vmatprep.subr.bf16.mxu0 0
        %4288 = vmatpush1.bf16.msra.mxu0 0
        %4289 = vmatprep.subr.bf16.mxu0 0
        %4290 = vmatpush1.bf16.msra.mxu0 0
        %4291 = vmatprep.subr.bf16.mxu0 0
        %4292 = vmatpush1.bf16.msra.mxu0 0
        %4293 = vmatprep.subr.bf16.mxu0 0
        %4294 = vmatpush1.bf16.msra.mxu0 0
        %4295 = vmatprep.mubr.bf16.mxu0 0
        %4296 = vmatmul.mubr.bf16.gmra.mrb[0].mxu0 %v4195
        %v4297 = vpop.f32.mrb[0].mxu0
        %v4298 = vadd.f32 0.0, %v4297
        %v4299 = vpop.f32.mrb[0].mxu0
        %v4300 = vpop.f32.mrb[0].mxu0
        %v4301 = vadd.f32 0.0, %v4300
        %v4302 = vpop.f32.mrb[0].mxu0
        %4303 = vmatprep.mubr.bf16.mxu0 0
        %4304 = vmatmul.mubr.bf16.gmra.mrb[0].mxu0 %v4196
        %v4305 = vpop.f32.mrb[0].mxu0
        %v4306 = vadd.f32 0.0, %v4305
        %v4307 = vpop.f32.mrb[0].mxu0
        %v4308 = vpop.f32.mrb[0].mxu0
        %v4309 = vadd.f32 0.0, %v4308
        %v4310 = vpop.f32.mrb[0].mxu0
        %4311 = vmatprep.mubr.bf16.mxu0 0
        %4312 = vmatmul.mubr.bf16.gmra.mrb[0].mxu0 %v4197
        %v4313 = vpop.f32.mrb[0].mxu0
        %v4314 = vadd.f32 0.0, %v4313
        %v4315 = vpop.f32.mrb[0].mxu0
        %v4316 = vpop.f32.mrb[0].mxu0
        %v4317 = vadd.f32 0.0, %v4316
        %v4318 = vpop.f32.mrb[0].mxu0
        %4319 = vmatprep.mubr.bf16.mxu0 0
        %4320 = vmatmul.mubr.bf16.gmra.mrb[0].mxu0 %v4198
        %v4321 = vpop.f32.mrb[0].mxu0
        %v4322 = vadd.f32 0.0, %v4321
        %v4323 = vpop.f32.mrb[0].mxu0
        %v4324 = vpop.f32.mrb[0].mxu0
        %v4325 = vadd.f32 0.0, %v4324
        %v4326 = vpop.f32.mrb[0].mxu0
        %4327 = vdwg.mxu0
        %v4328 = vadd.f32 %v4171, %v4298
        %v4329 = vadd.f32 %v4172, %v4301
        %v4330 = vadd.f32 %v4173, %v4306
        %v4331 = vadd.f32 %v4174, %v4309
        %v4332 = vadd.f32 %v4175, %v4314
        %v4333 = vadd.f32 %v4176, %v4317
        %v4334 = vadd.f32 %v4177, %v4322
        %v4335 = vadd.f32 %v4178, %v4325
        %s4336 = scalar_lea.vmem %s3865, 3 [#allocation4]
        %v4337 = vld [vmem:[%s4336] ss:$2 sm:$0xff]
        %s4338 = scalar_lea.vmem %s3865, 51 [#allocation4]
        %v4339 = vld [vmem:[%s4338] ss:$2 sm:$0xff]
        %s4340 = scalar_lea.vmem %s3865, 99 [#allocation4]
        %v4341 = vld [vmem:[%s4340] ss:$2 sm:$0xff]
        %s4342 = scalar_lea.vmem %s3865, 147 [#allocation4]
        %v4343 = vld [vmem:[%s4342] ss:$2 sm:$0xff]
        %s4344 = scalar_lea.vmem %s3865, 195 [#allocation4]
        %v4345 = vld [vmem:[%s4344] ss:$2 sm:$0xff]
        %s4346 = scalar_lea.vmem %s3865, 243 [#allocation4]
        %v4347 = vld [vmem:[%s4346] ss:$2 sm:$0xff]
        %s4348 = scalar_lea.vmem %s3865, 291 [#allocation4]
        %v4349 = vld [vmem:[%s4348] ss:$2 sm:$0xff]
        %s4350 = scalar_lea.vmem %s3865, 339 [#allocation4]
        %v4351 = vld [vmem:[%s4350] ss:$2 sm:$0xff]
        %v4352 = vpack.c.bf16 %v4339, %v4337
        %v4353 = vpack.c.bf16 %v4343, %v4341
        %v4354 = vpack.c.bf16 %v4347, %v4345
        %v4355 = vpack.c.bf16 %v4351, %v4349
        %v4356 = vld [vmem:[#allocation10 + $0x3c0] sm:$0xf]
        %v4357 = vld [vmem:[#allocation10 + $0x3c4] sm:$0xf]
        %v4358 = vld [vmem:[#allocation10 + $0x3c8] sm:$0xf]
        %v4359 = vld [vmem:[#allocation10 + $0x3cc] sm:$0xf]
        %v4360 = vld [vmem:[#allocation10 + $0x3d0] sm:$0xf]
        %v4361 = vld [vmem:[#allocation10 + $0x3d4] sm:$0xf]
        %v4362 = vld [vmem:[#allocation10 + $0x3d8] sm:$0xf]
        %v4363 = vld [vmem:[#allocation10 + $0x3dc] sm:$0xf]
        %v4364 = vld [vmem:[#allocation10 + $0x3e0] sm:$0xf]
        %v4365 = vld [vmem:[#allocation10 + $0x3e4] sm:$0xf]
        %v4366 = vld [vmem:[#allocation10 + $0x3e8] sm:$0xf]
        %v4367 = vld [vmem:[#allocation10 + $0x3ec] sm:$0xf]
        %v4368 = vld [vmem:[#allocation10 + $0x3f0] sm:$0xf]
        %v4369 = vld [vmem:[#allocation10 + $0x3f4] sm:$0xf]
        %v4370 = vld [vmem:[#allocation10 + $0x3f8] sm:$0xf]
        %v4371 = vld [vmem:[#allocation10 + $0x3fc] sm:$0xf]
        %v4388 = vunpack.c.l.b16 %v4356
        %v4389 = vunpack.c.l.b16 %v4357
        %v4390 = vunpack.c.l.b16 %v4358
        %v4391 = vunpack.c.l.b16 %v4359
        %v4392 = vunpack.c.l.b16 %v4360
        %v4393 = vunpack.c.l.b16 %v4361
        %v4394 = vunpack.c.l.b16 %v4362
        %v4395 = vunpack.c.l.b16 %v4363
        %v4396 = vunpack.c.l.b16 %v4364
        %v4397 = vunpack.c.l.b16 %v4365
        %v4398 = vunpack.c.l.b16 %v4366
        %v4399 = vunpack.c.l.b16 %v4367
        %v4400 = vunpack.c.l.b16 %v4368
        %v4401 = vunpack.c.l.b16 %v4369
        %v4402 = vunpack.c.l.b16 %v4370
        %v4403 = vunpack.c.l.b16 %v4371
        %v4404 = vpack.c.b16 %v4389, %v4388
        %v4405 = vpack.c.b16 %v4391, %v4390
        %v4406 = vpack.c.b16 %v4393, %v4392
        %v4407 = vpack.c.b16 %v4395, %v4394
        %v4408 = vpack.c.b16 %v4397, %v4396
        %v4409 = vpack.c.b16 %v4399, %v4398
        %v4410 = vpack.c.b16 %v4401, %v4400
        %v4411 = vpack.c.b16 %v4403, %v4402
        %4420 = vmatprep.subr.bf16.mxu0 0
        %4421 = vmatpush1.bf16.msra.mxu0 %v4404
        %4422 = vmatprep.subr.bf16.mxu0 0
        %4423 = vmatpush1.bf16.msra.mxu0 %v4405
        %4424 = vmatprep.subr.bf16.mxu0 0
        %4425 = vmatpush1.bf16.msra.mxu0 %v4406
        %4426 = vmatprep.subr.bf16.mxu0 0
        %4427 = vmatpush1.bf16.msra.mxu0 %v4407
        %4428 = vmatprep.subr.bf16.mxu0 0
        %4429 = vmatpush1.bf16.msra.mxu0 %v4408
        %4430 = vmatprep.subr.bf16.mxu0 0
        %4431 = vmatpush1.bf16.msra.mxu0 %v4409
        %4432 = vmatprep.subr.bf16.mxu0 0
        %4433 = vmatpush1.bf16.msra.mxu0 %v4410
        %4434 = vmatprep.subr.bf16.mxu0 0
        %4435 = vmatpush1.bf16.msra.mxu0 %v4411
        %4436 = vmatprep.subr.bf16.mxu0 0
        %4437 = vmatpush1.bf16.msra.mxu0 0
        %4438 = vmatprep.subr.bf16.mxu0 0
        %4439 = vmatpush1.bf16.msra.mxu0 0
        %4440 = vmatprep.subr.bf16.mxu0 0
        %4441 = vmatpush1.bf16.msra.mxu0 0
        %4442 = vmatprep.subr.bf16.mxu0 0
        %4443 = vmatpush1.bf16.msra.mxu0 0
        %4444 = vmatprep.subr.bf16.mxu0 0
        %4445 = vmatpush1.bf16.msra.mxu0 0
        %4446 = vmatprep.subr.bf16.mxu0 0
        %4447 = vmatpush1.bf16.msra.mxu0 0
        %4448 = vmatprep.subr.bf16.mxu0 0
        %4449 = vmatpush1.bf16.msra.mxu0 0
        %4450 = vmatprep.subr.bf16.mxu0 0
        %4451 = vmatpush1.bf16.msra.mxu0 0
        %4452 = vmatprep.mubr.bf16.mxu0 0
        %4453 = vmatmul.mubr.bf16.gmra.mrb[0].mxu0 %v4352
        %v4454 = vpop.f32.mrb[0].mxu0
        %v4455 = vadd.f32 0.0, %v4454
        %v4456 = vpop.f32.mrb[0].mxu0
        %v4457 = vpop.f32.mrb[0].mxu0
        %v4458 = vadd.f32 0.0, %v4457
        %v4459 = vpop.f32.mrb[0].mxu0
        %4460 = vmatprep.mubr.bf16.mxu0 0
        %4461 = vmatmul.mubr.bf16.gmra.mrb[0].mxu0 %v4353
        %v4462 = vpop.f32.mrb[0].mxu0
        %v4463 = vadd.f32 0.0, %v4462
        %v4464 = vpop.f32.mrb[0].mxu0
        %v4465 = vpop.f32.mrb[0].mxu0
        %v4466 = vadd.f32 0.0, %v4465
        %v4467 = vpop.f32.mrb[0].mxu0
        %4468 = vmatprep.mubr.bf16.mxu0 0
        %4469 = vmatmul.mubr.bf16.gmra.mrb[0].mxu0 %v4354
        %v4470 = vpop.f32.mrb[0].mxu0
        %v4471 = vadd.f32 0.0, %v4470
        %v4472 = vpop.f32.mrb[0].mxu0
        %v4473 = vpop.f32.mrb[0].mxu0
        %v4474 = vadd.f32 0.0, %v4473
        %v4475 = vpop.f32.mrb[0].mxu0
        %4476 = vmatprep.mubr.bf16.mxu0 0
        %4477 = vmatmul.mubr.bf16.gmra.mrb[0].mxu0 %v4355
        %v4478 = vpop.f32.mrb[0].mxu0
        %v4479 = vadd.f32 0.0, %v4478
        %v4480 = vpop.f32.mrb[0].mxu0
        %v4481 = vpop.f32.mrb[0].mxu0
        %v4482 = vadd.f32 0.0, %v4481
        %v4483 = vpop.f32.mrb[0].mxu0
        %4484 = vdwg.mxu0
        %v4485 = vadd.f32 %v4328, %v4455
        %v4486 = vadd.f32 %v4329, %v4458
        %v4487 = vadd.f32 %v4330, %v4463
        %v4488 = vadd.f32 %v4331, %v4466
        %v4489 = vadd.f32 %v4332, %v4471
        %v4490 = vadd.f32 %v4333, %v4474
        %v4491 = vadd.f32 %v4334, %v4479
        %v4492 = vadd.f32 %v4335, %v4482
        %v4493 = vld [vmem:[%s254] ss:$2 sm:$0xff]
        %s4494 = scalar_lea.vmem %s254, 32 [#allocation5]
        %v4495 = vld [vmem:[%s4494] ss:$2 sm:$0xff]
        %s4496 = scalar_lea.vmem %s254, 64 [#allocation5]
        %v4497 = vld [vmem:[%s4496] ss:$2 sm:$0xff]
        %s4498 = scalar_lea.vmem %s254, 96 [#allocation5]
        %v4499 = vld [vmem:[%s4498] ss:$2 sm:$0xff]
        %s4500 = scalar_lea.vmem %s254, 128 [#allocation5]
        %v4501 = vld [vmem:[%s4500] ss:$2 sm:$0xff]
        %s4502 = scalar_lea.vmem %s254, 160 [#allocation5]
        %v4503 = vld [vmem:[%s4502] ss:$2 sm:$0xff]
        %s4504 = scalar_lea.vmem %s254, 192 [#allocation5]
        %v4505 = vld [vmem:[%s4504] ss:$2 sm:$0xff]
        %s4506 = scalar_lea.vmem %s254, 224 [#allocation5]
        %v4507 = vld [vmem:[%s4506] ss:$2 sm:$0xff]
        %s4508 = scalar_lea.vmem %s254, 1 [#allocation5]
        %v4509 = vld [vmem:[%s4508] ss:$2 sm:$0xff]
        %s4510 = scalar_lea.vmem %s254, 33 [#allocation5]
        %v4511 = vld [vmem:[%s4510] ss:$2 sm:$0xff]
        %s4512 = scalar_lea.vmem %s254, 65 [#allocation5]
        %v4513 = vld [vmem:[%s4512] ss:$2 sm:$0xff]
        %s4514 = scalar_lea.vmem %s254, 97 [#allocation5]
        %v4515 = vld [vmem:[%s4514] ss:$2 sm:$0xff]
        %s4516 = scalar_lea.vmem %s254, 129 [#allocation5]
        %v4517 = vld [vmem:[%s4516] ss:$2 sm:$0xff]
        %s4518 = scalar_lea.vmem %s254, 161 [#allocation5]
        %v4519 = vld [vmem:[%s4518] ss:$2 sm:$0xff]
        %s4520 = scalar_lea.vmem %s254, 193 [#allocation5]
        %v4521 = vld [vmem:[%s4520] ss:$2 sm:$0xff]
        %s4522 = scalar_lea.vmem %s254, 225 [#allocation5]
        %v4523 = vld [vmem:[%s4522] ss:$2 sm:$0xff]
        %v4524 = vadd.f32 %v4493, %v4509
        %v4525 = vadd.f32 %v4495, %v4511
        %v4526 = vadd.f32 %v4497, %v4513
        %v4527 = vadd.f32 %v4499, %v4515
        %v4528 = vadd.f32 %v4501, %v4517
        %v4529 = vadd.f32 %v4503, %v4519
        %v4530 = vadd.f32 %v4505, %v4521
        %v4531 = vadd.f32 %v4507, %v4523
        %s4532 = scalar_lea.vmem %s254, 16 [#allocation5]
        %v4533 = vld [vmem:[%s4532] ss:$2 sm:$0xff]
        %s4534 = scalar_lea.vmem %s4532, 32 [#allocation5]
        %v4535 = vld [vmem:[%s4534] ss:$2 sm:$0xff]
        %s4536 = scalar_lea.vmem %s4532, 64 [#allocation5]
        %v4537 = vld [vmem:[%s4536] ss:$2 sm:$0xff]
        %s4538 = scalar_lea.vmem %s4532, 96 [#allocation5]
        %v4539 = vld [vmem:[%s4538] ss:$2 sm:$0xff]
        %s4540 = scalar_lea.vmem %s4532, 128 [#allocation5]
        %v4541 = vld [vmem:[%s4540] ss:$2 sm:$0xff]
        %s4542 = scalar_lea.vmem %s4532, 160 [#allocation5]
        %v4543 = vld [vmem:[%s4542] ss:$2 sm:$0xff]
        %s4544 = scalar_lea.vmem %s4532, 192 [#allocation5]
        %v4545 = vld [vmem:[%s4544] ss:$2 sm:$0xff]
        %s4546 = scalar_lea.vmem %s4532, 224 [#allocation5]
        %v4547 = vld [vmem:[%s4546] ss:$2 sm:$0xff]
        %v4548 = vadd.f32 %v4524, %v4533
        %v4549 = vadd.f32 %v4525, %v4535
        %v4550 = vadd.f32 %v4526, %v4537
        %v4551 = vadd.f32 %v4527, %v4539
        %v4552 = vadd.f32 %v4528, %v4541
        %v4553 = vadd.f32 %v4529, %v4543
        %v4554 = vadd.f32 %v4530, %v4545
        %v4555 = vadd.f32 %v4531, %v4547
        %s4556 = scalar_lea.vmem %s4532, 1 [#allocation5]
        %v4557 = vld [vmem:[%s4556] ss:$2 sm:$0xff]
        %s4558 = scalar_lea.vmem %s4532, 33 [#allocation5]
        %v4559 = vld [vmem:[%s4558] ss:$2 sm:$0xff]
        %s4560 = scalar_lea.vmem %s4532, 65 [#allocation5]
        %v4561 = vld [vmem:[%s4560] ss:$2 sm:$0xff]
        %s4562 = scalar_lea.vmem %s4532, 97 [#allocation5]
        %v4563 = vld [vmem:[%s4562] ss:$2 sm:$0xff]
        %s4564 = scalar_lea.vmem %s4532, 129 [#allocation5]
        %v4565 = vld [vmem:[%s4564] ss:$2 sm:$0xff]
        %s4566 = scalar_lea.vmem %s4532, 161 [#allocation5]
        %v4567 = vld [vmem:[%s4566] ss:$2 sm:$0xff]
        %s4568 = scalar_lea.vmem %s4532, 193 [#allocation5]
        %v4569 = vld [vmem:[%s4568] ss:$2 sm:$0xff]
        %s4570 = scalar_lea.vmem %s4532, 225 [#allocation5]
        %v4571 = vld [vmem:[%s4570] ss:$2 sm:$0xff]
        %v4572 = vadd.f32 %v4548, %v4557
        %v4573 = vadd.f32 %v4549, %v4559
        %v4574 = vadd.f32 %v4550, %v4561
        %v4575 = vadd.f32 %v4551, %v4563
        %v4576 = vadd.f32 %v4552, %v4565
        %v4577 = vadd.f32 %v4553, %v4567
        %v4578 = vadd.f32 %v4554, %v4569
        %v4579 = vadd.f32 %v4555, %v4571
        %v4580 = vmul.f32 %v4572, 0.25
        %v4581 = vmul.f32 %v4573, 0.25
        %v4582 = vmul.f32 %v4574, 0.25
        %v4583 = vmul.f32 %v4575, 0.25
        %v4584 = vmul.f32 %v4576, 0.25
        %v4585 = vmul.f32 %v4577, 0.25
        %v4586 = vmul.f32 %v4578, 0.25
        %v4587 = vmul.f32 %v4579, 0.25
        %v4588 = vpack.c.bf16 %v4581, %v4580
        %v4589 = vpack.c.bf16 %v4583, %v4582
        %v4590 = vpack.c.bf16 %v4585, %v4584
        %v4591 = vpack.c.bf16 %v4587, %v4586
        %v4592 = vld [vmem:[#allocation11] sm:$0x3]
        %v4593 = vld [vmem:[#allocation13 + $0x2] sm:$0x1]
        %v4594 = vlaneseq
        %v4595 = vshrl.u32 %v4594, 7
        %v4596 = vsub.s32 0, %v4595
        %v4597 = vrot.slane %v4593, %v4596
        %v4599 = vsel %vm363, %v4588, 0
        %v4602 = vsel %vm363, %v4589, 0
        %v4605 = vsel %vm363, %v4590, 0
        %v4608 = vsel %vm363, %v4591, 0
        %v4611 = vsel %vm1666, %v4592, 0
        %4613 = vmatprep.subr.bf16.mxu0 0
        %4614 = vmatpush1.bf16.msra.mxu0 %v4611
        %4615 = vmatprep.subr.bf16.mxu0 0
        %4616 = vmatpush1.bf16.msra.mxu0 0
        %4617 = vmatprep.subr.bf16.mxu0 0
        %4618 = vmatpush1.bf16.msra.mxu0 0
        %4619 = vmatprep.subr.bf16.mxu0 0
        %4620 = vmatpush1.bf16.msra.mxu0 0
        %4621 = vmatprep.subr.bf16.mxu0 0
        %4622 = vmatpush1.bf16.msra.mxu0 0
        %4623 = vmatprep.subr.bf16.mxu0 0
        %4624 = vmatpush1.bf16.msra.mxu0 0
        %4625 = vmatprep.subr.bf16.mxu0 0
        %4626 = vmatpush1.bf16.msra.mxu0 0
        %4627 = vmatprep.subr.bf16.mxu0 0
        %4628 = vmatpush1.bf16.msra.mxu0 0
        %4629 = vmatprep.subr.bf16.mxu0 0
        %4630 = vmatpush1.bf16.msra.mxu0 0
        %4631 = vmatprep.subr.bf16.mxu0 0
        %4632 = vmatpush1.bf16.msra.mxu0 0
        %4633 = vmatprep.subr.bf16.mxu0 0
        %4634 = vmatpush1.bf16.msra.mxu0 0
        %4635 = vmatprep.subr.bf16.mxu0 0
        %4636 = vmatpush1.bf16.msra.mxu0 0
        %4637 = vmatprep.subr.bf16.mxu0 0
        %4638 = vmatpush1.bf16.msra.mxu0 0
        %4639 = vmatprep.subr.bf16.mxu0 0
        %4640 = vmatpush1.bf16.msra.mxu0 0
        %4641 = vmatprep.subr.bf16.mxu0 0
        %4642 = vmatpush1.bf16.msra.mxu0 0
        %4643 = vmatprep.subr.bf16.mxu0 0
        %4644 = vmatpush1.bf16.msra.mxu0 0
        %4645 = vmatprep.mubr.bf16.mxu0 0
        %4646 = vmatmul.mubr.bf16.gmra.mrb[0].mxu0 %v4599
        %v4647 = vpop.f32.mrb[0].mxu0
        %v4648 = vadd.f32 %v4597, %v4647
        %v4649 = vpop.f32.mrb[0].mxu0
        %v4650 = vpop.f32.mrb[0].mxu0
        %v4651 = vadd.f32 %v4597, %v4650
        %v4652 = vpop.f32.mrb[0].mxu0
        %4653 = vmatprep.mubr.bf16.mxu0 0
        %4654 = vmatmul.mubr.bf16.gmra.mrb[0].mxu0 %v4602
        %v4655 = vpop.f32.mrb[0].mxu0
        %v4656 = vadd.f32 %v4597, %v4655
        %v4657 = vpop.f32.mrb[0].mxu0
        %v4658 = vpop.f32.mrb[0].mxu0
        %v4659 = vadd.f32 %v4597, %v4658
        %v4660 = vpop.f32.mrb[0].mxu0
        %4661 = vmatprep.mubr.bf16.mxu0 0
        %4662 = vmatmul.mubr.bf16.gmra.mrb[0].mxu0 %v4605
        %v4663 = vpop.f32.mrb[0].mxu0
        %v4664 = vadd.f32 %v4597, %v4663
        %v4665 = vpop.f32.mrb[0].mxu0
        %v4666 = vpop.f32.mrb[0].mxu0
        %v4667 = vadd.f32 %v4597, %v4666
        %v4668 = vpop.f32.mrb[0].mxu0
        %4669 = vmatprep.mubr.bf16.mxu0 0
        %4670 = vmatmul.mubr.bf16.gmra.mrb[0].mxu0 %v4608
        %v4671 = vpop.f32.mrb[0].mxu0
        %v4672 = vadd.f32 %v4597, %v4671
        %v4673 = vpop.f32.mrb[0].mxu0
        %v4674 = vpop.f32.mrb[0].mxu0
        %v4675 = vadd.f32 %v4597, %v4674
        %v4676 = vpop.f32.mrb[0].mxu0
        %4677 = vdwg.mxu0
        %v4678 = vadd.f32 %v4485, %v4648
        %v4679 = vadd.f32 %v4486, %v4651
        %v4680 = vadd.f32 %v4487, %v4656
        %v4681 = vadd.f32 %v4488, %v4659
        %v4682 = vadd.f32 %v4489, %v4664
        %v4683 = vadd.f32 %v4490, %v4667
        %v4684 = vadd.f32 %v4491, %v4672
        %v4685 = vadd.f32 %v4492, %v4675
        %4686 = vst [vmem:[%s296] sm:$0xff] %v4678
        %4687 = vst [vmem:[%s296 + $0x8] sm:$0xff] %v4679
        %4688 = vst [vmem:[%s296 + $0x10] sm:$0xff] %v4680
        %4689 = vst [vmem:[%s296 + $0x18] sm:$0xff] %v4681
        %4690 = vst [vmem:[%s296 + $0x20] sm:$0xff] %v4682
        %4691 = vst [vmem:[%s296 + $0x28] sm:$0xff] %v4683
        %4692 = vst [vmem:[%s296 + $0x30] sm:$0xff] %v4684
        %4693 = vst [vmem:[%s296 + $0x38] sm:$0xff] %v4685
        %s4694 = sand.u32 %s142, 1
        %s4695 = scalar_lea.sflag [#allocation7], %s4694
        %s4696 = sand.u32 %s142, 1
        %s4697 = smul.addr %s4696, 64
        %s4698 = scalar_lea.vmem [#allocation14], %s4697
        // Predicated region
        $region61: #{residual_block_down.1} parent=39 // pred_check
          %p4699 = pneg %p152
        $region62: #{residual_block_down.1} parent=39 // pred_check_branch
          %4701 = sbr.rel (%p4699) target = $region64
        $region63: #{residual_block_down.1} parent=39 // pred_region
          %s4703 = ssub.s32 1024, 1024
          %4704 = vsyncadd %s4695, %s4703
          %s4705 = smul.addr %s24, 8
          %s4706 = smul.addr %s4705, 128
          %s4707 = scalar_lea.hbm %s5, %s4706
          %s4708 = sshll.u32 %s4698, 4
          %s4709 = int_to_ptr.vmem [resolvable:$true] %s4708
          %4714 = dma.vmem_to_hbm [thread:$0]  %s4709, 1024, %s4707, %s4695, 128, 128, 8
        $region64: #{residual_block_down.1} parent=39 // pred_fallthru
          _
      $region40: #{residual_block_down.1} parent=5 // pred_fallthru
        _
      %p4715 = scmp.le.s32.totalorder 2, %s19
      // Predicated region
      $region65: #{residual_block_down.1} parent=5 // pred_check
        %p4716 = pneg %p4715
      $region66: #{residual_block_down.1} parent=5 // pred_check_branch
        %4718 = sbr.rel (%p4716) target = $region68
      $region67: #{residual_block_down.1} parent=5 // pred_region
        %s4719 = ssub.s32 %s19, 2
        // Predicated region
        $region69: #{residual_block_down.1} parent=67 // pred_check
          %p4720 = pneg %p158
        $region70: #{residual_block_down.1} parent=67 // pred_check_branch
          %4722 = sbr.rel (%p4720) target = $region72
        $region71: #{residual_block_down.1} parent=67 // pred_region
          %s4723 = sand.u32 %s143, 1
          %s4724 = scalar_lea.sflag [#allocation7], %s4723
          %s4725 = sand.u32 %s143, 1
          %s4726 = smul.addr %s4725, 64
          %s4727 = scalar_lea.vmem [#allocation14], %s4726
          %4728 = dma.done %s4724, 1024
        $region72: #{residual_block_down.1} parent=67 // pred_fallthru
          _
      $region68: #{residual_block_down.1} parent=5 // pred_fallthru
        _
    $region6: #{residual_block_down.1} parent=1 // loop_footer
      %s23 = sadd.s32 1, %s19
    $region7: #{residual_block_down.1} parent=1 // loop_footer_branch
      %18 = sbr.rel target = $region3
    $region8: #{residual_block_down.1} parent=1 // loop_exit
      _
    %4729 = vsyncpa [#allocation6], 1
    %s4730 = scalar_lea.sflag [#allocation6], 1
    %4731 = vsyncpa %s4730, 1
    %4732 = vsyncpa [#allocation9], 1
    %4733 = vsyncpa [#allocation12], 1
    %4734 = vsyncpa [#allocation7], 1
    %s4735 = scalar_lea.sflag [#allocation7], 1
    %4736 = vsyncpa %s4735, 1

</llo_original>
